<compile_context>
chip_gen: v6e
topology: v6e:2x2x1
jax: 0.10.0
libtpu: 0.0.40
codegen_flags: <defaults>
</compile_context>

<pallas_src>
import jax
import jax.numpy as jnp
from jax.experimental import pallas as pl
from jax.experimental.pallas import tpu as pltpu


def _round_up(x, m):
    return (x + m - 1) // m * m


def _cdiv(a, b):
    return -(-a // b)


def _tpu_vmem_capacity_bytes():
    """Best-effort physical VMEM capacity (generation-aware chunk budgeting)."""
    try:
        return int(pltpu.get_tpu_info().vmem_capacity_bytes)
    except Exception:
        try:
            kind = jax.devices()[0].device_kind.lower()
            if "v7" in kind:
                return 64 * 1024 * 1024
        except Exception:
            pass
        return 128 * 1024 * 1024


def _num_tensorcores():
    """Best-effort TensorCores per device (v7x exposes 2; v5e/v6e have 1)."""
    try:
        kind = jax.devices()[0].device_kind.lower()
        if "v7" in kind:
            return 2
    except Exception:
        pass
    return 1


def _pick_time_chunk(T, b_block, hp, multi, budget_bytes):
    """Largest time chunk whose streamed per-chunk VMEM stays within budget.

    Streamed bytes per time step (bf16 = 2 B):
      * double-buffered layer-0 gate-input block : 2 * 3*Hp
      * hoisted inter-layer x-proj (gx_buf)      : 3*Hp   (multi-layer only)
      * inter-layer sequence buffer (seq_buf)    : Hp     (multi-layer only)
    T need NOT be divisible by the chunk: surplus tail steps are masked
    in-kernel (state freeze), so there is no degenerate Tc=1 case.
    """
    per_step = b_block * (2 * 3 * hp + (4 * hp if multi else 0)) * 2
    tc = max(1, budget_bytes // max(per_step, 1))
    return min(tc, T)


def _make_gru_kernel(n_layers, t_chunk, b_block, hp, t_total):
    """Build the fused multi-layer GRU recurrence kernel."""
    H3 = 3 * hp
    Bb = b_block
    Tc = t_chunk
    multi = n_layers > 1
    has_tail = (t_total % t_chunk) != 0

    def kernel(*refs):
        if multi:
            (gx0_ref, wih_rest_ref, bih_rest_ref, whh_ref, bhh_ref,
             out_ref, h_all, seq_buf, gx_buf) = refs
        else:
            gx0_ref, whh_ref, bhh_ref, out_ref, h_all = refs
            seq_buf = gx_buf = None

        c = pl.program_id(1)
        nc = pl.num_programs(1)
        chunk_base = c * Tc                       # first global step of this chunk

        @pl.when(c == 0)
        def _init():
            h_all[...] = jnp.zeros(h_all.shape, h_all.dtype)

        def run_layer(layer, gx_ref, write_seq):
            # Loop-invariant per chunk: lane-padded bf16 recurrent weights and a
            # hoisted bias broadcast (JAX does not CSE broadcast_in_dim, so this
            # must NOT live inside the step loop).
            w_hh = whh_ref[layer]                                   # (Hp, 3Hp) bf16
            b_hh = jnp.broadcast_to(bhh_ref[layer], (Bb, H3))       # (Bb, 3Hp) f32

            def step(t, h_prev):
                row = pl.multiple_of(t * Bb, Bb)     # Bb is a multiple of 8
                gx = gx_ref[pl.ds(row, Bb), :]       # (Bb, 3Hp) bf16, precomputed
                # One fused MXU push for all three gates, f32 accumulation.
                # Per-step MXU cost is flat in the row count (Bb << array
                # height), so batching more sequences per call is ~free.
                gh = jnp.dot(h_prev.astype(jnp.bfloat16), w_hh,
                             preferred_element_type=jnp.float32) + b_hh
                # Gate slices are 128-lane aligned: full-vreg VPU/EUP work.
                r = jax.nn.sigmoid(gx[:, 0:hp] + gh[:, 0:hp])
                z = jax.nn.sigmoid(gx[:, hp:2 * hp] + gh[:, hp:2 * hp])
                n = jnp.tanh(gx[:, 2 * hp:3 * hp] + r * gh[:, 2 * hp:3 * hp])
                h_new = (1.0 - z) * n + z * h_prev
                if has_tail:
                    # Freeze the state on padded tail steps (beyond the real T).
                    h_new = jnp.where(chunk_base + t < t_total, h_new, h_prev)
                if write_seq:
                    seq_buf[pl.ds(row, Bb), :] = h_new.astype(jnp.bfloat16)
                return h_new

            h_fin = jax.lax.fori_loop(0, Tc, step, h_all[layer],
                                      unroll=min(Tc, 8))
            h_all[layer] = h_fin

        # Layer 0: gate inputs were precomputed outside (hoisted X @ W_ih GEMM).
        run_layer(0, gx0_ref, write_seq=multi)

        # Layers 1..L-1: hoist this layer's input projection into ONE wide GEMM
        # over the whole time chunk (M = Tc*Bb rows), then run the recurrence.
        for layer in range(1, n_layers):
            gx_buf[...] = (
                jnp.dot(seq_buf[...], wih_rest_ref[layer - 1],
                        preferred_element_type=jnp.float32)
                + bih_rest_ref[layer - 1]).astype(jnp.bfloat16)
            run_layer(layer, gx_buf, write_seq=(layer < n_layers - 1))

        # Only the final hidden state of the last layer ever goes to HBM.
        @pl.when(c == nc - 1)
        def _finalize():
            out_ref[...] = h_all[n_layers - 1]

    return kernel


def _pack_params(params, hp):
    """PyTorch layout -> kernel layout.

    Weights are transposed, the three gates (r, z, n) are concatenated on the
    lane axis and each gate is zero-padded to Hp = round_up(H, 128) lanes so
    every in-kernel gate slice is 128-lane aligned.  Zero padding keeps the
    padded hidden lanes exactly zero through the recurrence.
    """
    H = params[0][1].shape[1]

    def pad_w(w_t, in_pad):            # w_t: (in, 3H) -> (in_pad, 3Hp)
        in_dim = w_t.shape[0]
        out = jnp.zeros((in_pad, 3 * hp), jnp.float32)
        for g in range(3):
            out = out.at[:in_dim, g * hp:g * hp + H].set(w_t[:, g * H:(g + 1) * H])
        return out

    def pad_b(b):                      # (3H,) -> (1, 3Hp)
        out = jnp.zeros((1, 3 * hp), jnp.float32)
        for g in range(3):
            out = out.at[0, g * hp:g * hp + H].set(b[g * H:(g + 1) * H])
        return out

    wih, bih, whh, bhh = [], [], [], []
    for li, (w_ih, w_hh, b_ih, b_hh) in enumerate(params):
        in_pad = w_ih.shape[1] if li == 0 else hp
        wih.append(pad_w(w_ih.T.astype(jnp.float32), in_pad))
        bih.append(pad_b(b_ih.astype(jnp.float32)))
        whh.append(pad_w(w_hh.T.astype(jnp.float32), hp))
        bhh.append(pad_b(b_hh.astype(jnp.float32)))
    return wih, bih, whh, bhh


def gru_forward(x_bct, params):
    """Full module forward.

    x_bct : (B, input_size, T)  -- matches the PyTorch module's input layout.
    params: list of per-layer PyTorch-layout tensors
            (w_ih (3H,in), w_hh (3H,H), b_ih (3H,), b_hh (3H,)), gate order (r,z,n).
    returns (B, hidden_size): last time step of the last layer.
    """
    B, C, T = x_bct.shape
    L = len(params)
    H = params[0][1].shape[1]
    Hp = _round_up(H, 128)                 # lane-pad each gate to a 128-lane tile
    multi = L > 1

    wih, bih, whh_l, bhh_l = _pack_params(params, Hp)
    whh_all = jnp.stack(whh_l).astype(jnp.bfloat16)          # (L, Hp, 3Hp) bf16
    bhh_all = jnp.stack(bhh_l)                               # (L, 1, 3Hp)  f32

    # Batch padding / batch-block split.  On v7x (2 TensorCores) independent
    # batch blocks are sharded across cores ("parallel" grid axis); on 1-TC
    # chips nb stays 1 so the serial step count is unchanged.
    n_cores = _num_tensorcores()
    nb = max(1, min(n_cores, _cdiv(B, 8)))
    Bb = _round_up(_cdiv(B, nb), 8)                          # rows per block
    Bp = nb * Bb

    vmem_cap = _tpu_vmem_capacity_bytes()
    budget = max(4 * 1024 * 1024, vmem_cap // 5)             # generation-aware
    Tc = _pick_time_chunk(T, Bb, Hp, multi, budget)
    nc = _cdiv(T, Tc)
    T_pad = nc * Tc

    # permute(0,2,1) -> (B,T,C); kernel works time-major inside each batch block.
    x_tbc = jnp.transpose(x_bct, (2, 0, 1)).astype(jnp.float32)        # (T,B,C)
    x_tbc = jnp.pad(x_tbc, ((0, T_pad - T), (0, Bp - B), (0, 0)))
    # (T_pad, nb, Bb, C) -> (nb, T_pad, Bb, C) -> rows ordered (block, time, row)
    x_rows = jnp.transpose(
        x_tbc.reshape(T_pad, nb, Bb, C), (1, 0, 2, 3)
    ).reshape(nb * T_pad * Bb, C)

    # Hoisted layer-0 input projection: one big non-recurrent GEMM (bf16
    # operands, f32 accumulation -- matches the in-kernel dot precision).
    gx0 = (jnp.dot(x_rows.astype(jnp.bfloat16), wih[0].astype(jnp.bfloat16),
                   preferred_element_type=jnp.float32)
           + bih[0]).astype(jnp.bfloat16)                    # (nb*T_pad*Bb, 3Hp)

    operands = [gx0]
    # gx0 rows are laid out (batch block, time, row): block index = b*nc + c.
    in_specs = [pl.BlockSpec((Tc * Bb, 3 * Hp), lambda b, c: (b * nc + c, 0))]
    if multi:
        wih_rest = jnp.stack(wih[1:]).astype(jnp.bfloat16)   # (L-1, Hp, 3Hp)
        bih_rest = jnp.stack(bih[1:])                        # (L-1, 1, 3Hp) f32
        operands += [wih_rest, bih_rest]
        in_specs += [
            pl.BlockSpec((L - 1, Hp, 3 * Hp), lambda b, c: (0, 0, 0)),
            pl.BlockSpec((L - 1, 1, 3 * Hp), lambda b, c: (0, 0, 0)),
        ]
    operands += [whh_all, bhh_all]
    # Weight specs use constant index maps: DMA'd once, never re-fetched.
    in_specs += [
        pl.BlockSpec((L, Hp, 3 * Hp), lambda b, c: (0, 0, 0)),
        pl.BlockSpec((L, 1, 3 * Hp), lambda b, c: (0, 0, 0)),
    ]

    scratch = [pltpu.VMEM((L, Bb, Hp), jnp.float32)]         # carried hidden state
    if multi:
        scratch += [pltpu.VMEM((Tc * Bb, Hp), jnp.bfloat16),       # layer output seq
                    pltpu.VMEM((Tc * Bb, 3 * Hp), jnp.bfloat16)]   # hoisted x-proj

    out = pl.pallas_call(
        _make_gru_kernel(L, Tc, Bb, Hp, T),
        out_shape=jax.ShapeDtypeStruct((Bp, Hp), jnp.float32),
        grid_spec=pltpu.PrefetchScalarGridSpec(
            num_scalar_prefetch=0,
            grid=(nb, nc),
            in_specs=in_specs,
            out_specs=pl.BlockSpec((Bb, Hp), lambda b, c: (b, 0)),
            scratch_shapes=scratch,
        ),
        compiler_params=pltpu.CompilerParams(
            # Batch blocks are independent (megacore-parallel on v7x); the time
            # axis is sequential with state carried in VMEM scratch.
            dimension_semantics=("parallel", "arbitrary"),
            vmem_limit_bytes=int(min(vmem_cap // 2, 3 * budget)),
        ),
    )(*operands)

    # NOTE: padded batch rows (B..Bp-1) accumulate bias-driven state and padded
    # hidden lanes (H..Hp-1) stay exactly zero; both are independent of the real
    # rows/lanes and are sliced away here.  Do not add cross-row/lane reductions
    # inside the kernel without masking them.
    # TODO(synk): inter-layer dropout (nn.GRU dropout) is training-only; eval no-op.
    return out[:B, :H]


def init_gru_params(key, input_size, hidden_size, n_layers):
    """Deterministic PyTorch-style init: U(-1/sqrt(H), 1/sqrt(H)), PyTorch layout."""
    bound = 1.0 / float(hidden_size) ** 0.5
    params = []
    for layer in range(n_layers):
        in_l = input_size if layer == 0 else hidden_size
        key, k1, k2, k3, k4 = jax.random.split(key, 5)
        w_ih = jax.random.uniform(k1, (3 * hidden_size, in_l), jnp.float32, -bound, bound)
        w_hh = jax.random.uniform(k2, (3 * hidden_size, hidden_size), jnp.float32, -bound, bound)
        b_ih = jax.random.uniform(k3, (3 * hidden_size,), jnp.float32, -bound, bound)
        b_hh = jax.random.uniform(k4, (3 * hidden_size,), jnp.float32, -bound, bound)
        params.append((w_ih, w_hh, b_ih, b_hh))
    return params


def _gru_reference(x_bct, params):
    """Pure-JAX fp32 reference (lax.scan, HIGHEST precision) for correctness."""
    x = jnp.transpose(x_bct, (2, 0, 1)).astype(jnp.float32)  # (T, B, C)
    B = x.shape[1]
    hi = jax.lax.Precision.HIGHEST
    for (w_ih, w_hh, b_ih, b_hh) in params:
        H = w_hh.shape[1]
        wih_t, whh_t = w_ih.T, w_hh.T

        def step(h, x_t):
            gx = jnp.dot(x_t, wih_t, precision=hi) + b_ih
            gh = jnp.dot(h, whh_t, precision=hi) + b_hh
            r = jax.nn.sigmoid(gx[:, :H] + gh[:, :H])
            z = jax.nn.sigmoid(gx[:, H:2 * H] + gh[:, H:2 * H])
            n = jnp.tanh(gx[:, 2 * H:] + r * gh[:, 2 * H:])
            h_new = (1.0 - z) * n + z * h
            return h_new, h_new

        h0 = jnp.zeros((B, H), jnp.float32)
        _, hs = jax.lax.scan(step, h0, x)
        x = hs
    return x[-1]


if __name__ == "__main__":
    # Small shapes consistent with the module: x is (batch, input_size, seq)
    B, C, T = 2, 16, 8
    HIDDEN = 32
    N_LAYERS = 2
    DROPOUT = 0.25  # unused at inference (eval mode)

    key = jax.random.PRNGKey(0)
    kx, kp = jax.random.split(key)
    x = jax.random.normal(kx, (B, C, T), dtype=jnp.float32)

    params = init_gru_params(kp, C, HIDDEN, N_LAYERS)

    out = jax.block_until_ready(gru_forward(x, params))
    assert out.shape == (B, HIDDEN), out.shape

    ref = jax.block_until_ready(_gru_reference(x, params))
    # bf16 operands / f32 accumulation vs an fp32-HIGHEST reference: tolerance
    # is set to bf16-class accuracy.
    assert jnp.allclose(out, ref, atol=3e-2, rtol=3e-2), (
        f"max abs err {jnp.max(jnp.abs(out - ref))}"
    )

    print("KERNEL_OK")
</pallas_src>

<mosaic_0001>
module attributes {stable_mosaic.version = 11 : i64} {
  func.func @kernel(%arg0: i32, %arg1: i32, %arg2: memref<64x384xbf16, #tpu.memory_space<vmem>>, %arg3: memref<1x128x384xbf16, #tpu.memory_space<vmem>>, %arg4: memref<1x1x384xf32, #tpu.memory_space<vmem>>, %arg5: memref<2x128x384xbf16, #tpu.memory_space<vmem>>, %arg6: memref<2x1x384xf32, #tpu.memory_space<vmem>>, %arg7: memref<8x128xf32, #tpu.memory_space<vmem>>, %arg8: memref<2x8x128xf32, #tpu.memory_space<vmem>>, %arg9: memref<64x128xbf16, #tpu.memory_space<vmem>>, %arg10: memref<64x384xbf16, #tpu.memory_space<vmem>>) attributes {dimension_semantics = [#tpu.dimension_semantics<parallel>, #tpu.dimension_semantics<arbitrary>], iteration_bounds = array<i64: 1, 1>, scalar_prefetch = 0 : i64, scratch_operands = 3 : i64, tpu.core_type = #tpu.core_type<tc>, window_params = [{transform_indices = @transform_0, window_bounds = array<i64: 64, 384>}, {pipeline_mode = #tpu.pipeline_mode<synchronous>, transform_indices = @transform_1, window_bounds = array<i64: 1, 128, 384>}, {pipeline_mode = #tpu.pipeline_mode<synchronous>, transform_indices = @transform_2, window_bounds = array<i64: 1, 1, 384>}, {pipeline_mode = #tpu.pipeline_mode<synchronous>, transform_indices = @transform_3, window_bounds = array<i64: 2, 128, 384>}, {pipeline_mode = #tpu.pipeline_mode<synchronous>, transform_indices = @transform_4, window_bounds = array<i64: 2, 1, 384>}, {transform_indices = @transform_5, window_bounds = array<i64: 8, 128>}]} {
    %c0_i32 = arith.constant 0 : i32
    %0 = arith.cmpi eq, %arg1, %c0_i32 : i32
    %1 = arith.extui %0 : i1 to i32
    %c0_i32_0 = arith.constant 0 : i32
    %2 = arith.cmpi ne, %1, %c0_i32_0 : i32
    scf.if %2 {
      %cst_149 = arith.constant 0.000000e+00 : f32
      %638 = vector.broadcast %cst_149 : f32 to vector<2x8x128xf32>
      %c0_150 = arith.constant 0 : index
      %c0_151 = arith.constant 0 : index
      %c0_152 = arith.constant 0 : index
      %639 = vector.load %arg8[%c0_150, %c0_151, %c0_152] : memref<2x8x128xf32, #tpu.memory_space<vmem>>, vector<2x8x128xf32>
      tpu.vector_store %arg8[%c0_150, %c0_151, %c0_152], %638 {strides = array<i32>} : memref<2x8x128xf32, #tpu.memory_space<vmem>>, vector<2x8x128xf32>,
    } else {
    }
    %c0 = arith.constant 0 : index
    %c0_1 = arith.constant 0 : index
    %c0_2 = arith.constant 0 : index
    %3 = vector.load %arg5[%c0, %c0_1, %c0_2] : memref<2x128x384xbf16, #tpu.memory_space<vmem>>, vector<1x128x384xbf16>
    %4 = vector.shape_cast %3 : vector<1x128x384xbf16> to vector<128x384xbf16>
    %c0_3 = arith.constant 0 : index
    %c0_4 = arith.constant 0 : index
    %c0_5 = arith.constant 0 : index
    %5 = vector.load %arg6[%c0_3, %c0_4, %c0_5] : memref<2x1x384xf32, #tpu.memory_space<vmem>>, vector<1x1x384xf32>
    %6 = vector.shape_cast %5 : vector<1x1x384xf32> to vector<1x384xf32>
    %7 = vector.shape_cast %6 : vector<1x384xf32> to vector<1x384xf32>
    %8 = vector.broadcast %7 : vector<1x384xf32> to vector<8x384xf32>
    %c0_6 = arith.constant 0 : index
    %c0_7 = arith.constant 0 : index
    %c0_8 = arith.constant 0 : index
    %9 = vector.load %arg8[%c0_6, %c0_7, %c0_8] : memref<2x8x128xf32, #tpu.memory_space<vmem>>, vector<1x8x128xf32>
    %10 = vector.shape_cast %9 : vector<1x8x128xf32> to vector<8x128xf32>
    %c0_i32_9 = arith.constant 0 : i32
    %c8_i32 = arith.constant 8 : i32
    %11 = arith.muli %c0_i32_9, %c8_i32 : i32
    %12 = tpu.assume_multiple %11, 8 : i32
    %13 = arith.index_cast %12 : i32 to index
    %c0_10 = arith.constant 0 : index
    %14 = vector.load %arg2[%13, %c0_10] : memref<64x384xbf16, #tpu.memory_space<vmem>>, vector<8x384xbf16>
    %15 = arith.truncf %10 : vector<8x128xf32> to vector<8x128xbf16>
    %cst = arith.constant dense<0.000000e+00> : vector<8x384xf32>
    %16 = tpu.matmul %15, %4, %cst {dimension_numbers = #tpu.dot_dimension_numbers<[1], [0], [0], [1], [0, 0, 1, 1], [], []>} : vector<8x128xbf16>, vector<128x384xbf16>, vector<8x384xf32> -> vector<8x384xf32>
    %17 = arith.addf %16, %8 : vector<8x384xf32>
    %18 = vector.extract_strided_slice %14 {offsets = [0, 0], sizes = [8, 128], strides = [1, 1]} : vector<8x384xbf16> to vector<8x128xbf16>
    %19 = vector.extract_strided_slice %17 {offsets = [0, 0], sizes = [8, 128], strides = [1, 1]} : vector<8x384xf32> to vector<8x128xf32>
    %20 = arith.extf %18 : vector<8x128xbf16> to vector<8x128xf32>
    %21 = arith.addf %20, %19 : vector<8x128xf32>
    %22 = arith.negf %21 : vector<8x128xf32>
    %23 = math.exp %22 : vector<8x128xf32>
    %cst_11 = arith.constant 1.000000e+00 : f32
    %24 = vector.broadcast %cst_11 : f32 to vector<8x128xf32>
    %25 = arith.addf %24, %23 : vector<8x128xf32>
    %26 = arith.divf %24, %25 : vector<8x128xf32>
    %27 = vector.extract_strided_slice %14 {offsets = [0, 128], sizes = [8, 128], strides = [1, 1]} : vector<8x384xbf16> to vector<8x128xbf16>
    %28 = vector.extract_strided_slice %17 {offsets = [0, 128], sizes = [8, 128], strides = [1, 1]} : vector<8x384xf32> to vector<8x128xf32>
    %29 = arith.extf %27 : vector<8x128xbf16> to vector<8x128xf32>
    %30 = arith.addf %29, %28 : vector<8x128xf32>
    %31 = arith.negf %30 : vector<8x128xf32>
    %32 = math.exp %31 : vector<8x128xf32>
    %cst_12 = arith.constant 1.000000e+00 : f32
    %33 = vector.broadcast %cst_12 : f32 to vector<8x128xf32>
    %34 = arith.addf %33, %32 : vector<8x128xf32>
    %35 = arith.divf %33, %34 : vector<8x128xf32>
    %36 = vector.extract_strided_slice %14 {offsets = [0, 256], sizes = [8, 128], strides = [1, 1]} : vector<8x384xbf16> to vector<8x128xbf16>
    %37 = vector.extract_strided_slice %17 {offsets = [0, 256], sizes = [8, 128], strides = [1, 1]} : vector<8x384xf32> to vector<8x128xf32>
    %38 = arith.mulf %26, %37 : vector<8x128xf32>
    %39 = arith.extf %36 : vector<8x128xbf16> to vector<8x128xf32>
    %40 = arith.addf %39, %38 : vector<8x128xf32>
    %41 = math.tanh %40 : vector<8x128xf32>
    %cst_13 = arith.constant 1.000000e+00 : f32
    %42 = vector.broadcast %cst_13 : f32 to vector<8x128xf32>
    %43 = arith.subf %42, %35 : vector<8x128xf32>
    %44 = arith.mulf %43, %41 : vector<8x128xf32>
    %45 = arith.mulf %35, %10 : vector<8x128xf32>
    %46 = arith.addf %44, %45 : vector<8x128xf32>
    %47 = arith.truncf %46 : vector<8x128xf32> to vector<8x128xbf16>
    %48 = arith.index_cast %12 : i32 to index
    %c0_14 = arith.constant 0 : index
    %49 = vector.load %arg9[%48, %c0_14] : memref<64x128xbf16, #tpu.memory_space<vmem>>, vector<8x128xbf16>
    tpu.vector_store %arg9[%48, %c0_14], %47 {strides = array<i32>} : memref<64x128xbf16, #tpu.memory_space<vmem>>, vector<8x128xbf16>,
    %c1_i32 = arith.constant 1 : i32
    %c8_i32_15 = arith.constant 8 : i32
    %50 = arith.muli %c1_i32, %c8_i32_15 : i32
    %51 = tpu.assume_multiple %50, 8 : i32
    %52 = arith.index_cast %51 : i32 to index
    %c0_16 = arith.constant 0 : index
    %53 = vector.load %arg2[%52, %c0_16] : memref<64x384xbf16, #tpu.memory_space<vmem>>, vector<8x384xbf16>
    %54 = arith.truncf %46 : vector<8x128xf32> to vector<8x128xbf16>
    %cst_17 = arith.constant dense<0.000000e+00> : vector<8x384xf32>
    %55 = tpu.matmul %54, %4, %cst_17 {dimension_numbers = #tpu.dot_dimension_numbers<[1], [0], [0], [1], [0, 0, 1, 1], [], []>} : vector<8x128xbf16>, vector<128x384xbf16>, vector<8x384xf32> -> vector<8x384xf32>
    %56 = arith.addf %55, %8 : vector<8x384xf32>
    %57 = vector.extract_strided_slice %53 {offsets = [0, 0], sizes = [8, 128], strides = [1, 1]} : vector<8x384xbf16> to vector<8x128xbf16>
    %58 = vector.extract_strided_slice %56 {offsets = [0, 0], sizes = [8, 128], strides = [1, 1]} : vector<8x384xf32> to vector<8x128xf32>
    %59 = arith.extf %57 : vector<8x128xbf16> to vector<8x128xf32>
    %60 = arith.addf %59, %58 : vector<8x128xf32>
    %61 = arith.negf %60 : vector<8x128xf32>
    %62 = math.exp %61 : vector<8x128xf32>
    %cst_18 = arith.constant 1.000000e+00 : f32
    %63 = vector.broadcast %cst_18 : f32 to vector<8x128xf32>
    %64 = arith.addf %63, %62 : vector<8x128xf32>
    %65 = arith.divf %63, %64 : vector<8x128xf32>
    %66 = vector.extract_strided_slice %53 {offsets = [0, 128], sizes = [8, 128], strides = [1, 1]} : vector<8x384xbf16> to vector<8x128xbf16>
    %67 = vector.extract_strided_slice %56 {offsets = [0, 128], sizes = [8, 128], strides = [1, 1]} : vector<8x384xf32> to vector<8x128xf32>
    %68 = arith.extf %66 : vector<8x128xbf16> to vector<8x128xf32>
    %69 = arith.addf %68, %67 : vector<8x128xf32>
    %70 = arith.negf %69 : vector<8x128xf32>
    %71 = math.exp %70 : vector<8x128xf32>
    %cst_19 = arith.constant 1.000000e+00 : f32
    %72 = vector.broadcast %cst_19 : f32 to vector<8x128xf32>
    %73 = arith.addf %72, %71 : vector<8x128xf32>
    %74 = arith.divf %72, %73 : vector<8x128xf32>
    %75 = vector.extract_strided_slice %53 {offsets = [0, 256], sizes = [8, 128], strides = [1, 1]} : vector<8x384xbf16> to vector<8x128xbf16>
    %76 = vector.extract_strided_slice %56 {offsets = [0, 256], sizes = [8, 128], strides = [1, 1]} : vector<8x384xf32> to vector<8x128xf32>
    %77 = arith.mulf %65, %76 : vector<8x128xf32>
    %78 = arith.extf %75 : vector<8x128xbf16> to vector<8x128xf32>
    %79 = arith.addf %78, %77 : vector<8x128xf32>
    %80 = math.tanh %79 : vector<8x128xf32>
    %cst_20 = arith.constant 1.000000e+00 : f32
    %81 = vector.broadcast %cst_20 : f32 to vector<8x128xf32>
    %82 = arith.subf %81, %74 : vector<8x128xf32>
    %83 = arith.mulf %82, %80 : vector<8x128xf32>
    %84 = arith.mulf %74, %46 : vector<8x128xf32>
    %85 = arith.addf %83, %84 : vector<8x128xf32>
    %86 = arith.truncf %85 : vector<8x128xf32> to vector<8x128xbf16>
    %87 = arith.index_cast %51 : i32 to index
    %c0_21 = arith.constant 0 : index
    %88 = vector.load %arg9[%87, %c0_21] : memref<64x128xbf16, #tpu.memory_space<vmem>>, vector<8x128xbf16>
    tpu.vector_store %arg9[%87, %c0_21], %86 {strides = array<i32>} : memref<64x128xbf16, #tpu.memory_space<vmem>>, vector<8x128xbf16>,
    %c2_i32 = arith.constant 2 : i32
    %c8_i32_22 = arith.constant 8 : i32
    %89 = arith.muli %c2_i32, %c8_i32_22 : i32
    %90 = tpu.assume_multiple %89, 8 : i32
    %91 = arith.index_cast %90 : i32 to index
    %c0_23 = arith.constant 0 : index
    %92 = vector.load %arg2[%91, %c0_23] : memref<64x384xbf16, #tpu.memory_space<vmem>>, vector<8x384xbf16>
    %93 = arith.truncf %85 : vector<8x128xf32> to vector<8x128xbf16>
    %cst_24 = arith.constant dense<0.000000e+00> : vector<8x384xf32>
    %94 = tpu.matmul %93, %4, %cst_24 {dimension_numbers = #tpu.dot_dimension_numbers<[1], [0], [0], [1], [0, 0, 1, 1], [], []>} : vector<8x128xbf16>, vector<128x384xbf16>, vector<8x384xf32> -> vector<8x384xf32>
    %95 = arith.addf %94, %8 : vector<8x384xf32>
    %96 = vector.extract_strided_slice %92 {offsets = [0, 0], sizes = [8, 128], strides = [1, 1]} : vector<8x384xbf16> to vector<8x128xbf16>
    %97 = vector.extract_strided_slice %95 {offsets = [0, 0], sizes = [8, 128], strides = [1, 1]} : vector<8x384xf32> to vector<8x128xf32>
    %98 = arith.extf %96 : vector<8x128xbf16> to vector<8x128xf32>
    %99 = arith.addf %98, %97 : vector<8x128xf32>
    %100 = arith.negf %99 : vector<8x128xf32>
    %101 = math.exp %100 : vector<8x128xf32>
    %cst_25 = arith.constant 1.000000e+00 : f32
    %102 = vector.broadcast %cst_25 : f32 to vector<8x128xf32>
    %103 = arith.addf %102, %101 : vector<8x128xf32>
    %104 = arith.divf %102, %103 : vector<8x128xf32>
    %105 = vector.extract_strided_slice %92 {offsets = [0, 128], sizes = [8, 128], strides = [1, 1]} : vector<8x384xbf16> to vector<8x128xbf16>
    %106 = vector.extract_strided_slice %95 {offsets = [0, 128], sizes = [8, 128], strides = [1, 1]} : vector<8x384xf32> to vector<8x128xf32>
    %107 = arith.extf %105 : vector<8x128xbf16> to vector<8x128xf32>
    %108 = arith.addf %107, %106 : vector<8x128xf32>
    %109 = arith.negf %108 : vector<8x128xf32>
    %110 = math.exp %109 : vector<8x128xf32>
    %cst_26 = arith.constant 1.000000e+00 : f32
    %111 = vector.broadcast %cst_26 : f32 to vector<8x128xf32>
    %112 = arith.addf %111, %110 : vector<8x128xf32>
    %113 = arith.divf %111, %112 : vector<8x128xf32>
    %114 = vector.extract_strided_slice %92 {offsets = [0, 256], sizes = [8, 128], strides = [1, 1]} : vector<8x384xbf16> to vector<8x128xbf16>
    %115 = vector.extract_strided_slice %95 {offsets = [0, 256], sizes = [8, 128], strides = [1, 1]} : vector<8x384xf32> to vector<8x128xf32>
    %116 = arith.mulf %104, %115 : vector<8x128xf32>
    %117 = arith.extf %114 : vector<8x128xbf16> to vector<8x128xf32>
    %118 = arith.addf %117, %116 : vector<8x128xf32>
    %119 = math.tanh %118 : vector<8x128xf32>
    %cst_27 = arith.constant 1.000000e+00 : f32
    %120 = vector.broadcast %cst_27 : f32 to vector<8x128xf32>
    %121 = arith.subf %120, %113 : vector<8x128xf32>
    %122 = arith.mulf %121, %119 : vector<8x128xf32>
    %123 = arith.mulf %113, %85 : vector<8x128xf32>
    %124 = arith.addf %122, %123 : vector<8x128xf32>
    %125 = arith.truncf %124 : vector<8x128xf32> to vector<8x128xbf16>
    %126 = arith.index_cast %90 : i32 to index
    %c0_28 = arith.constant 0 : index
    %127 = vector.load %arg9[%126, %c0_28] : memref<64x128xbf16, #tpu.memory_space<vmem>>, vector<8x128xbf16>
    tpu.vector_store %arg9[%126, %c0_28], %125 {strides = array<i32>} : memref<64x128xbf16, #tpu.memory_space<vmem>>, vector<8x128xbf16>,
    %c3_i32 = arith.constant 3 : i32
    %c8_i32_29 = arith.constant 8 : i32
    %128 = arith.muli %c3_i32, %c8_i32_29 : i32
    %129 = tpu.assume_multiple %128, 8 : i32
    %130 = arith.index_cast %129 : i32 to index
    %c0_30 = arith.constant 0 : index
    %131 = vector.load %arg2[%130, %c0_30] : memref<64x384xbf16, #tpu.memory_space<vmem>>, vector<8x384xbf16>
    %132 = arith.truncf %124 : vector<8x128xf32> to vector<8x128xbf16>
    %cst_31 = arith.constant dense<0.000000e+00> : vector<8x384xf32>
    %133 = tpu.matmul %132, %4, %cst_31 {dimension_numbers = #tpu.dot_dimension_numbers<[1], [0], [0], [1], [0, 0, 1, 1], [], []>} : vector<8x128xbf16>, vector<128x384xbf16>, vector<8x384xf32> -> vector<8x384xf32>
    %134 = arith.addf %133, %8 : vector<8x384xf32>
    %135 = vector.extract_strided_slice %131 {offsets = [0, 0], sizes = [8, 128], strides = [1, 1]} : vector<8x384xbf16> to vector<8x128xbf16>
    %136 = vector.extract_strided_slice %134 {offsets = [0, 0], sizes = [8, 128], strides = [1, 1]} : vector<8x384xf32> to vector<8x128xf32>
    %137 = arith.extf %135 : vector<8x128xbf16> to vector<8x128xf32>
    %138 = arith.addf %137, %136 : vector<8x128xf32>
    %139 = arith.negf %138 : vector<8x128xf32>
    %140 = math.exp %139 : vector<8x128xf32>
    %cst_32 = arith.constant 1.000000e+00 : f32
    %141 = vector.broadcast %cst_32 : f32 to vector<8x128xf32>
    %142 = arith.addf %141, %140 : vector<8x128xf32>
    %143 = arith.divf %141, %142 : vector<8x128xf32>
    %144 = vector.extract_strided_slice %131 {offsets = [0, 128], sizes = [8, 128], strides = [1, 1]} : vector<8x384xbf16> to vector<8x128xbf16>
    %145 = vector.extract_strided_slice %134 {offsets = [0, 128], sizes = [8, 128], strides = [1, 1]} : vector<8x384xf32> to vector<8x128xf32>
    %146 = arith.extf %144 : vector<8x128xbf16> to vector<8x128xf32>
    %147 = arith.addf %146, %145 : vector<8x128xf32>
    %148 = arith.negf %147 : vector<8x128xf32>
    %149 = math.exp %148 : vector<8x128xf32>
    %cst_33 = arith.constant 1.000000e+00 : f32
    %150 = vector.broadcast %cst_33 : f32 to vector<8x128xf32>
    %151 = arith.addf %150, %149 : vector<8x128xf32>
    %152 = arith.divf %150, %151 : vector<8x128xf32>
    %153 = vector.extract_strided_slice %131 {offsets = [0, 256], sizes = [8, 128], strides = [1, 1]} : vector<8x384xbf16> to vector<8x128xbf16>
    %154 = vector.extract_strided_slice %134 {offsets = [0, 256], sizes = [8, 128], strides = [1, 1]} : vector<8x384xf32> to vector<8x128xf32>
    %155 = arith.mulf %143, %154 : vector<8x128xf32>
    %156 = arith.extf %153 : vector<8x128xbf16> to vector<8x128xf32>
    %157 = arith.addf %156, %155 : vector<8x128xf32>
    %158 = math.tanh %157 : vector<8x128xf32>
    %cst_34 = arith.constant 1.000000e+00 : f32
    %159 = vector.broadcast %cst_34 : f32 to vector<8x128xf32>
    %160 = arith.subf %159, %152 : vector<8x128xf32>
    %161 = arith.mulf %160, %158 : vector<8x128xf32>
    %162 = arith.mulf %152, %124 : vector<8x128xf32>
    %163 = arith.addf %161, %162 : vector<8x128xf32>
    %164 = arith.truncf %163 : vector<8x128xf32> to vector<8x128xbf16>
    %165 = arith.index_cast %129 : i32 to index
    %c0_35 = arith.constant 0 : index
    %166 = vector.load %arg9[%165, %c0_35] : memref<64x128xbf16, #tpu.memory_space<vmem>>, vector<8x128xbf16>
    tpu.vector_store %arg9[%165, %c0_35], %164 {strides = array<i32>} : memref<64x128xbf16, #tpu.memory_space<vmem>>, vector<8x128xbf16>,
    %c4_i32 = arith.constant 4 : i32
    %c8_i32_36 = arith.constant 8 : i32
    %167 = arith.muli %c4_i32, %c8_i32_36 : i32
    %168 = tpu.assume_multiple %167, 8 : i32
    %169 = arith.index_cast %168 : i32 to index
    %c0_37 = arith.constant 0 : index
    %170 = vector.load %arg2[%169, %c0_37] : memref<64x384xbf16, #tpu.memory_space<vmem>>, vector<8x384xbf16>
    %171 = arith.truncf %163 : vector<8x128xf32> to vector<8x128xbf16>
    %cst_38 = arith.constant dense<0.000000e+00> : vector<8x384xf32>
    %172 = tpu.matmul %171, %4, %cst_38 {dimension_numbers = #tpu.dot_dimension_numbers<[1], [0], [0], [1], [0, 0, 1, 1], [], []>} : vector<8x128xbf16>, vector<128x384xbf16>, vector<8x384xf32> -> vector<8x384xf32>
    %173 = arith.addf %172, %8 : vector<8x384xf32>
    %174 = vector.extract_strided_slice %170 {offsets = [0, 0], sizes = [8, 128], strides = [1, 1]} : vector<8x384xbf16> to vector<8x128xbf16>
    %175 = vector.extract_strided_slice %173 {offsets = [0, 0], sizes = [8, 128], strides = [1, 1]} : vector<8x384xf32> to vector<8x128xf32>
    %176 = arith.extf %174 : vector<8x128xbf16> to vector<8x128xf32>
    %177 = arith.addf %176, %175 : vector<8x128xf32>
    %178 = arith.negf %177 : vector<8x128xf32>
    %179 = math.exp %178 : vector<8x128xf32>
    %cst_39 = arith.constant 1.000000e+00 : f32
    %180 = vector.broadcast %cst_39 : f32 to vector<8x128xf32>
    %181 = arith.addf %180, %179 : vector<8x128xf32>
    %182 = arith.divf %180, %181 : vector<8x128xf32>
    %183 = vector.extract_strided_slice %170 {offsets = [0, 128], sizes = [8, 128], strides = [1, 1]} : vector<8x384xbf16> to vector<8x128xbf16>
    %184 = vector.extract_strided_slice %173 {offsets = [0, 128], sizes = [8, 128], strides = [1, 1]} : vector<8x384xf32> to vector<8x128xf32>
    %185 = arith.extf %183 : vector<8x128xbf16> to vector<8x128xf32>
    %186 = arith.addf %185, %184 : vector<8x128xf32>
    %187 = arith.negf %186 : vector<8x128xf32>
    %188 = math.exp %187 : vector<8x128xf32>
    %cst_40 = arith.constant 1.000000e+00 : f32
    %189 = vector.broadcast %cst_40 : f32 to vector<8x128xf32>
    %190 = arith.addf %189, %188 : vector<8x128xf32>
    %191 = arith.divf %189, %190 : vector<8x128xf32>
    %192 = vector.extract_strided_slice %170 {offsets = [0, 256], sizes = [8, 128], strides = [1, 1]} : vector<8x384xbf16> to vector<8x128xbf16>
    %193 = vector.extract_strided_slice %173 {offsets = [0, 256], sizes = [8, 128], strides = [1, 1]} : vector<8x384xf32> to vector<8x128xf32>
    %194 = arith.mulf %182, %193 : vector<8x128xf32>
    %195 = arith.extf %192 : vector<8x128xbf16> to vector<8x128xf32>
    %196 = arith.addf %195, %194 : vector<8x128xf32>
    %197 = math.tanh %196 : vector<8x128xf32>
    %cst_41 = arith.constant 1.000000e+00 : f32
    %198 = vector.broadcast %cst_41 : f32 to vector<8x128xf32>
    %199 = arith.subf %198, %191 : vector<8x128xf32>
    %200 = arith.mulf %199, %197 : vector<8x128xf32>
    %201 = arith.mulf %191, %163 : vector<8x128xf32>
    %202 = arith.addf %200, %201 : vector<8x128xf32>
    %203 = arith.truncf %202 : vector<8x128xf32> to vector<8x128xbf16>
    %204 = arith.index_cast %168 : i32 to index
    %c0_42 = arith.constant 0 : index
    %205 = vector.load %arg9[%204, %c0_42] : memref<64x128xbf16, #tpu.memory_space<vmem>>, vector<8x128xbf16>
    tpu.vector_store %arg9[%204, %c0_42], %203 {strides = array<i32>} : memref<64x128xbf16, #tpu.memory_space<vmem>>, vector<8x128xbf16>,
    %c5_i32 = arith.constant 5 : i32
    %c8_i32_43 = arith.constant 8 : i32
    %206 = arith.muli %c5_i32, %c8_i32_43 : i32
    %207 = tpu.assume_multiple %206, 8 : i32
    %208 = arith.index_cast %207 : i32 to index
    %c0_44 = arith.constant 0 : index
    %209 = vector.load %arg2[%208, %c0_44] : memref<64x384xbf16, #tpu.memory_space<vmem>>, vector<8x384xbf16>
    %210 = arith.truncf %202 : vector<8x128xf32> to vector<8x128xbf16>
    %cst_45 = arith.constant dense<0.000000e+00> : vector<8x384xf32>
    %211 = tpu.matmul %210, %4, %cst_45 {dimension_numbers = #tpu.dot_dimension_numbers<[1], [0], [0], [1], [0, 0, 1, 1], [], []>} : vector<8x128xbf16>, vector<128x384xbf16>, vector<8x384xf32> -> vector<8x384xf32>
    %212 = arith.addf %211, %8 : vector<8x384xf32>
    %213 = vector.extract_strided_slice %209 {offsets = [0, 0], sizes = [8, 128], strides = [1, 1]} : vector<8x384xbf16> to vector<8x128xbf16>
    %214 = vector.extract_strided_slice %212 {offsets = [0, 0], sizes = [8, 128], strides = [1, 1]} : vector<8x384xf32> to vector<8x128xf32>
    %215 = arith.extf %213 : vector<8x128xbf16> to vector<8x128xf32>
    %216 = arith.addf %215, %214 : vector<8x128xf32>
    %217 = arith.negf %216 : vector<8x128xf32>
    %218 = math.exp %217 : vector<8x128xf32>
    %cst_46 = arith.constant 1.000000e+00 : f32
    %219 = vector.broadcast %cst_46 : f32 to vector<8x128xf32>
    %220 = arith.addf %219, %218 : vector<8x128xf32>
    %221 = arith.divf %219, %220 : vector<8x128xf32>
    %222 = vector.extract_strided_slice %209 {offsets = [0, 128], sizes = [8, 128], strides = [1, 1]} : vector<8x384xbf16> to vector<8x128xbf16>
    %223 = vector.extract_strided_slice %212 {offsets = [0, 128], sizes = [8, 128], strides = [1, 1]} : vector<8x384xf32> to vector<8x128xf32>
    %224 = arith.extf %222 : vector<8x128xbf16> to vector<8x128xf32>
    %225 = arith.addf %224, %223 : vector<8x128xf32>
    %226 = arith.negf %225 : vector<8x128xf32>
    %227 = math.exp %226 : vector<8x128xf32>
    %cst_47 = arith.constant 1.000000e+00 : f32
    %228 = vector.broadcast %cst_47 : f32 to vector<8x128xf32>
    %229 = arith.addf %228, %227 : vector<8x128xf32>
    %230 = arith.divf %228, %229 : vector<8x128xf32>
    %231 = vector.extract_strided_slice %209 {offsets = [0, 256], sizes = [8, 128], strides = [1, 1]} : vector<8x384xbf16> to vector<8x128xbf16>
    %232 = vector.extract_strided_slice %212 {offsets = [0, 256], sizes = [8, 128], strides = [1, 1]} : vector<8x384xf32> to vector<8x128xf32>
    %233 = arith.mulf %221, %232 : vector<8x128xf32>
    %234 = arith.extf %231 : vector<8x128xbf16> to vector<8x128xf32>
    %235 = arith.addf %234, %233 : vector<8x128xf32>
    %236 = math.tanh %235 : vector<8x128xf32>
    %cst_48 = arith.constant 1.000000e+00 : f32
    %237 = vector.broadcast %cst_48 : f32 to vector<8x128xf32>
    %238 = arith.subf %237, %230 : vector<8x128xf32>
    %239 = arith.mulf %238, %236 : vector<8x128xf32>
    %240 = arith.mulf %230, %202 : vector<8x128xf32>
    %241 = arith.addf %239, %240 : vector<8x128xf32>
    %242 = arith.truncf %241 : vector<8x128xf32> to vector<8x128xbf16>
    %243 = arith.index_cast %207 : i32 to index
    %c0_49 = arith.constant 0 : index
    %244 = vector.load %arg9[%243, %c0_49] : memref<64x128xbf16, #tpu.memory_space<vmem>>, vector<8x128xbf16>
    tpu.vector_store %arg9[%243, %c0_49], %242 {strides = array<i32>} : memref<64x128xbf16, #tpu.memory_space<vmem>>, vector<8x128xbf16>,
    %c6_i32 = arith.constant 6 : i32
    %c8_i32_50 = arith.constant 8 : i32
    %245 = arith.muli %c6_i32, %c8_i32_50 : i32
    %246 = tpu.assume_multiple %245, 8 : i32
    %247 = arith.index_cast %246 : i32 to index
    %c0_51 = arith.constant 0 : index
    %248 = vector.load %arg2[%247, %c0_51] : memref<64x384xbf16, #tpu.memory_space<vmem>>, vector<8x384xbf16>
    %249 = arith.truncf %241 : vector<8x128xf32> to vector<8x128xbf16>
    %cst_52 = arith.constant dense<0.000000e+00> : vector<8x384xf32>
    %250 = tpu.matmul %249, %4, %cst_52 {dimension_numbers = #tpu.dot_dimension_numbers<[1], [0], [0], [1], [0, 0, 1, 1], [], []>} : vector<8x128xbf16>, vector<128x384xbf16>, vector<8x384xf32> -> vector<8x384xf32>
    %251 = arith.addf %250, %8 : vector<8x384xf32>
    %252 = vector.extract_strided_slice %248 {offsets = [0, 0], sizes = [8, 128], strides = [1, 1]} : vector<8x384xbf16> to vector<8x128xbf16>
    %253 = vector.extract_strided_slice %251 {offsets = [0, 0], sizes = [8, 128], strides = [1, 1]} : vector<8x384xf32> to vector<8x128xf32>
    %254 = arith.extf %252 : vector<8x128xbf16> to vector<8x128xf32>
    %255 = arith.addf %254, %253 : vector<8x128xf32>
    %256 = arith.negf %255 : vector<8x128xf32>
    %257 = math.exp %256 : vector<8x128xf32>
    %cst_53 = arith.constant 1.000000e+00 : f32
    %258 = vector.broadcast %cst_53 : f32 to vector<8x128xf32>
    %259 = arith.addf %258, %257 : vector<8x128xf32>
    %260 = arith.divf %258, %259 : vector<8x128xf32>
    %261 = vector.extract_strided_slice %248 {offsets = [0, 128], sizes = [8, 128], strides = [1, 1]} : vector<8x384xbf16> to vector<8x128xbf16>
    %262 = vector.extract_strided_slice %251 {offsets = [0, 128], sizes = [8, 128], strides = [1, 1]} : vector<8x384xf32> to vector<8x128xf32>
    %263 = arith.extf %261 : vector<8x128xbf16> to vector<8x128xf32>
    %264 = arith.addf %263, %262 : vector<8x128xf32>
    %265 = arith.negf %264 : vector<8x128xf32>
    %266 = math.exp %265 : vector<8x128xf32>
    %cst_54 = arith.constant 1.000000e+00 : f32
    %267 = vector.broadcast %cst_54 : f32 to vector<8x128xf32>
    %268 = arith.addf %267, %266 : vector<8x128xf32>
    %269 = arith.divf %267, %268 : vector<8x128xf32>
    %270 = vector.extract_strided_slice %248 {offsets = [0, 256], sizes = [8, 128], strides = [1, 1]} : vector<8x384xbf16> to vector<8x128xbf16>
    %271 = vector.extract_strided_slice %251 {offsets = [0, 256], sizes = [8, 128], strides = [1, 1]} : vector<8x384xf32> to vector<8x128xf32>
    %272 = arith.mulf %260, %271 : vector<8x128xf32>
    %273 = arith.extf %270 : vector<8x128xbf16> to vector<8x128xf32>
    %274 = arith.addf %273, %272 : vector<8x128xf32>
    %275 = math.tanh %274 : vector<8x128xf32>
    %cst_55 = arith.constant 1.000000e+00 : f32
    %276 = vector.broadcast %cst_55 : f32 to vector<8x128xf32>
    %277 = arith.subf %276, %269 : vector<8x128xf32>
    %278 = arith.mulf %277, %275 : vector<8x128xf32>
    %279 = arith.mulf %269, %241 : vector<8x128xf32>
    %280 = arith.addf %278, %279 : vector<8x128xf32>
    %281 = arith.truncf %280 : vector<8x128xf32> to vector<8x128xbf16>
    %282 = arith.index_cast %246 : i32 to index
    %c0_56 = arith.constant 0 : index
    %283 = vector.load %arg9[%282, %c0_56] : memref<64x128xbf16, #tpu.memory_space<vmem>>, vector<8x128xbf16>
    tpu.vector_store %arg9[%282, %c0_56], %281 {strides = array<i32>} : memref<64x128xbf16, #tpu.memory_space<vmem>>, vector<8x128xbf16>,
    %c7_i32 = arith.constant 7 : i32
    %c8_i32_57 = arith.constant 8 : i32
    %284 = arith.muli %c7_i32, %c8_i32_57 : i32
    %285 = tpu.assume_multiple %284, 8 : i32
    %286 = arith.index_cast %285 : i32 to index
    %c0_58 = arith.constant 0 : index
    %287 = vector.load %arg2[%286, %c0_58] : memref<64x384xbf16, #tpu.memory_space<vmem>>, vector<8x384xbf16>
    %288 = arith.truncf %280 : vector<8x128xf32> to vector<8x128xbf16>
    %cst_59 = arith.constant dense<0.000000e+00> : vector<8x384xf32>
    %289 = tpu.matmul %288, %4, %cst_59 {dimension_numbers = #tpu.dot_dimension_numbers<[1], [0], [0], [1], [0, 0, 1, 1], [], []>} : vector<8x128xbf16>, vector<128x384xbf16>, vector<8x384xf32> -> vector<8x384xf32>
    %290 = arith.addf %289, %8 : vector<8x384xf32>
    %291 = vector.extract_strided_slice %287 {offsets = [0, 0], sizes = [8, 128], strides = [1, 1]} : vector<8x384xbf16> to vector<8x128xbf16>
    %292 = vector.extract_strided_slice %290 {offsets = [0, 0], sizes = [8, 128], strides = [1, 1]} : vector<8x384xf32> to vector<8x128xf32>
    %293 = arith.extf %291 : vector<8x128xbf16> to vector<8x128xf32>
    %294 = arith.addf %293, %292 : vector<8x128xf32>
    %295 = arith.negf %294 : vector<8x128xf32>
    %296 = math.exp %295 : vector<8x128xf32>
    %cst_60 = arith.constant 1.000000e+00 : f32
    %297 = vector.broadcast %cst_60 : f32 to vector<8x128xf32>
    %298 = arith.addf %297, %296 : vector<8x128xf32>
    %299 = arith.divf %297, %298 : vector<8x128xf32>
    %300 = vector.extract_strided_slice %287 {offsets = [0, 128], sizes = [8, 128], strides = [1, 1]} : vector<8x384xbf16> to vector<8x128xbf16>
    %301 = vector.extract_strided_slice %290 {offsets = [0, 128], sizes = [8, 128], strides = [1, 1]} : vector<8x384xf32> to vector<8x128xf32>
    %302 = arith.extf %300 : vector<8x128xbf16> to vector<8x128xf32>
    %303 = arith.addf %302, %301 : vector<8x128xf32>
    %304 = arith.negf %303 : vector<8x128xf32>
    %305 = math.exp %304 : vector<8x128xf32>
    %cst_61 = arith.constant 1.000000e+00 : f32
    %306 = vector.broadcast %cst_61 : f32 to vector<8x128xf32>
    %307 = arith.addf %306, %305 : vector<8x128xf32>
    %308 = arith.divf %306, %307 : vector<8x128xf32>
    %309 = vector.extract_strided_slice %287 {offsets = [0, 256], sizes = [8, 128], strides = [1, 1]} : vector<8x384xbf16> to vector<8x128xbf16>
    %310 = vector.extract_strided_slice %290 {offsets = [0, 256], sizes = [8, 128], strides = [1, 1]} : vector<8x384xf32> to vector<8x128xf32>
    %311 = arith.mulf %299, %310 : vector<8x128xf32>
    %312 = arith.extf %309 : vector<8x128xbf16> to vector<8x128xf32>
    %313 = arith.addf %312, %311 : vector<8x128xf32>
    %314 = math.tanh %313 : vector<8x128xf32>
    %cst_62 = arith.constant 1.000000e+00 : f32
    %315 = vector.broadcast %cst_62 : f32 to vector<8x128xf32>
    %316 = arith.subf %315, %308 : vector<8x128xf32>
    %317 = arith.mulf %316, %314 : vector<8x128xf32>
    %318 = arith.mulf %308, %280 : vector<8x128xf32>
    %319 = arith.addf %317, %318 : vector<8x128xf32>
    %320 = arith.truncf %319 : vector<8x128xf32> to vector<8x128xbf16>
    %321 = arith.index_cast %285 : i32 to index
    %c0_63 = arith.constant 0 : index
    %322 = vector.load %arg9[%321, %c0_63] : memref<64x128xbf16, #tpu.memory_space<vmem>>, vector<8x128xbf16>
    tpu.vector_store %arg9[%321, %c0_63], %320 {strides = array<i32>} : memref<64x128xbf16, #tpu.memory_space<vmem>>, vector<8x128xbf16>,
    %c8_i32_64 = arith.constant 8 : i32
    %c0_65 = arith.constant 0 : index
    %c0_66 = arith.constant 0 : index
    %c0_67 = arith.constant 0 : index
    %323 = vector.load %arg8[%c0_65, %c0_66, %c0_67] : memref<2x8x128xf32, #tpu.memory_space<vmem>>, vector<1x8x128xf32>
    %324 = vector.shape_cast %323 : vector<1x8x128xf32> to vector<8x128xf32>
    %325 = vector.shape_cast %319 : vector<8x128xf32> to vector<1x8x128xf32>
    tpu.vector_store %arg8[%c0_65, %c0_66, %c0_67], %325 {strides = array<i32>} : memref<2x8x128xf32, #tpu.memory_space<vmem>>, vector<1x8x128xf32>,
    %c0_68 = arith.constant 0 : index
    %c0_69 = arith.constant 0 : index
    %326 = vector.load %arg9[%c0_68, %c0_69] : memref<64x128xbf16, #tpu.memory_space<vmem>>, vector<64x128xbf16>
    %c0_70 = arith.constant 0 : index
    %c0_71 = arith.constant 0 : index
    %c0_72 = arith.constant 0 : index
    %327 = vector.load %arg3[%c0_70, %c0_71, %c0_72] : memref<1x128x384xbf16, #tpu.memory_space<vmem>>, vector<1x128x384xbf16>
    %328 = vector.shape_cast %327 : vector<1x128x384xbf16> to vector<128x384xbf16>
    %cst_73 = arith.constant dense<0.000000e+00> : vector<64x384xf32>
    %329 = tpu.matmul %326, %328, %cst_73 {dimension_numbers = #tpu.dot_dimension_numbers<[1], [0], [0], [1], [0, 0, 1, 1], [], []>} : vector<64x128xbf16>, vector<128x384xbf16>, vector<64x384xf32> -> vector<64x384xf32>
    %c0_74 = arith.constant 0 : index
    %c0_75 = arith.constant 0 : index
    %c0_76 = arith.constant 0 : index
    %330 = vector.load %arg4[%c0_74, %c0_75, %c0_76] : memref<1x1x384xf32, #tpu.memory_space<vmem>>, vector<1x1x384xf32>
    %331 = vector.shape_cast %330 : vector<1x1x384xf32> to vector<1x384xf32>
    %332 = vector.broadcast %331 : vector<1x384xf32> to vector<64x384xf32>
    %333 = arith.addf %329, %332 : vector<64x384xf32>
    %334 = arith.truncf %333 : vector<64x384xf32> to vector<64x384xbf16>
    %c0_77 = arith.constant 0 : index
    %c0_78 = arith.constant 0 : index
    %335 = vector.load %arg10[%c0_77, %c0_78] : memref<64x384xbf16, #tpu.memory_space<vmem>>, vector<64x384xbf16>
    tpu.vector_store %arg10[%c0_77, %c0_78], %334 {strides = array<i32>} : memref<64x384xbf16, #tpu.memory_space<vmem>>, vector<64x384xbf16>,
    %c1 = arith.constant 1 : index
    %c0_79 = arith.constant 0 : index
    %c0_80 = arith.constant 0 : index
    %336 = vector.load %arg5[%c1, %c0_79, %c0_80] : memref<2x128x384xbf16, #tpu.memory_space<vmem>>, vector<1x128x384xbf16>
    %337 = vector.shape_cast %336 : vector<1x128x384xbf16> to vector<128x384xbf16>
    %c1_81 = arith.constant 1 : index
    %c0_82 = arith.constant 0 : index
    %c0_83 = arith.constant 0 : index
    %338 = vector.load %arg6[%c1_81, %c0_82, %c0_83] : memref<2x1x384xf32, #tpu.memory_space<vmem>>, vector<1x1x384xf32>
    %339 = vector.shape_cast %338 : vector<1x1x384xf32> to vector<1x384xf32>
    %340 = vector.shape_cast %339 : vector<1x384xf32> to vector<1x384xf32>
    %341 = vector.broadcast %340 : vector<1x384xf32> to vector<8x384xf32>
    %c1_84 = arith.constant 1 : index
    %c0_85 = arith.constant 0 : index
    %c0_86 = arith.constant 0 : index
    %342 = vector.load %arg8[%c1_84, %c0_85, %c0_86] : memref<2x8x128xf32, #tpu.memory_space<vmem>>, vector<1x8x128xf32>
    %343 = vector.shape_cast %342 : vector<1x8x128xf32> to vector<8x128xf32>
    %c0_i32_87 = arith.constant 0 : i32
    %c8_i32_88 = arith.constant 8 : i32
    %344 = arith.muli %c0_i32_87, %c8_i32_88 : i32
    %345 = tpu.assume_multiple %344, 8 : i32
    %346 = arith.index_cast %345 : i32 to index
    %c0_89 = arith.constant 0 : index
    %347 = vector.load %arg10[%346, %c0_89] : memref<64x384xbf16, #tpu.memory_space<vmem>>, vector<8x384xbf16>
    %348 = arith.truncf %343 : vector<8x128xf32> to vector<8x128xbf16>
    %cst_90 = arith.constant dense<0.000000e+00> : vector<8x384xf32>
    %349 = tpu.matmul %348, %337, %cst_90 {dimension_numbers = #tpu.dot_dimension_numbers<[1], [0], [0], [1], [0, 0, 1, 1], [], []>} : vector<8x128xbf16>, vector<128x384xbf16>, vector<8x384xf32> -> vector<8x384xf32>
    %350 = arith.addf %349, %341 : vector<8x384xf32>
    %351 = vector.extract_strided_slice %347 {offsets = [0, 0], sizes = [8, 128], strides = [1, 1]} : vector<8x384xbf16> to vector<8x128xbf16>
    %352 = vector.extract_strided_slice %350 {offsets = [0, 0], sizes = [8, 128], strides = [1, 1]} : vector<8x384xf32> to vector<8x128xf32>
    %353 = arith.extf %351 : vector<8x128xbf16> to vector<8x128xf32>
    %354 = arith.addf %353, %352 : vector<8x128xf32>
    %355 = arith.negf %354 : vector<8x128xf32>
    %356 = math.exp %355 : vector<8x128xf32>
    %cst_91 = arith.constant 1.000000e+00 : f32
    %357 = vector.broadcast %cst_91 : f32 to vector<8x128xf32>
    %358 = arith.addf %357, %356 : vector<8x128xf32>
    %359 = arith.divf %357, %358 : vector<8x128xf32>
    %360 = vector.extract_strided_slice %347 {offsets = [0, 128], sizes = [8, 128], strides = [1, 1]} : vector<8x384xbf16> to vector<8x128xbf16>
    %361 = vector.extract_strided_slice %350 {offsets = [0, 128], sizes = [8, 128], strides = [1, 1]} : vector<8x384xf32> to vector<8x128xf32>
    %362 = arith.extf %360 : vector<8x128xbf16> to vector<8x128xf32>
    %363 = arith.addf %362, %361 : vector<8x128xf32>
    %364 = arith.negf %363 : vector<8x128xf32>
    %365 = math.exp %364 : vector<8x128xf32>
    %cst_92 = arith.constant 1.000000e+00 : f32
    %366 = vector.broadcast %cst_92 : f32 to vector<8x128xf32>
    %367 = arith.addf %366, %365 : vector<8x128xf32>
    %368 = arith.divf %366, %367 : vector<8x128xf32>
    %369 = vector.extract_strided_slice %347 {offsets = [0, 256], sizes = [8, 128], strides = [1, 1]} : vector<8x384xbf16> to vector<8x128xbf16>
    %370 = vector.extract_strided_slice %350 {offsets = [0, 256], sizes = [8, 128], strides = [1, 1]} : vector<8x384xf32> to vector<8x128xf32>
    %371 = arith.mulf %359, %370 : vector<8x128xf32>
    %372 = arith.extf %369 : vector<8x128xbf16> to vector<8x128xf32>
    %373 = arith.addf %372, %371 : vector<8x128xf32>
    %374 = math.tanh %373 : vector<8x128xf32>
    %cst_93 = arith.constant 1.000000e+00 : f32
    %375 = vector.broadcast %cst_93 : f32 to vector<8x128xf32>
    %376 = arith.subf %375, %368 : vector<8x128xf32>
    %377 = arith.mulf %376, %374 : vector<8x128xf32>
    %378 = arith.mulf %368, %343 : vector<8x128xf32>
    %379 = arith.addf %377, %378 : vector<8x128xf32>
    %c1_i32_94 = arith.constant 1 : i32
    %c8_i32_95 = arith.constant 8 : i32
    %380 = arith.muli %c1_i32_94, %c8_i32_95 : i32
    %381 = tpu.assume_multiple %380, 8 : i32
    %382 = arith.index_cast %381 : i32 to index
    %c0_96 = arith.constant 0 : index
    %383 = vector.load %arg10[%382, %c0_96] : memref<64x384xbf16, #tpu.memory_space<vmem>>, vector<8x384xbf16>
    %384 = arith.truncf %379 : vector<8x128xf32> to vector<8x128xbf16>
    %cst_97 = arith.constant dense<0.000000e+00> : vector<8x384xf32>
    %385 = tpu.matmul %384, %337, %cst_97 {dimension_numbers = #tpu.dot_dimension_numbers<[1], [0], [0], [1], [0, 0, 1, 1], [], []>} : vector<8x128xbf16>, vector<128x384xbf16>, vector<8x384xf32> -> vector<8x384xf32>
    %386 = arith.addf %385, %341 : vector<8x384xf32>
    %387 = vector.extract_strided_slice %383 {offsets = [0, 0], sizes = [8, 128], strides = [1, 1]} : vector<8x384xbf16> to vector<8x128xbf16>
    %388 = vector.extract_strided_slice %386 {offsets = [0, 0], sizes = [8, 128], strides = [1, 1]} : vector<8x384xf32> to vector<8x128xf32>
    %389 = arith.extf %387 : vector<8x128xbf16> to vector<8x128xf32>
    %390 = arith.addf %389, %388 : vector<8x128xf32>
    %391 = arith.negf %390 : vector<8x128xf32>
    %392 = math.exp %391 : vector<8x128xf32>
    %cst_98 = arith.constant 1.000000e+00 : f32
    %393 = vector.broadcast %cst_98 : f32 to vector<8x128xf32>
    %394 = arith.addf %393, %392 : vector<8x128xf32>
    %395 = arith.divf %393, %394 : vector<8x128xf32>
    %396 = vector.extract_strided_slice %383 {offsets = [0, 128], sizes = [8, 128], strides = [1, 1]} : vector<8x384xbf16> to vector<8x128xbf16>
    %397 = vector.extract_strided_slice %386 {offsets = [0, 128], sizes = [8, 128], strides = [1, 1]} : vector<8x384xf32> to vector<8x128xf32>
    %398 = arith.extf %396 : vector<8x128xbf16> to vector<8x128xf32>
    %399 = arith.addf %398, %397 : vector<8x128xf32>
    %400 = arith.negf %399 : vector<8x128xf32>
    %401 = math.exp %400 : vector<8x128xf32>
    %cst_99 = arith.constant 1.000000e+00 : f32
    %402 = vector.broadcast %cst_99 : f32 to vector<8x128xf32>
    %403 = arith.addf %402, %401 : vector<8x128xf32>
    %404 = arith.divf %402, %403 : vector<8x128xf32>
    %405 = vector.extract_strided_slice %383 {offsets = [0, 256], sizes = [8, 128], strides = [1, 1]} : vector<8x384xbf16> to vector<8x128xbf16>
    %406 = vector.extract_strided_slice %386 {offsets = [0, 256], sizes = [8, 128], strides = [1, 1]} : vector<8x384xf32> to vector<8x128xf32>
    %407 = arith.mulf %395, %406 : vector<8x128xf32>
    %408 = arith.extf %405 : vector<8x128xbf16> to vector<8x128xf32>
    %409 = arith.addf %408, %407 : vector<8x128xf32>
    %410 = math.tanh %409 : vector<8x128xf32>
    %cst_100 = arith.constant 1.000000e+00 : f32
    %411 = vector.broadcast %cst_100 : f32 to vector<8x128xf32>
    %412 = arith.subf %411, %404 : vector<8x128xf32>
    %413 = arith.mulf %412, %410 : vector<8x128xf32>
    %414 = arith.mulf %404, %379 : vector<8x128xf32>
    %415 = arith.addf %413, %414 : vector<8x128xf32>
    %c2_i32_101 = arith.constant 2 : i32
    %c8_i32_102 = arith.constant 8 : i32
    %416 = arith.muli %c2_i32_101, %c8_i32_102 : i32
    %417 = tpu.assume_multiple %416, 8 : i32
    %418 = arith.index_cast %417 : i32 to index
    %c0_103 = arith.constant 0 : index
    %419 = vector.load %arg10[%418, %c0_103] : memref<64x384xbf16, #tpu.memory_space<vmem>>, vector<8x384xbf16>
    %420 = arith.truncf %415 : vector<8x128xf32> to vector<8x128xbf16>
    %cst_104 = arith.constant dense<0.000000e+00> : vector<8x384xf32>
    %421 = tpu.matmul %420, %337, %cst_104 {dimension_numbers = #tpu.dot_dimension_numbers<[1], [0], [0], [1], [0, 0, 1, 1], [], []>} : vector<8x128xbf16>, vector<128x384xbf16>, vector<8x384xf32> -> vector<8x384xf32>
    %422 = arith.addf %421, %341 : vector<8x384xf32>
    %423 = vector.extract_strided_slice %419 {offsets = [0, 0], sizes = [8, 128], strides = [1, 1]} : vector<8x384xbf16> to vector<8x128xbf16>
    %424 = vector.extract_strided_slice %422 {offsets = [0, 0], sizes = [8, 128], strides = [1, 1]} : vector<8x384xf32> to vector<8x128xf32>
    %425 = arith.extf %423 : vector<8x128xbf16> to vector<8x128xf32>
    %426 = arith.addf %425, %424 : vector<8x128xf32>
    %427 = arith.negf %426 : vector<8x128xf32>
    %428 = math.exp %427 : vector<8x128xf32>
    %cst_105 = arith.constant 1.000000e+00 : f32
    %429 = vector.broadcast %cst_105 : f32 to vector<8x128xf32>
    %430 = arith.addf %429, %428 : vector<8x128xf32>
    %431 = arith.divf %429, %430 : vector<8x128xf32>
    %432 = vector.extract_strided_slice %419 {offsets = [0, 128], sizes = [8, 128], strides = [1, 1]} : vector<8x384xbf16> to vector<8x128xbf16>
    %433 = vector.extract_strided_slice %422 {offsets = [0, 128], sizes = [8, 128], strides = [1, 1]} : vector<8x384xf32> to vector<8x128xf32>
    %434 = arith.extf %432 : vector<8x128xbf16> to vector<8x128xf32>
    %435 = arith.addf %434, %433 : vector<8x128xf32>
    %436 = arith.negf %435 : vector<8x128xf32>
    %437 = math.exp %436 : vector<8x128xf32>
    %cst_106 = arith.constant 1.000000e+00 : f32
    %438 = vector.broadcast %cst_106 : f32 to vector<8x128xf32>
    %439 = arith.addf %438, %437 : vector<8x128xf32>
    %440 = arith.divf %438, %439 : vector<8x128xf32>
    %441 = vector.extract_strided_slice %419 {offsets = [0, 256], sizes = [8, 128], strides = [1, 1]} : vector<8x384xbf16> to vector<8x128xbf16>
    %442 = vector.extract_strided_slice %422 {offsets = [0, 256], sizes = [8, 128], strides = [1, 1]} : vector<8x384xf32> to vector<8x128xf32>
    %443 = arith.mulf %431, %442 : vector<8x128xf32>
    %444 = arith.extf %441 : vector<8x128xbf16> to vector<8x128xf32>
    %445 = arith.addf %444, %443 : vector<8x128xf32>
    %446 = math.tanh %445 : vector<8x128xf32>
    %cst_107 = arith.constant 1.000000e+00 : f32
    %447 = vector.broadcast %cst_107 : f32 to vector<8x128xf32>
    %448 = arith.subf %447, %440 : vector<8x128xf32>
    %449 = arith.mulf %448, %446 : vector<8x128xf32>
    %450 = arith.mulf %440, %415 : vector<8x128xf32>
    %451 = arith.addf %449, %450 : vector<8x128xf32>
    %c3_i32_108 = arith.constant 3 : i32
    %c8_i32_109 = arith.constant 8 : i32
    %452 = arith.muli %c3_i32_108, %c8_i32_109 : i32
    %453 = tpu.assume_multiple %452, 8 : i32
    %454 = arith.index_cast %453 : i32 to index
    %c0_110 = arith.constant 0 : index
    %455 = vector.load %arg10[%454, %c0_110] : memref<64x384xbf16, #tpu.memory_space<vmem>>, vector<8x384xbf16>
    %456 = arith.truncf %451 : vector<8x128xf32> to vector<8x128xbf16>
    %cst_111 = arith.constant dense<0.000000e+00> : vector<8x384xf32>
    %457 = tpu.matmul %456, %337, %cst_111 {dimension_numbers = #tpu.dot_dimension_numbers<[1], [0], [0], [1], [0, 0, 1, 1], [], []>} : vector<8x128xbf16>, vector<128x384xbf16>, vector<8x384xf32> -> vector<8x384xf32>
    %458 = arith.addf %457, %341 : vector<8x384xf32>
    %459 = vector.extract_strided_slice %455 {offsets = [0, 0], sizes = [8, 128], strides = [1, 1]} : vector<8x384xbf16> to vector<8x128xbf16>
    %460 = vector.extract_strided_slice %458 {offsets = [0, 0], sizes = [8, 128], strides = [1, 1]} : vector<8x384xf32> to vector<8x128xf32>
    %461 = arith.extf %459 : vector<8x128xbf16> to vector<8x128xf32>
    %462 = arith.addf %461, %460 : vector<8x128xf32>
    %463 = arith.negf %462 : vector<8x128xf32>
    %464 = math.exp %463 : vector<8x128xf32>
    %cst_112 = arith.constant 1.000000e+00 : f32
    %465 = vector.broadcast %cst_112 : f32 to vector<8x128xf32>
    %466 = arith.addf %465, %464 : vector<8x128xf32>
    %467 = arith.divf %465, %466 : vector<8x128xf32>
    %468 = vector.extract_strided_slice %455 {offsets = [0, 128], sizes = [8, 128], strides = [1, 1]} : vector<8x384xbf16> to vector<8x128xbf16>
    %469 = vector.extract_strided_slice %458 {offsets = [0, 128], sizes = [8, 128], strides = [1, 1]} : vector<8x384xf32> to vector<8x128xf32>
    %470 = arith.extf %468 : vector<8x128xbf16> to vector<8x128xf32>
    %471 = arith.addf %470, %469 : vector<8x128xf32>
    %472 = arith.negf %471 : vector<8x128xf32>
    %473 = math.exp %472 : vector<8x128xf32>
    %cst_113 = arith.constant 1.000000e+00 : f32
    %474 = vector.broadcast %cst_113 : f32 to vector<8x128xf32>
    %475 = arith.addf %474, %473 : vector<8x128xf32>
    %476 = arith.divf %474, %475 : vector<8x128xf32>
    %477 = vector.extract_strided_slice %455 {offsets = [0, 256], sizes = [8, 128], strides = [1, 1]} : vector<8x384xbf16> to vector<8x128xbf16>
    %478 = vector.extract_strided_slice %458 {offsets = [0, 256], sizes = [8, 128], strides = [1, 1]} : vector<8x384xf32> to vector<8x128xf32>
    %479 = arith.mulf %467, %478 : vector<8x128xf32>
    %480 = arith.extf %477 : vector<8x128xbf16> to vector<8x128xf32>
    %481 = arith.addf %480, %479 : vector<8x128xf32>
    %482 = math.tanh %481 : vector<8x128xf32>
    %cst_114 = arith.constant 1.000000e+00 : f32
    %483 = vector.broadcast %cst_114 : f32 to vector<8x128xf32>
    %484 = arith.subf %483, %476 : vector<8x128xf32>
    %485 = arith.mulf %484, %482 : vector<8x128xf32>
    %486 = arith.mulf %476, %451 : vector<8x128xf32>
    %487 = arith.addf %485, %486 : vector<8x128xf32>
    %c4_i32_115 = arith.constant 4 : i32
    %c8_i32_116 = arith.constant 8 : i32
    %488 = arith.muli %c4_i32_115, %c8_i32_116 : i32
    %489 = tpu.assume_multiple %488, 8 : i32
    %490 = arith.index_cast %489 : i32 to index
    %c0_117 = arith.constant 0 : index
    %491 = vector.load %arg10[%490, %c0_117] : memref<64x384xbf16, #tpu.memory_space<vmem>>, vector<8x384xbf16>
    %492 = arith.truncf %487 : vector<8x128xf32> to vector<8x128xbf16>
    %cst_118 = arith.constant dense<0.000000e+00> : vector<8x384xf32>
    %493 = tpu.matmul %492, %337, %cst_118 {dimension_numbers = #tpu.dot_dimension_numbers<[1], [0], [0], [1], [0, 0, 1, 1], [], []>} : vector<8x128xbf16>, vector<128x384xbf16>, vector<8x384xf32> -> vector<8x384xf32>
    %494 = arith.addf %493, %341 : vector<8x384xf32>
    %495 = vector.extract_strided_slice %491 {offsets = [0, 0], sizes = [8, 128], strides = [1, 1]} : vector<8x384xbf16> to vector<8x128xbf16>
    %496 = vector.extract_strided_slice %494 {offsets = [0, 0], sizes = [8, 128], strides = [1, 1]} : vector<8x384xf32> to vector<8x128xf32>
    %497 = arith.extf %495 : vector<8x128xbf16> to vector<8x128xf32>
    %498 = arith.addf %497, %496 : vector<8x128xf32>
    %499 = arith.negf %498 : vector<8x128xf32>
    %500 = math.exp %499 : vector<8x128xf32>
    %cst_119 = arith.constant 1.000000e+00 : f32
    %501 = vector.broadcast %cst_119 : f32 to vector<8x128xf32>
    %502 = arith.addf %501, %500 : vector<8x128xf32>
    %503 = arith.divf %501, %502 : vector<8x128xf32>
    %504 = vector.extract_strided_slice %491 {offsets = [0, 128], sizes = [8, 128], strides = [1, 1]} : vector<8x384xbf16> to vector<8x128xbf16>
    %505 = vector.extract_strided_slice %494 {offsets = [0, 128], sizes = [8, 128], strides = [1, 1]} : vector<8x384xf32> to vector<8x128xf32>
    %506 = arith.extf %504 : vector<8x128xbf16> to vector<8x128xf32>
    %507 = arith.addf %506, %505 : vector<8x128xf32>
    %508 = arith.negf %507 : vector<8x128xf32>
    %509 = math.exp %508 : vector<8x128xf32>
    %cst_120 = arith.constant 1.000000e+00 : f32
    %510 = vector.broadcast %cst_120 : f32 to vector<8x128xf32>
    %511 = arith.addf %510, %509 : vector<8x128xf32>
    %512 = arith.divf %510, %511 : vector<8x128xf32>
    %513 = vector.extract_strided_slice %491 {offsets = [0, 256], sizes = [8, 128], strides = [1, 1]} : vector<8x384xbf16> to vector<8x128xbf16>
    %514 = vector.extract_strided_slice %494 {offsets = [0, 256], sizes = [8, 128], strides = [1, 1]} : vector<8x384xf32> to vector<8x128xf32>
    %515 = arith.mulf %503, %514 : vector<8x128xf32>
    %516 = arith.extf %513 : vector<8x128xbf16> to vector<8x128xf32>
    %517 = arith.addf %516, %515 : vector<8x128xf32>
    %518 = math.tanh %517 : vector<8x128xf32>
    %cst_121 = arith.constant 1.000000e+00 : f32
    %519 = vector.broadcast %cst_121 : f32 to vector<8x128xf32>
    %520 = arith.subf %519, %512 : vector<8x128xf32>
    %521 = arith.mulf %520, %518 : vector<8x128xf32>
    %522 = arith.mulf %512, %487 : vector<8x128xf32>
    %523 = arith.addf %521, %522 : vector<8x128xf32>
    %c5_i32_122 = arith.constant 5 : i32
    %c8_i32_123 = arith.constant 8 : i32
    %524 = arith.muli %c5_i32_122, %c8_i32_123 : i32
    %525 = tpu.assume_multiple %524, 8 : i32
    %526 = arith.index_cast %525 : i32 to index
    %c0_124 = arith.constant 0 : index
    %527 = vector.load %arg10[%526, %c0_124] : memref<64x384xbf16, #tpu.memory_space<vmem>>, vector<8x384xbf16>
    %528 = arith.truncf %523 : vector<8x128xf32> to vector<8x128xbf16>
    %cst_125 = arith.constant dense<0.000000e+00> : vector<8x384xf32>
    %529 = tpu.matmul %528, %337, %cst_125 {dimension_numbers = #tpu.dot_dimension_numbers<[1], [0], [0], [1], [0, 0, 1, 1], [], []>} : vector<8x128xbf16>, vector<128x384xbf16>, vector<8x384xf32> -> vector<8x384xf32>
    %530 = arith.addf %529, %341 : vector<8x384xf32>
    %531 = vector.extract_strided_slice %527 {offsets = [0, 0], sizes = [8, 128], strides = [1, 1]} : vector<8x384xbf16> to vector<8x128xbf16>
    %532 = vector.extract_strided_slice %530 {offsets = [0, 0], sizes = [8, 128], strides = [1, 1]} : vector<8x384xf32> to vector<8x128xf32>
    %533 = arith.extf %531 : vector<8x128xbf16> to vector<8x128xf32>
    %534 = arith.addf %533, %532 : vector<8x128xf32>
    %535 = arith.negf %534 : vector<8x128xf32>
    %536 = math.exp %535 : vector<8x128xf32>
    %cst_126 = arith.constant 1.000000e+00 : f32
    %537 = vector.broadcast %cst_126 : f32 to vector<8x128xf32>
    %538 = arith.addf %537, %536 : vector<8x128xf32>
    %539 = arith.divf %537, %538 : vector<8x128xf32>
    %540 = vector.extract_strided_slice %527 {offsets = [0, 128], sizes = [8, 128], strides = [1, 1]} : vector<8x384xbf16> to vector<8x128xbf16>
    %541 = vector.extract_strided_slice %530 {offsets = [0, 128], sizes = [8, 128], strides = [1, 1]} : vector<8x384xf32> to vector<8x128xf32>
    %542 = arith.extf %540 : vector<8x128xbf16> to vector<8x128xf32>
    %543 = arith.addf %542, %541 : vector<8x128xf32>
    %544 = arith.negf %543 : vector<8x128xf32>
    %545 = math.exp %544 : vector<8x128xf32>
    %cst_127 = arith.constant 1.000000e+00 : f32
    %546 = vector.broadcast %cst_127 : f32 to vector<8x128xf32>
    %547 = arith.addf %546, %545 : vector<8x128xf32>
    %548 = arith.divf %546, %547 : vector<8x128xf32>
    %549 = vector.extract_strided_slice %527 {offsets = [0, 256], sizes = [8, 128], strides = [1, 1]} : vector<8x384xbf16> to vector<8x128xbf16>
    %550 = vector.extract_strided_slice %530 {offsets = [0, 256], sizes = [8, 128], strides = [1, 1]} : vector<8x384xf32> to vector<8x128xf32>
    %551 = arith.mulf %539, %550 : vector<8x128xf32>
    %552 = arith.extf %549 : vector<8x128xbf16> to vector<8x128xf32>
    %553 = arith.addf %552, %551 : vector<8x128xf32>
    %554 = math.tanh %553 : vector<8x128xf32>
    %cst_128 = arith.constant 1.000000e+00 : f32
    %555 = vector.broadcast %cst_128 : f32 to vector<8x128xf32>
    %556 = arith.subf %555, %548 : vector<8x128xf32>
    %557 = arith.mulf %556, %554 : vector<8x128xf32>
    %558 = arith.mulf %548, %523 : vector<8x128xf32>
    %559 = arith.addf %557, %558 : vector<8x128xf32>
    %c6_i32_129 = arith.constant 6 : i32
    %c8_i32_130 = arith.constant 8 : i32
    %560 = arith.muli %c6_i32_129, %c8_i32_130 : i32
    %561 = tpu.assume_multiple %560, 8 : i32
    %562 = arith.index_cast %561 : i32 to index
    %c0_131 = arith.constant 0 : index
    %563 = vector.load %arg10[%562, %c0_131] : memref<64x384xbf16, #tpu.memory_space<vmem>>, vector<8x384xbf16>
    %564 = arith.truncf %559 : vector<8x128xf32> to vector<8x128xbf16>
    %cst_132 = arith.constant dense<0.000000e+00> : vector<8x384xf32>
    %565 = tpu.matmul %564, %337, %cst_132 {dimension_numbers = #tpu.dot_dimension_numbers<[1], [0], [0], [1], [0, 0, 1, 1], [], []>} : vector<8x128xbf16>, vector<128x384xbf16>, vector<8x384xf32> -> vector<8x384xf32>
    %566 = arith.addf %565, %341 : vector<8x384xf32>
    %567 = vector.extract_strided_slice %563 {offsets = [0, 0], sizes = [8, 128], strides = [1, 1]} : vector<8x384xbf16> to vector<8x128xbf16>
    %568 = vector.extract_strided_slice %566 {offsets = [0, 0], sizes = [8, 128], strides = [1, 1]} : vector<8x384xf32> to vector<8x128xf32>
    %569 = arith.extf %567 : vector<8x128xbf16> to vector<8x128xf32>
    %570 = arith.addf %569, %568 : vector<8x128xf32>
    %571 = arith.negf %570 : vector<8x128xf32>
    %572 = math.exp %571 : vector<8x128xf32>
    %cst_133 = arith.constant 1.000000e+00 : f32
    %573 = vector.broadcast %cst_133 : f32 to vector<8x128xf32>
    %574 = arith.addf %573, %572 : vector<8x128xf32>
    %575 = arith.divf %573, %574 : vector<8x128xf32>
    %576 = vector.extract_strided_slice %563 {offsets = [0, 128], sizes = [8, 128], strides = [1, 1]} : vector<8x384xbf16> to vector<8x128xbf16>
    %577 = vector.extract_strided_slice %566 {offsets = [0, 128], sizes = [8, 128], strides = [1, 1]} : vector<8x384xf32> to vector<8x128xf32>
    %578 = arith.extf %576 : vector<8x128xbf16> to vector<8x128xf32>
    %579 = arith.addf %578, %577 : vector<8x128xf32>
    %580 = arith.negf %579 : vector<8x128xf32>
    %581 = math.exp %580 : vector<8x128xf32>
    %cst_134 = arith.constant 1.000000e+00 : f32
    %582 = vector.broadcast %cst_134 : f32 to vector<8x128xf32>
    %583 = arith.addf %582, %581 : vector<8x128xf32>
    %584 = arith.divf %582, %583 : vector<8x128xf32>
    %585 = vector.extract_strided_slice %563 {offsets = [0, 256], sizes = [8, 128], strides = [1, 1]} : vector<8x384xbf16> to vector<8x128xbf16>
    %586 = vector.extract_strided_slice %566 {offsets = [0, 256], sizes = [8, 128], strides = [1, 1]} : vector<8x384xf32> to vector<8x128xf32>
    %587 = arith.mulf %575, %586 : vector<8x128xf32>
    %588 = arith.extf %585 : vector<8x128xbf16> to vector<8x128xf32>
    %589 = arith.addf %588, %587 : vector<8x128xf32>
    %590 = math.tanh %589 : vector<8x128xf32>
    %cst_135 = arith.constant 1.000000e+00 : f32
    %591 = vector.broadcast %cst_135 : f32 to vector<8x128xf32>
    %592 = arith.subf %591, %584 : vector<8x128xf32>
    %593 = arith.mulf %592, %590 : vector<8x128xf32>
    %594 = arith.mulf %584, %559 : vector<8x128xf32>
    %595 = arith.addf %593, %594 : vector<8x128xf32>
    %c7_i32_136 = arith.constant 7 : i32
    %c8_i32_137 = arith.constant 8 : i32
    %596 = arith.muli %c7_i32_136, %c8_i32_137 : i32
    %597 = tpu.assume_multiple %596, 8 : i32
    %598 = arith.index_cast %597 : i32 to index
    %c0_138 = arith.constant 0 : index
    %599 = vector.load %arg10[%598, %c0_138] : memref<64x384xbf16, #tpu.memory_space<vmem>>, vector<8x384xbf16>
    %600 = arith.truncf %595 : vector<8x128xf32> to vector<8x128xbf16>
    %cst_139 = arith.constant dense<0.000000e+00> : vector<8x384xf32>
    %601 = tpu.matmul %600, %337, %cst_139 {dimension_numbers = #tpu.dot_dimension_numbers<[1], [0], [0], [1], [0, 0, 1, 1], [], []>} : vector<8x128xbf16>, vector<128x384xbf16>, vector<8x384xf32> -> vector<8x384xf32>
    %602 = arith.addf %601, %341 : vector<8x384xf32>
    %603 = vector.extract_strided_slice %599 {offsets = [0, 0], sizes = [8, 128], strides = [1, 1]} : vector<8x384xbf16> to vector<8x128xbf16>
    %604 = vector.extract_strided_slice %602 {offsets = [0, 0], sizes = [8, 128], strides = [1, 1]} : vector<8x384xf32> to vector<8x128xf32>
    %605 = arith.extf %603 : vector<8x128xbf16> to vector<8x128xf32>
    %606 = arith.addf %605, %604 : vector<8x128xf32>
    %607 = arith.negf %606 : vector<8x128xf32>
    %608 = math.exp %607 : vector<8x128xf32>
    %cst_140 = arith.constant 1.000000e+00 : f32
    %609 = vector.broadcast %cst_140 : f32 to vector<8x128xf32>
    %610 = arith.addf %609, %608 : vector<8x128xf32>
    %611 = arith.divf %609, %610 : vector<8x128xf32>
    %612 = vector.extract_strided_slice %599 {offsets = [0, 128], sizes = [8, 128], strides = [1, 1]} : vector<8x384xbf16> to vector<8x128xbf16>
    %613 = vector.extract_strided_slice %602 {offsets = [0, 128], sizes = [8, 128], strides = [1, 1]} : vector<8x384xf32> to vector<8x128xf32>
    %614 = arith.extf %612 : vector<8x128xbf16> to vector<8x128xf32>
    %615 = arith.addf %614, %613 : vector<8x128xf32>
    %616 = arith.negf %615 : vector<8x128xf32>
    %617 = math.exp %616 : vector<8x128xf32>
    %cst_141 = arith.constant 1.000000e+00 : f32
    %618 = vector.broadcast %cst_141 : f32 to vector<8x128xf32>
    %619 = arith.addf %618, %617 : vector<8x128xf32>
    %620 = arith.divf %618, %619 : vector<8x128xf32>
    %621 = vector.extract_strided_slice %599 {offsets = [0, 256], sizes = [8, 128], strides = [1, 1]} : vector<8x384xbf16> to vector<8x128xbf16>
    %622 = vector.extract_strided_slice %602 {offsets = [0, 256], sizes = [8, 128], strides = [1, 1]} : vector<8x384xf32> to vector<8x128xf32>
    %623 = arith.mulf %611, %622 : vector<8x128xf32>
    %624 = arith.extf %621 : vector<8x128xbf16> to vector<8x128xf32>
    %625 = arith.addf %624, %623 : vector<8x128xf32>
    %626 = math.tanh %625 : vector<8x128xf32>
    %cst_142 = arith.constant 1.000000e+00 : f32
    %627 = vector.broadcast %cst_142 : f32 to vector<8x128xf32>
    %628 = arith.subf %627, %620 : vector<8x128xf32>
    %629 = arith.mulf %628, %626 : vector<8x128xf32>
    %630 = arith.mulf %620, %595 : vector<8x128xf32>
    %631 = arith.addf %629, %630 : vector<8x128xf32>
    %c8_i32_143 = arith.constant 8 : i32
    %c1_144 = arith.constant 1 : index
    %c0_145 = arith.constant 0 : index
    %c0_146 = arith.constant 0 : index
    %632 = vector.load %arg8[%c1_144, %c0_145, %c0_146] : memref<2x8x128xf32, #tpu.memory_space<vmem>>, vector<1x8x128xf32>
    %633 = vector.shape_cast %632 : vector<1x8x128xf32> to vector<8x128xf32>
    %634 = vector.shape_cast %631 : vector<8x128xf32> to vector<1x8x128xf32>
    tpu.vector_store %arg8[%c1_144, %c0_145, %c0_146], %634 {strides = array<i32>} : memref<2x8x128xf32, #tpu.memory_space<vmem>>, vector<1x8x128xf32>,
    %c0_i32_147 = arith.constant 0 : i32
    %635 = arith.cmpi eq, %arg1, %c0_i32_147 : i32
    %636 = arith.extui %635 : i1 to i32
    %c0_i32_148 = arith.constant 0 : i32
    %637 = arith.cmpi ne, %636, %c0_i32_148 : i32
    scf.if %637 {
      %c1_149 = arith.constant 1 : index
      %c0_150 = arith.constant 0 : index
      %c0_151 = arith.constant 0 : index
      %638 = vector.load %arg8[%c1_149, %c0_150, %c0_151] : memref<2x8x128xf32, #tpu.memory_space<vmem>>, vector<1x8x128xf32>
      %639 = vector.shape_cast %638 : vector<1x8x128xf32> to vector<8x128xf32>
      %c0_152 = arith.constant 0 : index
      %c0_153 = arith.constant 0 : index
      %640 = vector.load %arg7[%c0_152, %c0_153] : memref<8x128xf32, #tpu.memory_space<vmem>>, vector<8x128xf32>
      tpu.vector_store %arg7[%c0_152, %c0_153], %639 {strides = array<i32>} : memref<8x128xf32, #tpu.memory_space<vmem>>, vector<8x128xf32>,
    } else {
    }
    return
  }
  func.func @transform_0(%arg0: i32, %arg1: i32) -> (i32, i32) {
    %c1_i32 = arith.constant 1 : i32
    %0 = arith.muli %arg0, %c1_i32 : i32
    %1 = arith.addi %0, %arg1 : i32
    %c0_i32 = arith.constant 0 : i32
    %c0_i32_0 = arith.constant 0 : i32
    return %1, %c0_i32 : i32, i32
  }
  func.func @transform_1(%arg0: i32, %arg1: i32) -> (i32, i32, i32) {
    %c0_i32 = arith.constant 0 : i32
    %c0_i32_0 = arith.constant 0 : i32
    %c0_i32_1 = arith.constant 0 : i32
    %c0_i32_2 = arith.constant 0 : i32
    return %c0_i32, %c0_i32_0, %c0_i32_1 : i32, i32, i32
  }
  func.func @transform_2(%arg0: i32, %arg1: i32) -> (i32, i32, i32) {
    %c0_i32 = arith.constant 0 : i32
    %c0_i32_0 = arith.constant 0 : i32
    %c0_i32_1 = arith.constant 0 : i32
    %c0_i32_2 = arith.constant 0 : i32
    return %c0_i32, %c0_i32_0, %c0_i32_1 : i32, i32, i32
  }
  func.func @transform_3(%arg0: i32, %arg1: i32) -> (i32, i32, i32) {
    %c0_i32 = arith.constant 0 : i32
    %c0_i32_0 = arith.constant 0 : i32
    %c0_i32_1 = arith.constant 0 : i32
    %c0_i32_2 = arith.constant 0 : i32
    return %c0_i32, %c0_i32_0, %c0_i32_1 : i32, i32, i32
  }
  func.func @transform_4(%arg0: i32, %arg1: i32) -> (i32, i32, i32) {
    %c0_i32 = arith.constant 0 : i32
    %c0_i32_0 = arith.constant 0 : i32
    %c0_i32_1 = arith.constant 0 : i32
    %c0_i32_2 = arith.constant 0 : i32
    return %c0_i32, %c0_i32_0, %c0_i32_1 : i32, i32, i32
  }
  func.func @transform_5(%arg0: i32, %arg1: i32) -> (i32, i32) {
    %c0_i32 = arith.constant 0 : i32
    %c0_i32_0 = arith.constant 0 : i32
    return %arg0, %c0_i32 : i32, i32
  }
}

</mosaic_0001>

<llo_original>
// kernel: tpu_custom_call.1
$region0: #{tpu_custom_call.1}
  #allocation0 [shape = 'u32[]', space=smem, size = 0x4, offset = 0x4, fixed_abs, tag = 'smem constant byte address 0x4 - core index']
  #allocation1 [shape = 'u32[144,128]{1,0:T(1,128)}', space=vmem, size = 0x12000, scoped, tag = 'internal scratch']
  #allocation2 [shape = 'f32[2,8,128]{2,1,0:T(8,128)}', space=vmem, size = 0x2000, scoped, tag = 'scratch operand']
  #allocation3 [shape = 'bf16[64,128]{1,0:T(8,128)(2,1)}', space=vmem, size = 0x4000, scoped, tag = 'scratch operand']
  #allocation4 [shape = 'bf16[64,384]{1,0:T(8,128)(2,1)}', space=vmem, size = 0xc000, scoped, tag = 'scratch operand']
  %s0 = inlined_call_operand.hbm [shape: bf16[64,384], index: 0, kind: input, shape index: {}]
  %s1 = inlined_call_operand.hbm [shape: bf16[1,128,384], index: 1, kind: input, shape index: {}]
  %s2 = inlined_call_operand.hbm [shape: f32[1,1,384], index: 2, kind: input, shape index: {}]
  %s3 = inlined_call_operand.hbm [shape: bf16[2,128,384], index: 3, kind: input, shape index: {}]
  %s4 = inlined_call_operand.vmem [shape: f32[2,1,384], index: 4, kind: input, shape index: {}]
  %s5 = inlined_call_operand.hbm [shape: f32[8,128], index: 5, kind: output, shape index: {}]
  %s6 = sld [smem:[#allocation0]]
  $region54: #{tpu_custom_call.1} parent=0
    _
  %s8 = ssub.s32 1, %s6
  %s9 = scalar_select 0, %s8, %s6
  $region1: #{tpu_custom_call.1} parent=0
    #allocation5 [shape = 'u8[49152]{0}', space=vmem, size = 0xc000, scoped, tag = 'input window, operand 0, single buffered']
    #allocation6 [shape = 's32[1]{0}', space=sflag, size = 0x4, scoped, tag = 'scoped memory for tpu_custom_call.1']
    #allocation7 [shape = 's32[1]{0}', space=sflag, size = 0x4, scoped, tag = 'scoped memory for tpu_custom_call.1']
    #allocation8 [shape = 'u8[98304]{0}', space=vmem, size = 0x18000, scoped, tag = 'input window, operand 1, single buffered']
    #allocation9 [shape = 's32[1]{0}', space=sflag, size = 0x4, scoped, tag = 'scoped memory for tpu_custom_call.1']
    #allocation10 [shape = 'u8[1536]{0}', space=vmem, size = 0x800, scoped, tag = 'input window, operand 2, single buffered']
    #allocation11 [shape = 'u8[196608]{0}', space=vmem, size = 0x30000, scoped, tag = 'input window, operand 3, single buffered']
    #allocation12 [shape = 's32[1]{0}', space=sflag, size = 0x4, scoped, tag = 'scoped memory for tpu_custom_call.1']
    #allocation13 [shape = 'u8[4096]{0}', space=vmem, size = 0x1000, scoped, tag = 'output window, operand 0, single buffered']
    %10 = vsyncpa [#allocation6], 0
    %11 = vsyncpa [#allocation9], 0
    %12 = vsyncpa [#allocation12], 0
    %13 = vsyncpa [#allocation7], 0
    // Predicated region
    $region2: #{tpu_custom_call.1} parent=1 // pred_check
      _
    $region3: #{tpu_custom_call.1} parent=1 // pred_check_branch
      %15 = sbr.rel (0) target = $region5
    $region4: #{tpu_custom_call.1} parent=1 // pred_region
      %s16 = sadd.s32 0, 0
      %s17 = smul.u32 8, %s16
      %s19 = ssub.s32 1536, 1536
      %20 = vsyncadd [#allocation6], %s19
      %s21 = smul.addr %s17, 3
      %s22 = smul.addr %s21, 64
      %s23 = scalar_lea.hbm %s0, %s22
      %s24 = sshll.u32 [#allocation5], 4
      %s25 = int_to_ptr.vmem [resolvable:$true] %s24
      %30 = dma.hbm_to_vmem [thread:$0]  %s23, 1536, %s25, [#allocation6], 192, 192, 12
    $region5: #{tpu_custom_call.1} parent=1 // pred_fallthru
      _
    // Predicated region
    $region6: #{tpu_custom_call.1} parent=1 // pred_check
      _
    $region7: #{tpu_custom_call.1} parent=1 // pred_check_branch
      %32 = sbr.rel (0) target = $region9
    $region8: #{tpu_custom_call.1} parent=1 // pred_region
      %s34 = ssub.s32 3072, 3072
      %35 = vsyncadd [#allocation9], %s34
      %s36 = sshll.u32 [#allocation8], 4
      %s37 = int_to_ptr.vmem [resolvable:$true] %s36
      %42 = dma.hbm_to_vmem [thread:$0]  %s1, 3072, %s37, [#allocation9], 192, 192, 12
    $region9: #{tpu_custom_call.1} parent=1 // pred_fallthru
      _
    // Predicated region
    $region10: #{tpu_custom_call.1} parent=1 // pred_check
      _
    $region11: #{tpu_custom_call.1} parent=1 // pred_check_branch
      %44 = sbr.rel (0) target = $region13
    $region12: #{tpu_custom_call.1} parent=1 // pred_region
      %s46 = ssub.s32 48, 48
      %47 = vsyncadd [#allocation9], %s46
      %s49 = sshll.u32 [#allocation10], 4
      %s50 = int_to_ptr.vmem [resolvable:$true] %s49
      %52 = dma.hbm_to_vmem [thread:$0]  %s2, 48, %s50, [#allocation9]
    $region13: #{tpu_custom_call.1} parent=1 // pred_fallthru
      _
    // Predicated region
    $region14: #{tpu_custom_call.1} parent=1 // pred_check
      _
    $region15: #{tpu_custom_call.1} parent=1 // pred_check_branch
      %54 = sbr.rel (0) target = $region17
    $region16: #{tpu_custom_call.1} parent=1 // pred_region
      %s56 = ssub.s32 6144, 6144
      %57 = vsyncadd [#allocation12], %s56
      %s58 = sshll.u32 [#allocation11], 4
      %s59 = int_to_ptr.vmem [resolvable:$true] %s58
      %64 = dma.hbm_to_vmem [thread:$0]  %s3, 6144, %s59, [#allocation12], 192, 192, 12
    $region17: #{tpu_custom_call.1} parent=1 // pred_fallthru
      _
    // Predicated region
    $region18: #{tpu_custom_call.1} parent=1 // pred_check
      _
    $region19: #{tpu_custom_call.1} parent=1 // pred_check_branch
      %66 = sbr.rel (0) target = $region21
    $region20: #{tpu_custom_call.1} parent=1 // pred_region
      _
    $region21: #{tpu_custom_call.1} parent=1 // pred_fallthru
      _
    // Predicated region
    $region22: #{tpu_custom_call.1} parent=1 // pred_check
      _
    $region23: #{tpu_custom_call.1} parent=1 // pred_check_branch
      %68 = sbr.rel (0) target = $region25
    $region24: #{tpu_custom_call.1} parent=1 // pred_region
      %69 = dma.done [#allocation6], 1536
    $region25: #{tpu_custom_call.1} parent=1 // pred_fallthru
      _
    // Predicated region
    $region26: #{tpu_custom_call.1} parent=1 // pred_check
      _
    $region27: #{tpu_custom_call.1} parent=1 // pred_check_branch
      %71 = sbr.rel (0) target = $region29
    $region28: #{tpu_custom_call.1} parent=1 // pred_region
      %72 = dma.done [#allocation9], 3072
    $region29: #{tpu_custom_call.1} parent=1 // pred_fallthru
      _
    // Predicated region
    $region30: #{tpu_custom_call.1} parent=1 // pred_check
      _
    $region31: #{tpu_custom_call.1} parent=1 // pred_check_branch
      %74 = sbr.rel (0) target = $region33
    $region32: #{tpu_custom_call.1} parent=1 // pred_region
      %75 = dma.done [#allocation9], 48
    $region33: #{tpu_custom_call.1} parent=1 // pred_fallthru
      _
    // Predicated region
    $region34: #{tpu_custom_call.1} parent=1 // pred_check
      _
    $region35: #{tpu_custom_call.1} parent=1 // pred_check_branch
      %77 = sbr.rel (0) target = $region37
    $region36: #{tpu_custom_call.1} parent=1 // pred_region
      %78 = dma.done [#allocation12], 6144
    $region37: #{tpu_custom_call.1} parent=1 // pred_fallthru
      _
    %s79 = sadd.s32 0, 0
    %s80 = smul.u32 8, %s79
    %p82 = scmp.eq.s32.totalorder 0, 0
    // Predicated region
    $region38: #{tpu_custom_call.1} parent=1 // pred_check
      %p83 = pneg %p82
    $region39: #{tpu_custom_call.1} parent=1 // pred_check_branch
      %85 = sbr.rel (%p83) target = $region41
    $region40: #{tpu_custom_call.1} parent=1 // pred_region
      %86 = vst [vmem:[#allocation2] sm:$0xff] 0.0
      %87 = vst [vmem:[#allocation2 + $0x8] sm:$0xff] 0.0
    $region41: #{tpu_custom_call.1} parent=1 // pred_fallthru
      _
    %v88 = vld [vmem:[#allocation11] sm:$0xff]
    %v89 = vld [vmem:[#allocation11 + $0x8] sm:$0xf]
    %v90 = vld [vmem:[#allocation11 + $0xc] sm:$0xff]
    %v91 = vld [vmem:[#allocation11 + $0x14] sm:$0xf]
    %v92 = vld [vmem:[#allocation11 + $0x18] sm:$0xff]
    %v93 = vld [vmem:[#allocation11 + $0x20] sm:$0xf]
    %v94 = vld [vmem:[#allocation11 + $0x24] sm:$0xff]
    %v95 = vld [vmem:[#allocation11 + $0x2c] sm:$0xf]
    %v96 = vld [vmem:[#allocation11 + $0x30] sm:$0xff]
    %v97 = vld [vmem:[#allocation11 + $0x38] sm:$0xf]
    %v98 = vld [vmem:[#allocation11 + $0x3c] sm:$0xff]
    %v99 = vld [vmem:[#allocation11 + $0x44] sm:$0xf]
    %v100 = vld [vmem:[#allocation11 + $0x48] sm:$0xff]
    %v101 = vld [vmem:[#allocation11 + $0x50] sm:$0xf]
    %v102 = vld [vmem:[#allocation11 + $0x54] sm:$0xff]
    %v103 = vld [vmem:[#allocation11 + $0x5c] sm:$0xf]
    %v104 = vld [vmem:[#allocation11 + $0x60] sm:$0xff]
    %v105 = vld [vmem:[#allocation11 + $0x68] sm:$0xf]
    %v106 = vld [vmem:[#allocation11 + $0x6c] sm:$0xff]
    %v107 = vld [vmem:[#allocation11 + $0x74] sm:$0xf]
    %v108 = vld [vmem:[#allocation11 + $0x78] sm:$0xff]
    %v109 = vld [vmem:[#allocation11 + $0x80] sm:$0xf]
    %v110 = vld [vmem:[#allocation11 + $0x84] sm:$0xff]
    %v111 = vld [vmem:[#allocation11 + $0x8c] sm:$0xf]
    %v112 = vld [vmem:[#allocation11 + $0x90] sm:$0xff]
    %v113 = vld [vmem:[#allocation11 + $0x98] sm:$0xf]
    %v114 = vld [vmem:[#allocation11 + $0x9c] sm:$0xff]
    %v115 = vld [vmem:[#allocation11 + $0xa4] sm:$0xf]
    %v116 = vld [vmem:[#allocation11 + $0xa8] sm:$0xff]
    %v117 = vld [vmem:[#allocation11 + $0xb0] sm:$0xf]
    %v118 = vld [vmem:[#allocation11 + $0xb4] sm:$0xff]
    %v119 = vld [vmem:[#allocation11 + $0xbc] sm:$0xf]
    %v120 = vld [vmem:[%s4] sm:$0x7]
    %v122 = vlaneseq
    %v123 = vshrl.u32 %v122, 7
    %v124 = vsub.s32 0, %v123
    %v125 = vrot.slane %v120, %v124
    %v126 = vlaneseq
    %v127 = vshrl.u32 %v126, 7
    %v128 = vsub.s32 1, %v127
    %v129 = vrot.slane %v120, %v128
    %v130 = vlaneseq
    %v131 = vshrl.u32 %v130, 7
    %v132 = vsub.s32 2, %v131
    %v133 = vrot.slane %v120, %v132
    %v137 = vld [vmem:[#allocation2] sm:$0xff]
    %s138 = smul.u32 0, 3
    %s139 = smul.addr %s138, 4
    %s140 = scalar_lea.vmem [#allocation5], %s139
    %v141 = vld [vmem:[%s140] sm:$0xff]
    %v142 = vld [vmem:[%s140 + $0x8] sm:$0xf]
    %v143 = vpack.c.bf16 %v137, %v137
    %v176 = vunpack.c.l.b16 %v88
    %v177 = vunpack.c.h.b16 %v88
    %v178 = vunpack.c.l.b16 %v89
    %v179 = vunpack.c.l.b16 %v90
    %v180 = vunpack.c.h.b16 %v90
    %v181 = vunpack.c.l.b16 %v91
    %v182 = vunpack.c.l.b16 %v92
    %v183 = vunpack.c.h.b16 %v92
    %v184 = vunpack.c.l.b16 %v93
    %v185 = vunpack.c.l.b16 %v94
    %v186 = vunpack.c.h.b16 %v94
    %v187 = vunpack.c.l.b16 %v95
    %v188 = vunpack.c.l.b16 %v96
    %v189 = vunpack.c.h.b16 %v96
    %v190 = vunpack.c.l.b16 %v97
    %v191 = vunpack.c.l.b16 %v98
    %v192 = vunpack.c.h.b16 %v98
    %v193 = vunpack.c.l.b16 %v99
    %v194 = vunpack.c.l.b16 %v100
    %v195 = vunpack.c.h.b16 %v100
    %v196 = vunpack.c.l.b16 %v101
    %v197 = vunpack.c.l.b16 %v102
    %v198 = vunpack.c.h.b16 %v102
    %v199 = vunpack.c.l.b16 %v103
    %v200 = vunpack.c.l.b16 %v104
    %v201 = vunpack.c.h.b16 %v104
    %v202 = vunpack.c.l.b16 %v105
    %v203 = vunpack.c.l.b16 %v106
    %v204 = vunpack.c.h.b16 %v106
    %v205 = vunpack.c.l.b16 %v107
    %v206 = vunpack.c.l.b16 %v108
    %v207 = vunpack.c.h.b16 %v108
    %v208 = vunpack.c.l.b16 %v109
    %v209 = vunpack.c.l.b16 %v110
    %v210 = vunpack.c.h.b16 %v110
    %v211 = vunpack.c.l.b16 %v111
    %v212 = vunpack.c.l.b16 %v112
    %v213 = vunpack.c.h.b16 %v112
    %v214 = vunpack.c.l.b16 %v113
    %v215 = vunpack.c.l.b16 %v114
    %v216 = vunpack.c.h.b16 %v114
    %v217 = vunpack.c.l.b16 %v115
    %v218 = vunpack.c.l.b16 %v116
    %v219 = vunpack.c.h.b16 %v116
    %v220 = vunpack.c.l.b16 %v117
    %v221 = vunpack.c.l.b16 %v118
    %v222 = vunpack.c.h.b16 %v118
    %v223 = vunpack.c.l.b16 %v119
    %v224 = vpack.c.b16 %v179, %v176
    %v225 = vpack.c.b16 %v180, %v177
    %v226 = vpack.c.b16 %v181, %v178
    %v227 = vpack.c.b16 %v185, %v182
    %v228 = vpack.c.b16 %v186, %v183
    %v229 = vpack.c.b16 %v187, %v184
    %v230 = vpack.c.b16 %v191, %v188
    %v231 = vpack.c.b16 %v192, %v189
    %v232 = vpack.c.b16 %v193, %v190
    %v233 = vpack.c.b16 %v197, %v194
    %v234 = vpack.c.b16 %v198, %v195
    %v235 = vpack.c.b16 %v199, %v196
    %v236 = vpack.c.b16 %v203, %v200
    %v237 = vpack.c.b16 %v204, %v201
    %v238 = vpack.c.b16 %v205, %v202
    %v239 = vpack.c.b16 %v209, %v206
    %v240 = vpack.c.b16 %v210, %v207
    %v241 = vpack.c.b16 %v211, %v208
    %v242 = vpack.c.b16 %v215, %v212
    %v243 = vpack.c.b16 %v216, %v213
    %v244 = vpack.c.b16 %v217, %v214
    %v245 = vpack.c.b16 %v221, %v218
    %v246 = vpack.c.b16 %v222, %v219
    %v247 = vpack.c.b16 %v223, %v220
    %272 = vmatprep.subr.bf16.mxu0 %v246
    %273 = vmatpush1.bf16.msra.mxu0 %v245
    %274 = vmatprep.subr.bf16.mxu0 %v243
    %275 = vmatpush1.bf16.msra.mxu0 %v242
    %276 = vmatprep.subr.bf16.mxu0 %v240
    %277 = vmatpush1.bf16.msra.mxu0 %v239
    %278 = vmatprep.subr.bf16.mxu0 %v237
    %279 = vmatpush1.bf16.msra.mxu0 %v236
    %280 = vmatprep.subr.bf16.mxu0 %v234
    %281 = vmatpush1.bf16.msra.mxu0 %v233
    %282 = vmatprep.subr.bf16.mxu0 %v231
    %283 = vmatpush1.bf16.msra.mxu0 %v230
    %284 = vmatprep.subr.bf16.mxu0 %v228
    %285 = vmatpush1.bf16.msra.mxu0 %v227
    %286 = vmatprep.subr.bf16.mxu0 %v225
    %287 = vmatpush1.bf16.msra.mxu0 %v224
    %288 = vmatprep.subr.bf16.mxu0 0
    %289 = vmatpush2.bf16.msra.mxu0 0
    %290 = vmatprep.subr.bf16.mxu0 0
    %291 = vmatpush2.bf16.msra.mxu0 0
    %292 = vmatprep.subr.bf16.mxu0 0
    %293 = vmatpush2.bf16.msra.mxu0 0
    %294 = vmatprep.subr.bf16.mxu0 0
    %295 = vmatpush2.bf16.msra.mxu0 0
    %296 = vmatprep.subr.bf16.mxu0 0
    %297 = vmatpush2.bf16.msra.mxu0 0
    %298 = vmatprep.subr.bf16.mxu0 0
    %299 = vmatpush2.bf16.msra.mxu0 0
    %300 = vmatprep.subr.bf16.mxu0 0
    %301 = vmatpush2.bf16.msra.mxu0 0
    %302 = vmatprep.subr.bf16.mxu0 0
    %303 = vmatpush2.bf16.msra.mxu0 0
    %304 = vmatprep.mubr.bf16.mxu0 0
    %305 = vmatmul.mubr.bf16.gmra.mxu0 %v143
    %v306 = vpop.f32.mrf.mxu0
    %v307 = vadd.f32 %v125, %v306
    %v308 = vpop.f32.mrf.mxu0
    %v309 = vadd.f32 %v129, %v308
    %v310 = vpop.f32.mrf.mxu0
    %v311 = vpop.f32.mrf.mxu0
    %312 = vdwg.mxu0
    %313 = vmatprep.subr.bf16.mxu0 0
    %314 = vmatpush1.bf16.msra.mxu0 %v247
    %315 = vmatprep.subr.bf16.mxu0 0
    %316 = vmatpush1.bf16.msra.mxu0 %v244
    %317 = vmatprep.subr.bf16.mxu0 0
    %318 = vmatpush1.bf16.msra.mxu0 %v241
    %319 = vmatprep.subr.bf16.mxu0 0
    %320 = vmatpush1.bf16.msra.mxu0 %v238
    %321 = vmatprep.subr.bf16.mxu0 0
    %322 = vmatpush1.bf16.msra.mxu0 %v235
    %323 = vmatprep.subr.bf16.mxu0 0
    %324 = vmatpush1.bf16.msra.mxu0 %v232
    %325 = vmatprep.subr.bf16.mxu0 0
    %326 = vmatpush1.bf16.msra.mxu0 %v229
    %327 = vmatprep.subr.bf16.mxu0 0
    %328 = vmatpush1.bf16.msra.mxu0 %v226
    %329 = vmatprep.subr.bf16.mxu0 0
    %330 = vmatpush2.bf16.msra.mxu0 0
    %331 = vmatprep.subr.bf16.mxu0 0
    %332 = vmatpush2.bf16.msra.mxu0 0
    %333 = vmatprep.subr.bf16.mxu0 0
    %334 = vmatpush2.bf16.msra.mxu0 0
    %335 = vmatprep.subr.bf16.mxu0 0
    %336 = vmatpush2.bf16.msra.mxu0 0
    %337 = vmatprep.subr.bf16.mxu0 0
    %338 = vmatpush2.bf16.msra.mxu0 0
    %339 = vmatprep.subr.bf16.mxu0 0
    %340 = vmatpush2.bf16.msra.mxu0 0
    %341 = vmatprep.subr.bf16.mxu0 0
    %342 = vmatpush2.bf16.msra.mxu0 0
    %343 = vmatprep.subr.bf16.mxu0 0
    %344 = vmatpush2.bf16.msra.mxu0 0
    %345 = vmatprep.mubr.bf16.mxu0 0
    %346 = vmatmul.mubr.bf16.gmra.mxu0 %v143
    %v347 = vpop.f32.mrf.mxu0
    %v348 = vadd.f32 %v133, %v347
    %v349 = vpop.f32.mrf.mxu0
    %v350 = vpop.f32.mrf.mxu0
    %v351 = vpop.f32.mrf.mxu0
    %352 = vdwg.mxu0
    %v353 = vunpack.c.l.bf16 %v141
    %v354 = vadd.f32 %v353, %v307
    %v355 = vxor.u32 %v354, 2147483648
    %v356 = vmul.f32 %v355, 1.442695
    %v357 = vpow.pop %v356
    %v358 = vadd.f32 %v357, 1.0
    %v359 = vrcp.pop %v358
    %v360 = vmul.f32 1.0, %v359
    %v362 = vrot.slane %v141, 4
    %v364 = vunpack.c.l.bf16 %v362
    %v365 = vadd.f32 %v364, %v309
    %v366 = vxor.u32 %v365, 2147483648
    %v367 = vmul.f32 %v366, 1.442695
    %v368 = vpow.pop %v367
    %v369 = vadd.f32 %v368, 1.0
    %v370 = vrcp.pop %v369
    %v371 = vmul.f32 1.0, %v370
    %v372 = vmul.f32 %v360, %v348
    %v373 = vunpack.c.l.bf16 %v142
    %v374 = vadd.f32 %v373, %v372
    %v375 = vtanh.pop %v374
    %v376 = vsub.f32 1.0, %v371
    %v377 = vmul.f32 %v376, %v375
    %v378 = vmul.f32 %v371, %v137
    %v379 = vadd.f32 %v377, %v378
    %v380 = vpack.c.bf16 %v379, %v379
    %381 = vst [vmem:[#allocation3] sm:$0xf] %v380
    %s382 = smul.u32 1, 3
    %s383 = smul.addr %s382, 4
    %s384 = scalar_lea.vmem [#allocation5], %s383
    %v385 = vld [vmem:[%s384] sm:$0xff]
    %v386 = vld [vmem:[%s384 + $0x8] sm:$0xf]
    %387 = vmatprep.subr.bf16.mxu0 %v246
    %388 = vmatpush1.bf16.msra.mxu0 %v245
    %389 = vmatprep.subr.bf16.mxu0 %v243
    %390 = vmatpush1.bf16.msra.mxu0 %v242
    %391 = vmatprep.subr.bf16.mxu0 %v240
    %392 = vmatpush1.bf16.msra.mxu0 %v239
    %393 = vmatprep.subr.bf16.mxu0 %v237
    %394 = vmatpush1.bf16.msra.mxu0 %v236
    %395 = vmatprep.subr.bf16.mxu0 %v234
    %396 = vmatpush1.bf16.msra.mxu0 %v233
    %397 = vmatprep.subr.bf16.mxu0 %v231
    %398 = vmatpush1.bf16.msra.mxu0 %v230
    %399 = vmatprep.subr.bf16.mxu0 %v228
    %400 = vmatpush1.bf16.msra.mxu0 %v227
    %401 = vmatprep.subr.bf16.mxu0 %v225
    %402 = vmatpush1.bf16.msra.mxu0 %v224
    %403 = vmatprep.subr.bf16.mxu0 0
    %404 = vmatpush2.bf16.msra.mxu0 0
    %405 = vmatprep.subr.bf16.mxu0 0
    %406 = vmatpush2.bf16.msra.mxu0 0
    %407 = vmatprep.subr.bf16.mxu0 0
    %408 = vmatpush2.bf16.msra.mxu0 0
    %409 = vmatprep.subr.bf16.mxu0 0
    %410 = vmatpush2.bf16.msra.mxu0 0
    %411 = vmatprep.subr.bf16.mxu0 0
    %412 = vmatpush2.bf16.msra.mxu0 0
    %413 = vmatprep.subr.bf16.mxu0 0
    %414 = vmatpush2.bf16.msra.mxu0 0
    %415 = vmatprep.subr.bf16.mxu0 0
    %416 = vmatpush2.bf16.msra.mxu0 0
    %417 = vmatprep.subr.bf16.mxu0 0
    %418 = vmatpush2.bf16.msra.mxu0 0
    %419 = vmatprep.mubr.bf16.mxu0 0
    %420 = vmatmul.mubr.bf16.gmra.mxu0 %v380
    %v421 = vpop.f32.mrf.mxu0
    %v422 = vadd.f32 %v125, %v421
    %v423 = vpop.f32.mrf.mxu0
    %v424 = vadd.f32 %v129, %v423
    %v425 = vpop.f32.mrf.mxu0
    %v426 = vpop.f32.mrf.mxu0
    %427 = vdwg.mxu0
    %428 = vmatprep.subr.bf16.mxu0 0
    %429 = vmatpush1.bf16.msra.mxu0 %v247
    %430 = vmatprep.subr.bf16.mxu0 0
    %431 = vmatpush1.bf16.msra.mxu0 %v244
    %432 = vmatprep.subr.bf16.mxu0 0
    %433 = vmatpush1.bf16.msra.mxu0 %v241
    %434 = vmatprep.subr.bf16.mxu0 0
    %435 = vmatpush1.bf16.msra.mxu0 %v238
    %436 = vmatprep.subr.bf16.mxu0 0
    %437 = vmatpush1.bf16.msra.mxu0 %v235
    %438 = vmatprep.subr.bf16.mxu0 0
    %439 = vmatpush1.bf16.msra.mxu0 %v232
    %440 = vmatprep.subr.bf16.mxu0 0
    %441 = vmatpush1.bf16.msra.mxu0 %v229
    %442 = vmatprep.subr.bf16.mxu0 0
    %443 = vmatpush1.bf16.msra.mxu0 %v226
    %444 = vmatprep.subr.bf16.mxu0 0
    %445 = vmatpush2.bf16.msra.mxu0 0
    %446 = vmatprep.subr.bf16.mxu0 0
    %447 = vmatpush2.bf16.msra.mxu0 0
    %448 = vmatprep.subr.bf16.mxu0 0
    %449 = vmatpush2.bf16.msra.mxu0 0
    %450 = vmatprep.subr.bf16.mxu0 0
    %451 = vmatpush2.bf16.msra.mxu0 0
    %452 = vmatprep.subr.bf16.mxu0 0
    %453 = vmatpush2.bf16.msra.mxu0 0
    %454 = vmatprep.subr.bf16.mxu0 0
    %455 = vmatpush2.bf16.msra.mxu0 0
    %456 = vmatprep.subr.bf16.mxu0 0
    %457 = vmatpush2.bf16.msra.mxu0 0
    %458 = vmatprep.subr.bf16.mxu0 0
    %459 = vmatpush2.bf16.msra.mxu0 0
    %460 = vmatprep.mubr.bf16.mxu0 0
    %461 = vmatmul.mubr.bf16.gmra.mxu0 %v380
    %v462 = vpop.f32.mrf.mxu0
    %v463 = vadd.f32 %v133, %v462
    %v464 = vpop.f32.mrf.mxu0
    %v465 = vpop.f32.mrf.mxu0
    %v466 = vpop.f32.mrf.mxu0
    %467 = vdwg.mxu0
    %v468 = vunpack.c.l.bf16 %v385
    %v469 = vadd.f32 %v468, %v422
    %v470 = vxor.u32 %v469, 2147483648
    %v471 = vmul.f32 %v470, 1.442695
    %v472 = vpow.pop %v471
    %v473 = vadd.f32 %v472, 1.0
    %v474 = vrcp.pop %v473
    %v475 = vmul.f32 1.0, %v474
    %v477 = vrot.slane %v385, 4
    %v479 = vunpack.c.l.bf16 %v477
    %v480 = vadd.f32 %v479, %v424
    %v481 = vxor.u32 %v480, 2147483648
    %v482 = vmul.f32 %v481, 1.442695
    %v483 = vpow.pop %v482
    %v484 = vadd.f32 %v483, 1.0
    %v485 = vrcp.pop %v484
    %v486 = vmul.f32 1.0, %v485
    %v487 = vmul.f32 %v475, %v463
    %v488 = vunpack.c.l.bf16 %v386
    %v489 = vadd.f32 %v488, %v487
    %v490 = vtanh.pop %v489
    %v491 = vsub.f32 1.0, %v486
    %v492 = vmul.f32 %v491, %v490
    %v493 = vmul.f32 %v486, %v379
    %v494 = vadd.f32 %v492, %v493
    %v495 = vpack.c.bf16 %v494, %v494
    %s496 = scalar_lea.vmem [#allocation3], 4
    %497 = vst [vmem:[%s496] sm:$0xf] %v495
    %s498 = smul.u32 2, 3
    %s499 = smul.addr %s498, 4
    %s500 = scalar_lea.vmem [#allocation5], %s499
    %v501 = vld [vmem:[%s500] sm:$0xff]
    %v502 = vld [vmem:[%s500 + $0x8] sm:$0xf]
    %503 = vmatprep.subr.bf16.mxu0 %v246
    %504 = vmatpush1.bf16.msra.mxu0 %v245
    %505 = vmatprep.subr.bf16.mxu0 %v243
    %506 = vmatpush1.bf16.msra.mxu0 %v242
    %507 = vmatprep.subr.bf16.mxu0 %v240
    %508 = vmatpush1.bf16.msra.mxu0 %v239
    %509 = vmatprep.subr.bf16.mxu0 %v237
    %510 = vmatpush1.bf16.msra.mxu0 %v236
    %511 = vmatprep.subr.bf16.mxu0 %v234
    %512 = vmatpush1.bf16.msra.mxu0 %v233
    %513 = vmatprep.subr.bf16.mxu0 %v231
    %514 = vmatpush1.bf16.msra.mxu0 %v230
    %515 = vmatprep.subr.bf16.mxu0 %v228
    %516 = vmatpush1.bf16.msra.mxu0 %v227
    %517 = vmatprep.subr.bf16.mxu0 %v225
    %518 = vmatpush1.bf16.msra.mxu0 %v224
    %519 = vmatprep.subr.bf16.mxu0 0
    %520 = vmatpush2.bf16.msra.mxu0 0
    %521 = vmatprep.subr.bf16.mxu0 0
    %522 = vmatpush2.bf16.msra.mxu0 0
    %523 = vmatprep.subr.bf16.mxu0 0
    %524 = vmatpush2.bf16.msra.mxu0 0
    %525 = vmatprep.subr.bf16.mxu0 0
    %526 = vmatpush2.bf16.msra.mxu0 0
    %527 = vmatprep.subr.bf16.mxu0 0
    %528 = vmatpush2.bf16.msra.mxu0 0
    %529 = vmatprep.subr.bf16.mxu0 0
    %530 = vmatpush2.bf16.msra.mxu0 0
    %531 = vmatprep.subr.bf16.mxu0 0
    %532 = vmatpush2.bf16.msra.mxu0 0
    %533 = vmatprep.subr.bf16.mxu0 0
    %534 = vmatpush2.bf16.msra.mxu0 0
    %535 = vmatprep.mubr.bf16.mxu0 0
    %536 = vmatmul.mubr.bf16.gmra.mxu0 %v495
    %v537 = vpop.f32.mrf.mxu0
    %v538 = vadd.f32 %v125, %v537
    %v539 = vpop.f32.mrf.mxu0
    %v540 = vadd.f32 %v129, %v539
    %v541 = vpop.f32.mrf.mxu0
    %v542 = vpop.f32.mrf.mxu0
    %543 = vdwg.mxu0
    %544 = vmatprep.subr.bf16.mxu0 0
    %545 = vmatpush1.bf16.msra.mxu0 %v247
    %546 = vmatprep.subr.bf16.mxu0 0
    %547 = vmatpush1.bf16.msra.mxu0 %v244
    %548 = vmatprep.subr.bf16.mxu0 0
    %549 = vmatpush1.bf16.msra.mxu0 %v241
    %550 = vmatprep.subr.bf16.mxu0 0
    %551 = vmatpush1.bf16.msra.mxu0 %v238
    %552 = vmatprep.subr.bf16.mxu0 0
    %553 = vmatpush1.bf16.msra.mxu0 %v235
    %554 = vmatprep.subr.bf16.mxu0 0
    %555 = vmatpush1.bf16.msra.mxu0 %v232
    %556 = vmatprep.subr.bf16.mxu0 0
    %557 = vmatpush1.bf16.msra.mxu0 %v229
    %558 = vmatprep.subr.bf16.mxu0 0
    %559 = vmatpush1.bf16.msra.mxu0 %v226
    %560 = vmatprep.subr.bf16.mxu0 0
    %561 = vmatpush2.bf16.msra.mxu0 0
    %562 = vmatprep.subr.bf16.mxu0 0
    %563 = vmatpush2.bf16.msra.mxu0 0
    %564 = vmatprep.subr.bf16.mxu0 0
    %565 = vmatpush2.bf16.msra.mxu0 0
    %566 = vmatprep.subr.bf16.mxu0 0
    %567 = vmatpush2.bf16.msra.mxu0 0
    %568 = vmatprep.subr.bf16.mxu0 0
    %569 = vmatpush2.bf16.msra.mxu0 0
    %570 = vmatprep.subr.bf16.mxu0 0
    %571 = vmatpush2.bf16.msra.mxu0 0
    %572 = vmatprep.subr.bf16.mxu0 0
    %573 = vmatpush2.bf16.msra.mxu0 0
    %574 = vmatprep.subr.bf16.mxu0 0
    %575 = vmatpush2.bf16.msra.mxu0 0
    %576 = vmatprep.mubr.bf16.mxu0 0
    %577 = vmatmul.mubr.bf16.gmra.mxu0 %v495
    %v578 = vpop.f32.mrf.mxu0
    %v579 = vadd.f32 %v133, %v578
    %v580 = vpop.f32.mrf.mxu0
    %v581 = vpop.f32.mrf.mxu0
    %v582 = vpop.f32.mrf.mxu0
    %583 = vdwg.mxu0
    %v584 = vunpack.c.l.bf16 %v501
    %v585 = vadd.f32 %v584, %v538
    %v586 = vxor.u32 %v585, 2147483648
    %v587 = vmul.f32 %v586, 1.442695
    %v588 = vpow.pop %v587
    %v589 = vadd.f32 %v588, 1.0
    %v590 = vrcp.pop %v589
    %v591 = vmul.f32 1.0, %v590
    %v593 = vrot.slane %v501, 4
    %v595 = vunpack.c.l.bf16 %v593
    %v596 = vadd.f32 %v595, %v540
    %v597 = vxor.u32 %v596, 2147483648
    %v598 = vmul.f32 %v597, 1.442695
    %v599 = vpow.pop %v598
    %v600 = vadd.f32 %v599, 1.0
    %v601 = vrcp.pop %v600
    %v602 = vmul.f32 1.0, %v601
    %v603 = vmul.f32 %v591, %v579
    %v604 = vunpack.c.l.bf16 %v502
    %v605 = vadd.f32 %v604, %v603
    %v606 = vtanh.pop %v605
    %v607 = vsub.f32 1.0, %v602
    %v608 = vmul.f32 %v607, %v606
    %v609 = vmul.f32 %v602, %v494
    %v610 = vadd.f32 %v608, %v609
    %v611 = vpack.c.bf16 %v610, %v610
    %s612 = scalar_lea.vmem [#allocation3], 8
    %613 = vst [vmem:[%s612] sm:$0xf] %v611
    %s614 = smul.u32 3, 3
    %s615 = smul.addr %s614, 4
    %s616 = scalar_lea.vmem [#allocation5], %s615
    %v617 = vld [vmem:[%s616] sm:$0xff]
    %v618 = vld [vmem:[%s616 + $0x8] sm:$0xf]
    %619 = vmatprep.subr.bf16.mxu0 %v246
    %620 = vmatpush1.bf16.msra.mxu0 %v245
    %621 = vmatprep.subr.bf16.mxu0 %v243
    %622 = vmatpush1.bf16.msra.mxu0 %v242
    %623 = vmatprep.subr.bf16.mxu0 %v240
    %624 = vmatpush1.bf16.msra.mxu0 %v239
    %625 = vmatprep.subr.bf16.mxu0 %v237
    %626 = vmatpush1.bf16.msra.mxu0 %v236
    %627 = vmatprep.subr.bf16.mxu0 %v234
    %628 = vmatpush1.bf16.msra.mxu0 %v233
    %629 = vmatprep.subr.bf16.mxu0 %v231
    %630 = vmatpush1.bf16.msra.mxu0 %v230
    %631 = vmatprep.subr.bf16.mxu0 %v228
    %632 = vmatpush1.bf16.msra.mxu0 %v227
    %633 = vmatprep.subr.bf16.mxu0 %v225
    %634 = vmatpush1.bf16.msra.mxu0 %v224
    %635 = vmatprep.subr.bf16.mxu0 0
    %636 = vmatpush2.bf16.msra.mxu0 0
    %637 = vmatprep.subr.bf16.mxu0 0
    %638 = vmatpush2.bf16.msra.mxu0 0
    %639 = vmatprep.subr.bf16.mxu0 0
    %640 = vmatpush2.bf16.msra.mxu0 0
    %641 = vmatprep.subr.bf16.mxu0 0
    %642 = vmatpush2.bf16.msra.mxu0 0
    %643 = vmatprep.subr.bf16.mxu0 0
    %644 = vmatpush2.bf16.msra.mxu0 0
    %645 = vmatprep.subr.bf16.mxu0 0
    %646 = vmatpush2.bf16.msra.mxu0 0
    %647 = vmatprep.subr.bf16.mxu0 0
    %648 = vmatpush2.bf16.msra.mxu0 0
    %649 = vmatprep.subr.bf16.mxu0 0
    %650 = vmatpush2.bf16.msra.mxu0 0
    %651 = vmatprep.mubr.bf16.mxu0 0
    %652 = vmatmul.mubr.bf16.gmra.mxu0 %v611
    %v653 = vpop.f32.mrf.mxu0
    %v654 = vadd.f32 %v125, %v653
    %v655 = vpop.f32.mrf.mxu0
    %v656 = vadd.f32 %v129, %v655
    %v657 = vpop.f32.mrf.mxu0
    %v658 = vpop.f32.mrf.mxu0
    %659 = vdwg.mxu0
    %660 = vmatprep.subr.bf16.mxu0 0
    %661 = vmatpush1.bf16.msra.mxu0 %v247
    %662 = vmatprep.subr.bf16.mxu0 0
    %663 = vmatpush1.bf16.msra.mxu0 %v244
    %664 = vmatprep.subr.bf16.mxu0 0
    %665 = vmatpush1.bf16.msra.mxu0 %v241
    %666 = vmatprep.subr.bf16.mxu0 0
    %667 = vmatpush1.bf16.msra.mxu0 %v238
    %668 = vmatprep.subr.bf16.mxu0 0
    %669 = vmatpush1.bf16.msra.mxu0 %v235
    %670 = vmatprep.subr.bf16.mxu0 0
    %671 = vmatpush1.bf16.msra.mxu0 %v232
    %672 = vmatprep.subr.bf16.mxu0 0
    %673 = vmatpush1.bf16.msra.mxu0 %v229
    %674 = vmatprep.subr.bf16.mxu0 0
    %675 = vmatpush1.bf16.msra.mxu0 %v226
    %676 = vmatprep.subr.bf16.mxu0 0
    %677 = vmatpush2.bf16.msra.mxu0 0
    %678 = vmatprep.subr.bf16.mxu0 0
    %679 = vmatpush2.bf16.msra.mxu0 0
    %680 = vmatprep.subr.bf16.mxu0 0
    %681 = vmatpush2.bf16.msra.mxu0 0
    %682 = vmatprep.subr.bf16.mxu0 0
    %683 = vmatpush2.bf16.msra.mxu0 0
    %684 = vmatprep.subr.bf16.mxu0 0
    %685 = vmatpush2.bf16.msra.mxu0 0
    %686 = vmatprep.subr.bf16.mxu0 0
    %687 = vmatpush2.bf16.msra.mxu0 0
    %688 = vmatprep.subr.bf16.mxu0 0
    %689 = vmatpush2.bf16.msra.mxu0 0
    %690 = vmatprep.subr.bf16.mxu0 0
    %691 = vmatpush2.bf16.msra.mxu0 0
    %692 = vmatprep.mubr.bf16.mxu0 0
    %693 = vmatmul.mubr.bf16.gmra.mxu0 %v611
    %v694 = vpop.f32.mrf.mxu0
    %v695 = vadd.f32 %v133, %v694
    %v696 = vpop.f32.mrf.mxu0
    %v697 = vpop.f32.mrf.mxu0
    %v698 = vpop.f32.mrf.mxu0
    %699 = vdwg.mxu0
    %v700 = vunpack.c.l.bf16 %v617
    %v701 = vadd.f32 %v700, %v654
    %v702 = vxor.u32 %v701, 2147483648
    %v703 = vmul.f32 %v702, 1.442695
    %v704 = vpow.pop %v703
    %v705 = vadd.f32 %v704, 1.0
    %v706 = vrcp.pop %v705
    %v707 = vmul.f32 1.0, %v706
    %v709 = vrot.slane %v617, 4
    %v711 = vunpack.c.l.bf16 %v709
    %v712 = vadd.f32 %v711, %v656
    %v713 = vxor.u32 %v712, 2147483648
    %v714 = vmul.f32 %v713, 1.442695
    %v715 = vpow.pop %v714
    %v716 = vadd.f32 %v715, 1.0
    %v717 = vrcp.pop %v716
    %v718 = vmul.f32 1.0, %v717
    %v719 = vmul.f32 %v707, %v695
    %v720 = vunpack.c.l.bf16 %v618
    %v721 = vadd.f32 %v720, %v719
    %v722 = vtanh.pop %v721
    %v723 = vsub.f32 1.0, %v718
    %v724 = vmul.f32 %v723, %v722
    %v725 = vmul.f32 %v718, %v610
    %v726 = vadd.f32 %v724, %v725
    %v727 = vpack.c.bf16 %v726, %v726
    %s728 = scalar_lea.vmem [#allocation3], 12
    %729 = vst [vmem:[%s728] sm:$0xf] %v727
    %s730 = smul.u32 4, 3
    %s731 = smul.addr %s730, 4
    %s732 = scalar_lea.vmem [#allocation5], %s731
    %v733 = vld [vmem:[%s732] sm:$0xff]
    %v734 = vld [vmem:[%s732 + $0x8] sm:$0xf]
    %735 = vmatprep.subr.bf16.mxu0 %v246
    %736 = vmatpush1.bf16.msra.mxu0 %v245
    %737 = vmatprep.subr.bf16.mxu0 %v243
    %738 = vmatpush1.bf16.msra.mxu0 %v242
    %739 = vmatprep.subr.bf16.mxu0 %v240
    %740 = vmatpush1.bf16.msra.mxu0 %v239
    %741 = vmatprep.subr.bf16.mxu0 %v237
    %742 = vmatpush1.bf16.msra.mxu0 %v236
    %743 = vmatprep.subr.bf16.mxu0 %v234
    %744 = vmatpush1.bf16.msra.mxu0 %v233
    %745 = vmatprep.subr.bf16.mxu0 %v231
    %746 = vmatpush1.bf16.msra.mxu0 %v230
    %747 = vmatprep.subr.bf16.mxu0 %v228
    %748 = vmatpush1.bf16.msra.mxu0 %v227
    %749 = vmatprep.subr.bf16.mxu0 %v225
    %750 = vmatpush1.bf16.msra.mxu0 %v224
    %751 = vmatprep.subr.bf16.mxu0 0
    %752 = vmatpush2.bf16.msra.mxu0 0
    %753 = vmatprep.subr.bf16.mxu0 0
    %754 = vmatpush2.bf16.msra.mxu0 0
    %755 = vmatprep.subr.bf16.mxu0 0
    %756 = vmatpush2.bf16.msra.mxu0 0
    %757 = vmatprep.subr.bf16.mxu0 0
    %758 = vmatpush2.bf16.msra.mxu0 0
    %759 = vmatprep.subr.bf16.mxu0 0
    %760 = vmatpush2.bf16.msra.mxu0 0
    %761 = vmatprep.subr.bf16.mxu0 0
    %762 = vmatpush2.bf16.msra.mxu0 0
    %763 = vmatprep.subr.bf16.mxu0 0
    %764 = vmatpush2.bf16.msra.mxu0 0
    %765 = vmatprep.subr.bf16.mxu0 0
    %766 = vmatpush2.bf16.msra.mxu0 0
    %767 = vmatprep.mubr.bf16.mxu0 0
    %768 = vmatmul.mubr.bf16.gmra.mxu0 %v727
    %v769 = vpop.f32.mrf.mxu0
    %v770 = vadd.f32 %v125, %v769
    %v771 = vpop.f32.mrf.mxu0
    %v772 = vadd.f32 %v129, %v771
    %v773 = vpop.f32.mrf.mxu0
    %v774 = vpop.f32.mrf.mxu0
    %775 = vdwg.mxu0
    %776 = vmatprep.subr.bf16.mxu0 0
    %777 = vmatpush1.bf16.msra.mxu0 %v247
    %778 = vmatprep.subr.bf16.mxu0 0
    %779 = vmatpush1.bf16.msra.mxu0 %v244
    %780 = vmatprep.subr.bf16.mxu0 0
    %781 = vmatpush1.bf16.msra.mxu0 %v241
    %782 = vmatprep.subr.bf16.mxu0 0
    %783 = vmatpush1.bf16.msra.mxu0 %v238
    %784 = vmatprep.subr.bf16.mxu0 0
    %785 = vmatpush1.bf16.msra.mxu0 %v235
    %786 = vmatprep.subr.bf16.mxu0 0
    %787 = vmatpush1.bf16.msra.mxu0 %v232
    %788 = vmatprep.subr.bf16.mxu0 0
    %789 = vmatpush1.bf16.msra.mxu0 %v229
    %790 = vmatprep.subr.bf16.mxu0 0
    %791 = vmatpush1.bf16.msra.mxu0 %v226
    %792 = vmatprep.subr.bf16.mxu0 0
    %793 = vmatpush2.bf16.msra.mxu0 0
    %794 = vmatprep.subr.bf16.mxu0 0
    %795 = vmatpush2.bf16.msra.mxu0 0
    %796 = vmatprep.subr.bf16.mxu0 0
    %797 = vmatpush2.bf16.msra.mxu0 0
    %798 = vmatprep.subr.bf16.mxu0 0
    %799 = vmatpush2.bf16.msra.mxu0 0
    %800 = vmatprep.subr.bf16.mxu0 0
    %801 = vmatpush2.bf16.msra.mxu0 0
    %802 = vmatprep.subr.bf16.mxu0 0
    %803 = vmatpush2.bf16.msra.mxu0 0
    %804 = vmatprep.subr.bf16.mxu0 0
    %805 = vmatpush2.bf16.msra.mxu0 0
    %806 = vmatprep.subr.bf16.mxu0 0
    %807 = vmatpush2.bf16.msra.mxu0 0
    %808 = vmatprep.mubr.bf16.mxu0 0
    %809 = vmatmul.mubr.bf16.gmra.mxu0 %v727
    %v810 = vpop.f32.mrf.mxu0
    %v811 = vadd.f32 %v133, %v810
    %v812 = vpop.f32.mrf.mxu0
    %v813 = vpop.f32.mrf.mxu0
    %v814 = vpop.f32.mrf.mxu0
    %815 = vdwg.mxu0
    %v816 = vunpack.c.l.bf16 %v733
    %v817 = vadd.f32 %v816, %v770
    %v818 = vxor.u32 %v817, 2147483648
    %v819 = vmul.f32 %v818, 1.442695
    %v820 = vpow.pop %v819
    %v821 = vadd.f32 %v820, 1.0
    %v822 = vrcp.pop %v821
    %v823 = vmul.f32 1.0, %v822
    %v825 = vrot.slane %v733, 4
    %v827 = vunpack.c.l.bf16 %v825
    %v828 = vadd.f32 %v827, %v772
    %v829 = vxor.u32 %v828, 2147483648
    %v830 = vmul.f32 %v829, 1.442695
    %v831 = vpow.pop %v830
    %v832 = vadd.f32 %v831, 1.0
    %v833 = vrcp.pop %v832
    %v834 = vmul.f32 1.0, %v833
    %v835 = vmul.f32 %v823, %v811
    %v836 = vunpack.c.l.bf16 %v734
    %v837 = vadd.f32 %v836, %v835
    %v838 = vtanh.pop %v837
    %v839 = vsub.f32 1.0, %v834
    %v840 = vmul.f32 %v839, %v838
    %v841 = vmul.f32 %v834, %v726
    %v842 = vadd.f32 %v840, %v841
    %v843 = vpack.c.bf16 %v842, %v842
    %s844 = scalar_lea.vmem [#allocation3], 16
    %845 = vst [vmem:[%s844] sm:$0xf] %v843
    %s846 = smul.u32 5, 3
    %s847 = smul.addr %s846, 4
    %s848 = scalar_lea.vmem [#allocation5], %s847
    %v849 = vld [vmem:[%s848] sm:$0xff]
    %v850 = vld [vmem:[%s848 + $0x8] sm:$0xf]
    %851 = vmatprep.subr.bf16.mxu0 %v246
    %852 = vmatpush1.bf16.msra.mxu0 %v245
    %853 = vmatprep.subr.bf16.mxu0 %v243
    %854 = vmatpush1.bf16.msra.mxu0 %v242
    %855 = vmatprep.subr.bf16.mxu0 %v240
    %856 = vmatpush1.bf16.msra.mxu0 %v239
    %857 = vmatprep.subr.bf16.mxu0 %v237
    %858 = vmatpush1.bf16.msra.mxu0 %v236
    %859 = vmatprep.subr.bf16.mxu0 %v234
    %860 = vmatpush1.bf16.msra.mxu0 %v233
    %861 = vmatprep.subr.bf16.mxu0 %v231
    %862 = vmatpush1.bf16.msra.mxu0 %v230
    %863 = vmatprep.subr.bf16.mxu0 %v228
    %864 = vmatpush1.bf16.msra.mxu0 %v227
    %865 = vmatprep.subr.bf16.mxu0 %v225
    %866 = vmatpush1.bf16.msra.mxu0 %v224
    %867 = vmatprep.subr.bf16.mxu0 0
    %868 = vmatpush2.bf16.msra.mxu0 0
    %869 = vmatprep.subr.bf16.mxu0 0
    %870 = vmatpush2.bf16.msra.mxu0 0
    %871 = vmatprep.subr.bf16.mxu0 0
    %872 = vmatpush2.bf16.msra.mxu0 0
    %873 = vmatprep.subr.bf16.mxu0 0
    %874 = vmatpush2.bf16.msra.mxu0 0
    %875 = vmatprep.subr.bf16.mxu0 0
    %876 = vmatpush2.bf16.msra.mxu0 0
    %877 = vmatprep.subr.bf16.mxu0 0
    %878 = vmatpush2.bf16.msra.mxu0 0
    %879 = vmatprep.subr.bf16.mxu0 0
    %880 = vmatpush2.bf16.msra.mxu0 0
    %881 = vmatprep.subr.bf16.mxu0 0
    %882 = vmatpush2.bf16.msra.mxu0 0
    %883 = vmatprep.mubr.bf16.mxu0 0
    %884 = vmatmul.mubr.bf16.gmra.mxu0 %v843
    %v885 = vpop.f32.mrf.mxu0
    %v886 = vadd.f32 %v125, %v885
    %v887 = vpop.f32.mrf.mxu0
    %v888 = vadd.f32 %v129, %v887
    %v889 = vpop.f32.mrf.mxu0
    %v890 = vpop.f32.mrf.mxu0
    %891 = vdwg.mxu0
    %892 = vmatprep.subr.bf16.mxu0 0
    %893 = vmatpush1.bf16.msra.mxu0 %v247
    %894 = vmatprep.subr.bf16.mxu0 0
    %895 = vmatpush1.bf16.msra.mxu0 %v244
    %896 = vmatprep.subr.bf16.mxu0 0
    %897 = vmatpush1.bf16.msra.mxu0 %v241
    %898 = vmatprep.subr.bf16.mxu0 0
    %899 = vmatpush1.bf16.msra.mxu0 %v238
    %900 = vmatprep.subr.bf16.mxu0 0
    %901 = vmatpush1.bf16.msra.mxu0 %v235
    %902 = vmatprep.subr.bf16.mxu0 0
    %903 = vmatpush1.bf16.msra.mxu0 %v232
    %904 = vmatprep.subr.bf16.mxu0 0
    %905 = vmatpush1.bf16.msra.mxu0 %v229
    %906 = vmatprep.subr.bf16.mxu0 0
    %907 = vmatpush1.bf16.msra.mxu0 %v226
    %908 = vmatprep.subr.bf16.mxu0 0
    %909 = vmatpush2.bf16.msra.mxu0 0
    %910 = vmatprep.subr.bf16.mxu0 0
    %911 = vmatpush2.bf16.msra.mxu0 0
    %912 = vmatprep.subr.bf16.mxu0 0
    %913 = vmatpush2.bf16.msra.mxu0 0
    %914 = vmatprep.subr.bf16.mxu0 0
    %915 = vmatpush2.bf16.msra.mxu0 0
    %916 = vmatprep.subr.bf16.mxu0 0
    %917 = vmatpush2.bf16.msra.mxu0 0
    %918 = vmatprep.subr.bf16.mxu0 0
    %919 = vmatpush2.bf16.msra.mxu0 0
    %920 = vmatprep.subr.bf16.mxu0 0
    %921 = vmatpush2.bf16.msra.mxu0 0
    %922 = vmatprep.subr.bf16.mxu0 0
    %923 = vmatpush2.bf16.msra.mxu0 0
    %924 = vmatprep.mubr.bf16.mxu0 0
    %925 = vmatmul.mubr.bf16.gmra.mxu0 %v843
    %v926 = vpop.f32.mrf.mxu0
    %v927 = vadd.f32 %v133, %v926
    %v928 = vpop.f32.mrf.mxu0
    %v929 = vpop.f32.mrf.mxu0
    %v930 = vpop.f32.mrf.mxu0
    %931 = vdwg.mxu0
    %v932 = vunpack.c.l.bf16 %v849
    %v933 = vadd.f32 %v932, %v886
    %v934 = vxor.u32 %v933, 2147483648
    %v935 = vmul.f32 %v934, 1.442695
    %v936 = vpow.pop %v935
    %v937 = vadd.f32 %v936, 1.0
    %v938 = vrcp.pop %v937
    %v939 = vmul.f32 1.0, %v938
    %v941 = vrot.slane %v849, 4
    %v943 = vunpack.c.l.bf16 %v941
    %v944 = vadd.f32 %v943, %v888
    %v945 = vxor.u32 %v944, 2147483648
    %v946 = vmul.f32 %v945, 1.442695
    %v947 = vpow.pop %v946
    %v948 = vadd.f32 %v947, 1.0
    %v949 = vrcp.pop %v948
    %v950 = vmul.f32 1.0, %v949
    %v951 = vmul.f32 %v939, %v927
    %v952 = vunpack.c.l.bf16 %v850
    %v953 = vadd.f32 %v952, %v951
    %v954 = vtanh.pop %v953
    %v955 = vsub.f32 1.0, %v950
    %v956 = vmul.f32 %v955, %v954
    %v957 = vmul.f32 %v950, %v842
    %v958 = vadd.f32 %v956, %v957
    %v959 = vpack.c.bf16 %v958, %v958
    %s960 = scalar_lea.vmem [#allocation3], 20
    %961 = vst [vmem:[%s960] sm:$0xf] %v959
    %s962 = smul.u32 6, 3
    %s963 = smul.addr %s962, 4
    %s964 = scalar_lea.vmem [#allocation5], %s963
    %v965 = vld [vmem:[%s964] sm:$0xff]
    %v966 = vld [vmem:[%s964 + $0x8] sm:$0xf]
    %967 = vmatprep.subr.bf16.mxu0 %v246
    %968 = vmatpush1.bf16.msra.mxu0 %v245
    %969 = vmatprep.subr.bf16.mxu0 %v243
    %970 = vmatpush1.bf16.msra.mxu0 %v242
    %971 = vmatprep.subr.bf16.mxu0 %v240
    %972 = vmatpush1.bf16.msra.mxu0 %v239
    %973 = vmatprep.subr.bf16.mxu0 %v237
    %974 = vmatpush1.bf16.msra.mxu0 %v236
    %975 = vmatprep.subr.bf16.mxu0 %v234
    %976 = vmatpush1.bf16.msra.mxu0 %v233
    %977 = vmatprep.subr.bf16.mxu0 %v231
    %978 = vmatpush1.bf16.msra.mxu0 %v230
    %979 = vmatprep.subr.bf16.mxu0 %v228
    %980 = vmatpush1.bf16.msra.mxu0 %v227
    %981 = vmatprep.subr.bf16.mxu0 %v225
    %982 = vmatpush1.bf16.msra.mxu0 %v224
    %983 = vmatprep.subr.bf16.mxu0 0
    %984 = vmatpush2.bf16.msra.mxu0 0
    %985 = vmatprep.subr.bf16.mxu0 0
    %986 = vmatpush2.bf16.msra.mxu0 0
    %987 = vmatprep.subr.bf16.mxu0 0
    %988 = vmatpush2.bf16.msra.mxu0 0
    %989 = vmatprep.subr.bf16.mxu0 0
    %990 = vmatpush2.bf16.msra.mxu0 0
    %991 = vmatprep.subr.bf16.mxu0 0
    %992 = vmatpush2.bf16.msra.mxu0 0
    %993 = vmatprep.subr.bf16.mxu0 0
    %994 = vmatpush2.bf16.msra.mxu0 0
    %995 = vmatprep.subr.bf16.mxu0 0
    %996 = vmatpush2.bf16.msra.mxu0 0
    %997 = vmatprep.subr.bf16.mxu0 0
    %998 = vmatpush2.bf16.msra.mxu0 0
    %999 = vmatprep.mubr.bf16.mxu0 0
    %1000 = vmatmul.mubr.bf16.gmra.mxu0 %v959
    %v1001 = vpop.f32.mrf.mxu0
    %v1002 = vadd.f32 %v125, %v1001
    %v1003 = vpop.f32.mrf.mxu0
    %v1004 = vadd.f32 %v129, %v1003
    %v1005 = vpop.f32.mrf.mxu0
    %v1006 = vpop.f32.mrf.mxu0
    %1007 = vdwg.mxu0
    %1008 = vmatprep.subr.bf16.mxu0 0
    %1009 = vmatpush1.bf16.msra.mxu0 %v247
    %1010 = vmatprep.subr.bf16.mxu0 0
    %1011 = vmatpush1.bf16.msra.mxu0 %v244
    %1012 = vmatprep.subr.bf16.mxu0 0
    %1013 = vmatpush1.bf16.msra.mxu0 %v241
    %1014 = vmatprep.subr.bf16.mxu0 0
    %1015 = vmatpush1.bf16.msra.mxu0 %v238
    %1016 = vmatprep.subr.bf16.mxu0 0
    %1017 = vmatpush1.bf16.msra.mxu0 %v235
    %1018 = vmatprep.subr.bf16.mxu0 0
    %1019 = vmatpush1.bf16.msra.mxu0 %v232
    %1020 = vmatprep.subr.bf16.mxu0 0
    %1021 = vmatpush1.bf16.msra.mxu0 %v229
    %1022 = vmatprep.subr.bf16.mxu0 0
    %1023 = vmatpush1.bf16.msra.mxu0 %v226
    %1024 = vmatprep.subr.bf16.mxu0 0
    %1025 = vmatpush2.bf16.msra.mxu0 0
    %1026 = vmatprep.subr.bf16.mxu0 0
    %1027 = vmatpush2.bf16.msra.mxu0 0
    %1028 = vmatprep.subr.bf16.mxu0 0
    %1029 = vmatpush2.bf16.msra.mxu0 0
    %1030 = vmatprep.subr.bf16.mxu0 0
    %1031 = vmatpush2.bf16.msra.mxu0 0
    %1032 = vmatprep.subr.bf16.mxu0 0
    %1033 = vmatpush2.bf16.msra.mxu0 0
    %1034 = vmatprep.subr.bf16.mxu0 0
    %1035 = vmatpush2.bf16.msra.mxu0 0
    %1036 = vmatprep.subr.bf16.mxu0 0
    %1037 = vmatpush2.bf16.msra.mxu0 0
    %1038 = vmatprep.subr.bf16.mxu0 0
    %1039 = vmatpush2.bf16.msra.mxu0 0
    %1040 = vmatprep.mubr.bf16.mxu0 0
    %1041 = vmatmul.mubr.bf16.gmra.mxu0 %v959
    %v1042 = vpop.f32.mrf.mxu0
    %v1043 = vadd.f32 %v133, %v1042
    %v1044 = vpop.f32.mrf.mxu0
    %v1045 = vpop.f32.mrf.mxu0
    %v1046 = vpop.f32.mrf.mxu0
    %1047 = vdwg.mxu0
    %v1048 = vunpack.c.l.bf16 %v965
    %v1049 = vadd.f32 %v1048, %v1002
    %v1050 = vxor.u32 %v1049, 2147483648
    %v1051 = vmul.f32 %v1050, 1.442695
    %v1052 = vpow.pop %v1051
    %v1053 = vadd.f32 %v1052, 1.0
    %v1054 = vrcp.pop %v1053
    %v1055 = vmul.f32 1.0, %v1054
    %v1057 = vrot.slane %v965, 4
    %v1059 = vunpack.c.l.bf16 %v1057
    %v1060 = vadd.f32 %v1059, %v1004
    %v1061 = vxor.u32 %v1060, 2147483648
    %v1062 = vmul.f32 %v1061, 1.442695
    %v1063 = vpow.pop %v1062
    %v1064 = vadd.f32 %v1063, 1.0
    %v1065 = vrcp.pop %v1064
    %v1066 = vmul.f32 1.0, %v1065
    %v1067 = vmul.f32 %v1055, %v1043
    %v1068 = vunpack.c.l.bf16 %v966
    %v1069 = vadd.f32 %v1068, %v1067
    %v1070 = vtanh.pop %v1069
    %v1071 = vsub.f32 1.0, %v1066
    %v1072 = vmul.f32 %v1071, %v1070
    %v1073 = vmul.f32 %v1066, %v958
    %v1074 = vadd.f32 %v1072, %v1073
    %v1075 = vpack.c.bf16 %v1074, %v1074
    %s1076 = scalar_lea.vmem [#allocation3], 24
    %1077 = vst [vmem:[%s1076] sm:$0xf] %v1075
    %s1078 = smul.u32 7, 3
    %s1079 = smul.addr %s1078, 4
    %s1080 = scalar_lea.vmem [#allocation5], %s1079
    %v1081 = vld [vmem:[%s1080] sm:$0xff]
    %v1082 = vld [vmem:[%s1080 + $0x8] sm:$0xf]
    %1083 = vmatprep.subr.bf16.mxu0 %v246
    %1084 = vmatpush1.bf16.msra.mxu0 %v245
    %1085 = vmatprep.subr.bf16.mxu0 %v243
    %1086 = vmatpush1.bf16.msra.mxu0 %v242
    %1087 = vmatprep.subr.bf16.mxu0 %v240
    %1088 = vmatpush1.bf16.msra.mxu0 %v239
    %1089 = vmatprep.subr.bf16.mxu0 %v237
    %1090 = vmatpush1.bf16.msra.mxu0 %v236
    %1091 = vmatprep.subr.bf16.mxu0 %v234
    %1092 = vmatpush1.bf16.msra.mxu0 %v233
    %1093 = vmatprep.subr.bf16.mxu0 %v231
    %1094 = vmatpush1.bf16.msra.mxu0 %v230
    %1095 = vmatprep.subr.bf16.mxu0 %v228
    %1096 = vmatpush1.bf16.msra.mxu0 %v227
    %1097 = vmatprep.subr.bf16.mxu0 %v225
    %1098 = vmatpush1.bf16.msra.mxu0 %v224
    %1099 = vmatprep.subr.bf16.mxu0 0
    %1100 = vmatpush2.bf16.msra.mxu0 0
    %1101 = vmatprep.subr.bf16.mxu0 0
    %1102 = vmatpush2.bf16.msra.mxu0 0
    %1103 = vmatprep.subr.bf16.mxu0 0
    %1104 = vmatpush2.bf16.msra.mxu0 0
    %1105 = vmatprep.subr.bf16.mxu0 0
    %1106 = vmatpush2.bf16.msra.mxu0 0
    %1107 = vmatprep.subr.bf16.mxu0 0
    %1108 = vmatpush2.bf16.msra.mxu0 0
    %1109 = vmatprep.subr.bf16.mxu0 0
    %1110 = vmatpush2.bf16.msra.mxu0 0
    %1111 = vmatprep.subr.bf16.mxu0 0
    %1112 = vmatpush2.bf16.msra.mxu0 0
    %1113 = vmatprep.subr.bf16.mxu0 0
    %1114 = vmatpush2.bf16.msra.mxu0 0
    %1115 = vmatprep.mubr.bf16.mxu0 0
    %1116 = vmatmul.mubr.bf16.gmra.mxu0 %v1075
    %v1117 = vpop.f32.mrf.mxu0
    %v1118 = vadd.f32 %v125, %v1117
    %v1119 = vpop.f32.mrf.mxu0
    %v1120 = vadd.f32 %v129, %v1119
    %v1121 = vpop.f32.mrf.mxu0
    %v1122 = vpop.f32.mrf.mxu0
    %1123 = vdwg.mxu0
    %1124 = vmatprep.subr.bf16.mxu0 0
    %1125 = vmatpush1.bf16.msra.mxu0 %v247
    %1126 = vmatprep.subr.bf16.mxu0 0
    %1127 = vmatpush1.bf16.msra.mxu0 %v244
    %1128 = vmatprep.subr.bf16.mxu0 0
    %1129 = vmatpush1.bf16.msra.mxu0 %v241
    %1130 = vmatprep.subr.bf16.mxu0 0
    %1131 = vmatpush1.bf16.msra.mxu0 %v238
    %1132 = vmatprep.subr.bf16.mxu0 0
    %1133 = vmatpush1.bf16.msra.mxu0 %v235
    %1134 = vmatprep.subr.bf16.mxu0 0
    %1135 = vmatpush1.bf16.msra.mxu0 %v232
    %1136 = vmatprep.subr.bf16.mxu0 0
    %1137 = vmatpush1.bf16.msra.mxu0 %v229
    %1138 = vmatprep.subr.bf16.mxu0 0
    %1139 = vmatpush1.bf16.msra.mxu0 %v226
    %1140 = vmatprep.subr.bf16.mxu0 0
    %1141 = vmatpush2.bf16.msra.mxu0 0
    %1142 = vmatprep.subr.bf16.mxu0 0
    %1143 = vmatpush2.bf16.msra.mxu0 0
    %1144 = vmatprep.subr.bf16.mxu0 0
    %1145 = vmatpush2.bf16.msra.mxu0 0
    %1146 = vmatprep.subr.bf16.mxu0 0
    %1147 = vmatpush2.bf16.msra.mxu0 0
    %1148 = vmatprep.subr.bf16.mxu0 0
    %1149 = vmatpush2.bf16.msra.mxu0 0
    %1150 = vmatprep.subr.bf16.mxu0 0
    %1151 = vmatpush2.bf16.msra.mxu0 0
    %1152 = vmatprep.subr.bf16.mxu0 0
    %1153 = vmatpush2.bf16.msra.mxu0 0
    %1154 = vmatprep.subr.bf16.mxu0 0
    %1155 = vmatpush2.bf16.msra.mxu0 0
    %1156 = vmatprep.mubr.bf16.mxu0 0
    %1157 = vmatmul.mubr.bf16.gmra.mxu0 %v1075
    %v1158 = vpop.f32.mrf.mxu0
    %v1159 = vadd.f32 %v133, %v1158
    %v1160 = vpop.f32.mrf.mxu0
    %v1161 = vpop.f32.mrf.mxu0
    %v1162 = vpop.f32.mrf.mxu0
    %1163 = vdwg.mxu0
    %v1164 = vunpack.c.l.bf16 %v1081
    %v1165 = vadd.f32 %v1164, %v1118
    %v1166 = vxor.u32 %v1165, 2147483648
    %v1167 = vmul.f32 %v1166, 1.442695
    %v1168 = vpow.pop %v1167
    %v1169 = vadd.f32 %v1168, 1.0
    %v1170 = vrcp.pop %v1169
    %v1171 = vmul.f32 1.0, %v1170
    %v1173 = vrot.slane %v1081, 4
    %v1175 = vunpack.c.l.bf16 %v1173
    %v1176 = vadd.f32 %v1175, %v1120
    %v1177 = vxor.u32 %v1176, 2147483648
    %v1178 = vmul.f32 %v1177, 1.442695
    %v1179 = vpow.pop %v1178
    %v1180 = vadd.f32 %v1179, 1.0
    %v1181 = vrcp.pop %v1180
    %v1182 = vmul.f32 1.0, %v1181
    %v1183 = vmul.f32 %v1171, %v1159
    %v1184 = vunpack.c.l.bf16 %v1082
    %v1185 = vadd.f32 %v1184, %v1183
    %v1186 = vtanh.pop %v1185
    %v1187 = vsub.f32 1.0, %v1182
    %v1188 = vmul.f32 %v1187, %v1186
    %v1189 = vmul.f32 %v1182, %v1074
    %v1190 = vadd.f32 %v1188, %v1189
    %v1191 = vpack.c.bf16 %v1190, %v1190
    %s1192 = scalar_lea.vmem [#allocation3], 28
    %1193 = vst [vmem:[%s1192] sm:$0xf] %v1191
    %1194 = vst [vmem:[#allocation2] sm:$0xff] %v1190
    %v1195 = vld [vmem:[#allocation3] sm:$0xf]
    %v1196 = vld [vmem:[#allocation3 + $0x4] sm:$0xf]
    %v1197 = vld [vmem:[#allocation3 + $0x8] sm:$0xf]
    %v1198 = vld [vmem:[#allocation3 + $0xc] sm:$0xf]
    %v1199 = vld [vmem:[#allocation3 + $0x10] sm:$0xf]
    %v1200 = vld [vmem:[#allocation3 + $0x14] sm:$0xf]
    %v1201 = vld [vmem:[#allocation3 + $0x18] sm:$0xf]
    %v1202 = vld [vmem:[#allocation3 + $0x1c] sm:$0xf]
    %v1203 = vld [vmem:[#allocation8] sm:$0xff]
    %v1204 = vld [vmem:[#allocation8 + $0x8] sm:$0xf]
    %v1205 = vld [vmem:[#allocation8 + $0xc] sm:$0xff]
    %v1206 = vld [vmem:[#allocation8 + $0x14] sm:$0xf]
    %v1207 = vld [vmem:[#allocation8 + $0x18] sm:$0xff]
    %v1208 = vld [vmem:[#allocation8 + $0x20] sm:$0xf]
    %v1209 = vld [vmem:[#allocation8 + $0x24] sm:$0xff]
    %v1210 = vld [vmem:[#allocation8 + $0x2c] sm:$0xf]
    %v1211 = vld [vmem:[#allocation8 + $0x30] sm:$0xff]
    %v1212 = vld [vmem:[#allocation8 + $0x38] sm:$0xf]
    %v1213 = vld [vmem:[#allocation8 + $0x3c] sm:$0xff]
    %v1214 = vld [vmem:[#allocation8 + $0x44] sm:$0xf]
    %v1215 = vld [vmem:[#allocation8 + $0x48] sm:$0xff]
    %v1216 = vld [vmem:[#allocation8 + $0x50] sm:$0xf]
    %v1217 = vld [vmem:[#allocation8 + $0x54] sm:$0xff]
    %v1218 = vld [vmem:[#allocation8 + $0x5c] sm:$0xf]
    %v1219 = vld [vmem:[#allocation8 + $0x60] sm:$0xff]
    %v1220 = vld [vmem:[#allocation8 + $0x68] sm:$0xf]
    %v1221 = vld [vmem:[#allocation8 + $0x6c] sm:$0xff]
    %v1222 = vld [vmem:[#allocation8 + $0x74] sm:$0xf]
    %v1223 = vld [vmem:[#allocation8 + $0x78] sm:$0xff]
    %v1224 = vld [vmem:[#allocation8 + $0x80] sm:$0xf]
    %v1225 = vld [vmem:[#allocation8 + $0x84] sm:$0xff]
    %v1226 = vld [vmem:[#allocation8 + $0x8c] sm:$0xf]
    %v1227 = vld [vmem:[#allocation8 + $0x90] sm:$0xff]
    %v1228 = vld [vmem:[#allocation8 + $0x98] sm:$0xf]
    %v1229 = vld [vmem:[#allocation8 + $0x9c] sm:$0xff]
    %v1230 = vld [vmem:[#allocation8 + $0xa4] sm:$0xf]
    %v1231 = vld [vmem:[#allocation8 + $0xa8] sm:$0xff]
    %v1232 = vld [vmem:[#allocation8 + $0xb0] sm:$0xf]
    %v1233 = vld [vmem:[#allocation8 + $0xb4] sm:$0xff]
    %v1234 = vld [vmem:[#allocation8 + $0xbc] sm:$0xf]
    %v1235 = vld [vmem:[#allocation10] sm:$0x7]
    %v1237 = vlaneseq
    %v1238 = vshrl.u32 %v1237, 7
    %v1239 = vsub.s32 0, %v1238
    %v1240 = vrot.slane %v1235, %v1239
    %v1241 = vlaneseq
    %v1242 = vshrl.u32 %v1241, 7
    %v1243 = vsub.s32 1, %v1242
    %v1244 = vrot.slane %v1235, %v1243
    %v1245 = vlaneseq
    %v1246 = vshrl.u32 %v1245, 7
    %v1247 = vsub.s32 2, %v1246
    %v1248 = vrot.slane %v1235, %v1247
    %v1260 = vunpack.c.l.b16 %v1195
    %v1261 = vunpack.c.l.b16 %v1196
    %v1262 = vunpack.c.l.b16 %v1197
    %v1263 = vunpack.c.l.b16 %v1198
    %v1264 = vunpack.c.l.b16 %v1199
    %v1265 = vunpack.c.l.b16 %v1200
    %v1266 = vunpack.c.l.b16 %v1201
    %v1267 = vunpack.c.l.b16 %v1202
    %v1268 = vpack.c.b16 %v1261, %v1260
    %v1269 = vpack.c.b16 %v1263, %v1262
    %v1270 = vpack.c.b16 %v1265, %v1264
    %v1271 = vpack.c.b16 %v1267, %v1266
    %v1308 = vunpack.c.l.b16 %v1203
    %v1309 = vunpack.c.h.b16 %v1203
    %v1310 = vunpack.c.l.b16 %v1204
    %v1311 = vunpack.c.l.b16 %v1205
    %v1312 = vunpack.c.h.b16 %v1205
    %v1313 = vunpack.c.l.b16 %v1206
    %v1314 = vunpack.c.l.b16 %v1207
    %v1315 = vunpack.c.h.b16 %v1207
    %v1316 = vunpack.c.l.b16 %v1208
    %v1317 = vunpack.c.l.b16 %v1209
    %v1318 = vunpack.c.h.b16 %v1209
    %v1319 = vunpack.c.l.b16 %v1210
    %v1320 = vunpack.c.l.b16 %v1211
    %v1321 = vunpack.c.h.b16 %v1211
    %v1322 = vunpack.c.l.b16 %v1212
    %v1323 = vunpack.c.l.b16 %v1213
    %v1324 = vunpack.c.h.b16 %v1213
    %v1325 = vunpack.c.l.b16 %v1214
    %v1326 = vunpack.c.l.b16 %v1215
    %v1327 = vunpack.c.h.b16 %v1215
    %v1328 = vunpack.c.l.b16 %v1216
    %v1329 = vunpack.c.l.b16 %v1217
    %v1330 = vunpack.c.h.b16 %v1217
    %v1331 = vunpack.c.l.b16 %v1218
    %v1332 = vunpack.c.l.b16 %v1219
    %v1333 = vunpack.c.h.b16 %v1219
    %v1334 = vunpack.c.l.b16 %v1220
    %v1335 = vunpack.c.l.b16 %v1221
    %v1336 = vunpack.c.h.b16 %v1221
    %v1337 = vunpack.c.l.b16 %v1222
    %v1338 = vunpack.c.l.b16 %v1223
    %v1339 = vunpack.c.h.b16 %v1223
    %v1340 = vunpack.c.l.b16 %v1224
    %v1341 = vunpack.c.l.b16 %v1225
    %v1342 = vunpack.c.h.b16 %v1225
    %v1343 = vunpack.c.l.b16 %v1226
    %v1344 = vunpack.c.l.b16 %v1227
    %v1345 = vunpack.c.h.b16 %v1227
    %v1346 = vunpack.c.l.b16 %v1228
    %v1347 = vunpack.c.l.b16 %v1229
    %v1348 = vunpack.c.h.b16 %v1229
    %v1349 = vunpack.c.l.b16 %v1230
    %v1350 = vunpack.c.l.b16 %v1231
    %v1351 = vunpack.c.h.b16 %v1231
    %v1352 = vunpack.c.l.b16 %v1232
    %v1353 = vunpack.c.l.b16 %v1233
    %v1354 = vunpack.c.h.b16 %v1233
    %v1355 = vunpack.c.l.b16 %v1234
    %v1356 = vpack.c.b16 %v1311, %v1308
    %v1357 = vpack.c.b16 %v1312, %v1309
    %v1358 = vpack.c.b16 %v1313, %v1310
    %v1359 = vpack.c.b16 %v1317, %v1314
    %v1360 = vpack.c.b16 %v1318, %v1315
    %v1361 = vpack.c.b16 %v1319, %v1316
    %v1362 = vpack.c.b16 %v1323, %v1320
    %v1363 = vpack.c.b16 %v1324, %v1321
    %v1364 = vpack.c.b16 %v1325, %v1322
    %v1365 = vpack.c.b16 %v1329, %v1326
    %v1366 = vpack.c.b16 %v1330, %v1327
    %v1367 = vpack.c.b16 %v1331, %v1328
    %v1368 = vpack.c.b16 %v1335, %v1332
    %v1369 = vpack.c.b16 %v1336, %v1333
    %v1370 = vpack.c.b16 %v1337, %v1334
    %v1371 = vpack.c.b16 %v1341, %v1338
    %v1372 = vpack.c.b16 %v1342, %v1339
    %v1373 = vpack.c.b16 %v1343, %v1340
    %v1374 = vpack.c.b16 %v1347, %v1344
    %v1375 = vpack.c.b16 %v1348, %v1345
    %v1376 = vpack.c.b16 %v1349, %v1346
    %v1377 = vpack.c.b16 %v1353, %v1350
    %v1378 = vpack.c.b16 %v1354, %v1351
    %v1379 = vpack.c.b16 %v1355, %v1352
    %1404 = vmatprep.subr.bf16.mxu0 %v1378
    %1405 = vmatpush1.bf16.msra.mxu0 %v1377
    %1406 = vmatprep.subr.bf16.mxu0 %v1375
    %1407 = vmatpush1.bf16.msra.mxu0 %v1374
    %1408 = vmatprep.subr.bf16.mxu0 %v1372
    %1409 = vmatpush1.bf16.msra.mxu0 %v1371
    %1410 = vmatprep.subr.bf16.mxu0 %v1369
    %1411 = vmatpush1.bf16.msra.mxu0 %v1368
    %1412 = vmatprep.subr.bf16.mxu0 %v1366
    %1413 = vmatpush1.bf16.msra.mxu0 %v1365
    %1414 = vmatprep.subr.bf16.mxu0 %v1363
    %1415 = vmatpush1.bf16.msra.mxu0 %v1362
    %1416 = vmatprep.subr.bf16.mxu0 %v1360
    %1417 = vmatpush1.bf16.msra.mxu0 %v1359
    %1418 = vmatprep.subr.bf16.mxu0 %v1357
    %1419 = vmatpush1.bf16.msra.mxu0 %v1356
    %1420 = vmatprep.subr.bf16.mxu0 0
    %1421 = vmatpush2.bf16.msra.mxu0 0
    %1422 = vmatprep.subr.bf16.mxu0 0
    %1423 = vmatpush2.bf16.msra.mxu0 0
    %1424 = vmatprep.subr.bf16.mxu0 0
    %1425 = vmatpush2.bf16.msra.mxu0 0
    %1426 = vmatprep.subr.bf16.mxu0 0
    %1427 = vmatpush2.bf16.msra.mxu0 0
    %1428 = vmatprep.subr.bf16.mxu0 0
    %1429 = vmatpush2.bf16.msra.mxu0 0
    %1430 = vmatprep.subr.bf16.mxu0 0
    %1431 = vmatpush2.bf16.msra.mxu0 0
    %1432 = vmatprep.subr.bf16.mxu0 0
    %1433 = vmatpush2.bf16.msra.mxu0 0
    %1434 = vmatprep.subr.bf16.mxu0 0
    %1435 = vmatpush2.bf16.msra.mxu0 0
    %1436 = vmatprep.mubr.bf16.mxu0 0
    %1437 = vmatmul.mubr.bf16.gmra.mxu0 %v1268
    %v1438 = vpop.f32.mrf.mxu0
    %v1439 = vadd.f32 %v1240, %v1438
    %v1440 = vpop.f32.mrf.mxu0
    %v1441 = vadd.f32 %v1244, %v1440
    %v1442 = vpop.f32.mrf.mxu0
    %v1443 = vadd.f32 %v1240, %v1442
    %v1444 = vpop.f32.mrf.mxu0
    %v1445 = vadd.f32 %v1244, %v1444
    %1446 = vmatprep.mubr.bf16.mxu0 0
    %1447 = vmatmul.mubr.bf16.gmra.mxu0 %v1269
    %v1448 = vpop.f32.mrf.mxu0
    %v1449 = vadd.f32 %v1240, %v1448
    %v1450 = vpop.f32.mrf.mxu0
    %v1451 = vadd.f32 %v1244, %v1450
    %v1452 = vpop.f32.mrf.mxu0
    %v1453 = vadd.f32 %v1240, %v1452
    %v1454 = vpop.f32.mrf.mxu0
    %v1455 = vadd.f32 %v1244, %v1454
    %1456 = vmatprep.mubr.bf16.mxu0 0
    %1457 = vmatmul.mubr.bf16.gmra.mxu0 %v1270
    %v1458 = vpop.f32.mrf.mxu0
    %v1459 = vadd.f32 %v1240, %v1458
    %v1460 = vpop.f32.mrf.mxu0
    %v1461 = vadd.f32 %v1244, %v1460
    %v1462 = vpop.f32.mrf.mxu0
    %v1463 = vadd.f32 %v1240, %v1462
    %v1464 = vpop.f32.mrf.mxu0
    %v1465 = vadd.f32 %v1244, %v1464
    %1466 = vmatprep.mubr.bf16.mxu0 0
    %1467 = vmatmul.mubr.bf16.gmra.mxu0 %v1271
    %v1468 = vpop.f32.mrf.mxu0
    %v1469 = vadd.f32 %v1240, %v1468
    %v1470 = vpop.f32.mrf.mxu0
    %v1471 = vadd.f32 %v1244, %v1470
    %v1472 = vpop.f32.mrf.mxu0
    %v1473 = vadd.f32 %v1240, %v1472
    %v1474 = vpop.f32.mrf.mxu0
    %v1475 = vadd.f32 %v1244, %v1474
    %1476 = vdwg.mxu0
    %1477 = vmatprep.subr.bf16.mxu0 0
    %1478 = vmatpush1.bf16.msra.mxu0 %v1379
    %1479 = vmatprep.subr.bf16.mxu0 0
    %1480 = vmatpush1.bf16.msra.mxu0 %v1376
    %1481 = vmatprep.subr.bf16.mxu0 0
    %1482 = vmatpush1.bf16.msra.mxu0 %v1373
    %1483 = vmatprep.subr.bf16.mxu0 0
    %1484 = vmatpush1.bf16.msra.mxu0 %v1370
    %1485 = vmatprep.subr.bf16.mxu0 0
    %1486 = vmatpush1.bf16.msra.mxu0 %v1367
    %1487 = vmatprep.subr.bf16.mxu0 0
    %1488 = vmatpush1.bf16.msra.mxu0 %v1364
    %1489 = vmatprep.subr.bf16.mxu0 0
    %1490 = vmatpush1.bf16.msra.mxu0 %v1361
    %1491 = vmatprep.subr.bf16.mxu0 0
    %1492 = vmatpush1.bf16.msra.mxu0 %v1358
    %1493 = vmatprep.subr.bf16.mxu0 0
    %1494 = vmatpush2.bf16.msra.mxu0 0
    %1495 = vmatprep.subr.bf16.mxu0 0
    %1496 = vmatpush2.bf16.msra.mxu0 0
    %1497 = vmatprep.subr.bf16.mxu0 0
    %1498 = vmatpush2.bf16.msra.mxu0 0
    %1499 = vmatprep.subr.bf16.mxu0 0
    %1500 = vmatpush2.bf16.msra.mxu0 0
    %1501 = vmatprep.subr.bf16.mxu0 0
    %1502 = vmatpush2.bf16.msra.mxu0 0
    %1503 = vmatprep.subr.bf16.mxu0 0
    %1504 = vmatpush2.bf16.msra.mxu0 0
    %1505 = vmatprep.subr.bf16.mxu0 0
    %1506 = vmatpush2.bf16.msra.mxu0 0
    %1507 = vmatprep.subr.bf16.mxu0 0
    %1508 = vmatpush2.bf16.msra.mxu0 0
    %1509 = vmatprep.mubr.bf16.mxu0 0
    %1510 = vmatmul.mubr.bf16.gmra.mxu0 %v1268
    %v1511 = vpop.f32.mrf.mxu0
    %v1512 = vadd.f32 %v1248, %v1511
    %v1513 = vpop.f32.mrf.mxu0
    %v1514 = vpop.f32.mrf.mxu0
    %v1515 = vadd.f32 %v1248, %v1514
    %v1516 = vpop.f32.mrf.mxu0
    %1517 = vmatprep.mubr.bf16.mxu0 0
    %1518 = vmatmul.mubr.bf16.gmra.mxu0 %v1269
    %v1519 = vpop.f32.mrf.mxu0
    %v1520 = vadd.f32 %v1248, %v1519
    %v1521 = vpop.f32.mrf.mxu0
    %v1522 = vpop.f32.mrf.mxu0
    %v1523 = vadd.f32 %v1248, %v1522
    %v1524 = vpop.f32.mrf.mxu0
    %1525 = vmatprep.mubr.bf16.mxu0 0
    %1526 = vmatmul.mubr.bf16.gmra.mxu0 %v1270
    %v1527 = vpop.f32.mrf.mxu0
    %v1528 = vadd.f32 %v1248, %v1527
    %v1529 = vpop.f32.mrf.mxu0
    %v1530 = vpop.f32.mrf.mxu0
    %v1531 = vadd.f32 %v1248, %v1530
    %v1532 = vpop.f32.mrf.mxu0
    %1533 = vmatprep.mubr.bf16.mxu0 0
    %1534 = vmatmul.mubr.bf16.gmra.mxu0 %v1271
    %v1535 = vpop.f32.mrf.mxu0
    %v1536 = vadd.f32 %v1248, %v1535
    %v1537 = vpop.f32.mrf.mxu0
    %v1538 = vpop.f32.mrf.mxu0
    %v1539 = vadd.f32 %v1248, %v1538
    %v1540 = vpop.f32.mrf.mxu0
    %1541 = vdwg.mxu0
    %v1542 = vpack.c.bf16 %v1443, %v1439
    %v1543 = vpack.c.bf16 %v1445, %v1441
    %v1544 = vpack.c.bf16 %v1515, %v1512
    %v1545 = vpack.c.bf16 %v1453, %v1449
    %v1546 = vpack.c.bf16 %v1455, %v1451
    %v1547 = vpack.c.bf16 %v1523, %v1520
    %v1548 = vpack.c.bf16 %v1463, %v1459
    %v1549 = vpack.c.bf16 %v1465, %v1461
    %v1550 = vpack.c.bf16 %v1531, %v1528
    %v1551 = vpack.c.bf16 %v1473, %v1469
    %v1552 = vpack.c.bf16 %v1475, %v1471
    %v1553 = vpack.c.bf16 %v1539, %v1536
    %v1566 = vunpack.c.l.b16 %v1542
    %v1567 = vunpack.c.l.b16 %v1543
    %v1568 = vunpack.c.l.b16 %v1544
    %v1569 = vunpack.c.h.b16 %v1542
    %v1570 = vunpack.c.h.b16 %v1543
    %v1571 = vunpack.c.h.b16 %v1544
    %v1572 = vunpack.c.l.b16 %v1545
    %v1573 = vunpack.c.l.b16 %v1546
    %v1574 = vunpack.c.l.b16 %v1547
    %v1575 = vunpack.c.h.b16 %v1545
    %v1576 = vunpack.c.h.b16 %v1546
    %v1577 = vunpack.c.h.b16 %v1547
    %v1578 = vunpack.c.l.b16 %v1548
    %v1579 = vunpack.c.l.b16 %v1549
    %v1580 = vunpack.c.l.b16 %v1550
    %v1581 = vunpack.c.h.b16 %v1548
    %v1582 = vunpack.c.h.b16 %v1549
    %v1583 = vunpack.c.h.b16 %v1550
    %v1584 = vunpack.c.l.b16 %v1551
    %v1585 = vunpack.c.l.b16 %v1552
    %v1586 = vunpack.c.l.b16 %v1553
    %v1587 = vunpack.c.h.b16 %v1551
    %v1588 = vunpack.c.h.b16 %v1552
    %v1589 = vunpack.c.h.b16 %v1553
    %v1590 = vpack.c.b16 %v1567, %v1566
    %v1591 = vpack.c.b16 %v1568, %v1568
    %v1592 = vpack.c.b16 %v1570, %v1569
    %v1593 = vpack.c.b16 %v1571, %v1571
    %v1594 = vpack.c.b16 %v1573, %v1572
    %v1595 = vpack.c.b16 %v1574, %v1574
    %v1596 = vpack.c.b16 %v1576, %v1575
    %v1597 = vpack.c.b16 %v1577, %v1577
    %v1598 = vpack.c.b16 %v1579, %v1578
    %v1599 = vpack.c.b16 %v1580, %v1580
    %v1600 = vpack.c.b16 %v1582, %v1581
    %v1601 = vpack.c.b16 %v1583, %v1583
    %v1602 = vpack.c.b16 %v1585, %v1584
    %v1603 = vpack.c.b16 %v1586, %v1586
    %v1604 = vpack.c.b16 %v1588, %v1587
    %v1605 = vpack.c.b16 %v1589, %v1589
    %1622 = vst [vmem:[#allocation4] sm:$0xff] %v1590
    %1623 = vst [vmem:[#allocation4 + $0x8] sm:$0xf] %v1591
    %1624 = vst [vmem:[#allocation4 + $0xc] sm:$0xff] %v1592
    %1625 = vst [vmem:[#allocation4 + $0x14] sm:$0xf] %v1593
    %1626 = vst [vmem:[#allocation4 + $0x18] sm:$0xff] %v1594
    %1627 = vst [vmem:[#allocation4 + $0x20] sm:$0xf] %v1595
    %1628 = vst [vmem:[#allocation4 + $0x24] sm:$0xff] %v1596
    %1629 = vst [vmem:[#allocation4 + $0x2c] sm:$0xf] %v1597
    %1630 = vst [vmem:[#allocation4 + $0x30] sm:$0xff] %v1598
    %1631 = vst [vmem:[#allocation4 + $0x38] sm:$0xf] %v1599
    %1632 = vst [vmem:[#allocation4 + $0x3c] sm:$0xff] %v1600
    %1633 = vst [vmem:[#allocation4 + $0x44] sm:$0xf] %v1601
    %1634 = vst [vmem:[#allocation4 + $0x48] sm:$0xff] %v1602
    %1635 = vst [vmem:[#allocation4 + $0x50] sm:$0xf] %v1603
    %1636 = vst [vmem:[#allocation4 + $0x54] sm:$0xff] %v1604
    %1637 = vst [vmem:[#allocation4 + $0x5c] sm:$0xf] %v1605
    %s1638 = scalar_lea.vmem [#allocation11], 192
    %v1639 = vld [vmem:[%s1638] sm:$0xff]
    %v1640 = vld [vmem:[%s1638 + $0x8] sm:$0xf]
    %v1641 = vld [vmem:[%s1638 + $0xc] sm:$0xff]
    %v1642 = vld [vmem:[%s1638 + $0x14] sm:$0xf]
    %v1643 = vld [vmem:[%s1638 + $0x18] sm:$0xff]
    %v1644 = vld [vmem:[%s1638 + $0x20] sm:$0xf]
    %v1645 = vld [vmem:[%s1638 + $0x24] sm:$0xff]
    %v1646 = vld [vmem:[%s1638 + $0x2c] sm:$0xf]
    %v1647 = vld [vmem:[%s1638 + $0x30] sm:$0xff]
    %v1648 = vld [vmem:[%s1638 + $0x38] sm:$0xf]
    %v1649 = vld [vmem:[%s1638 + $0x3c] sm:$0xff]
    %v1650 = vld [vmem:[%s1638 + $0x44] sm:$0xf]
    %v1651 = vld [vmem:[%s1638 + $0x48] sm:$0xff]
    %v1652 = vld [vmem:[%s1638 + $0x50] sm:$0xf]
    %v1653 = vld [vmem:[%s1638 + $0x54] sm:$0xff]
    %v1654 = vld [vmem:[%s1638 + $0x5c] sm:$0xf]
    %v1655 = vld [vmem:[%s1638 + $0x60] sm:$0xff]
    %v1656 = vld [vmem:[%s1638 + $0x68] sm:$0xf]
    %v1657 = vld [vmem:[%s1638 + $0x6c] sm:$0xff]
    %v1658 = vld [vmem:[%s1638 + $0x74] sm:$0xf]
    %v1659 = vld [vmem:[%s1638 + $0x78] sm:$0xff]
    %v1660 = vld [vmem:[%s1638 + $0x80] sm:$0xf]
    %v1661 = vld [vmem:[%s1638 + $0x84] sm:$0xff]
    %v1662 = vld [vmem:[%s1638 + $0x8c] sm:$0xf]
    %v1663 = vld [vmem:[%s1638 + $0x90] sm:$0xff]
    %v1664 = vld [vmem:[%s1638 + $0x98] sm:$0xf]
    %v1665 = vld [vmem:[%s1638 + $0x9c] sm:$0xff]
    %v1666 = vld [vmem:[%s1638 + $0xa4] sm:$0xf]
    %v1667 = vld [vmem:[%s1638 + $0xa8] sm:$0xff]
    %v1668 = vld [vmem:[%s1638 + $0xb0] sm:$0xf]
    %v1669 = vld [vmem:[%s1638 + $0xb4] sm:$0xff]
    %v1670 = vld [vmem:[%s1638 + $0xbc] sm:$0xf]
    %s1671 = scalar_lea.vmem %s4, 3
    %v1672 = vld [vmem:[%s1671] sm:$0x7]
    %v1674 = vlaneseq
    %v1675 = vshrl.u32 %v1674, 7
    %v1676 = vsub.s32 0, %v1675
    %v1677 = vrot.slane %v1672, %v1676
    %v1678 = vlaneseq
    %v1679 = vshrl.u32 %v1678, 7
    %v1680 = vsub.s32 1, %v1679
    %v1681 = vrot.slane %v1672, %v1680
    %v1682 = vlaneseq
    %v1683 = vshrl.u32 %v1682, 7
    %v1684 = vsub.s32 2, %v1683
    %v1685 = vrot.slane %v1672, %v1684
    %s1689 = scalar_lea.vmem [#allocation2], 8
    %v1690 = vld [vmem:[%s1689] sm:$0xff]
    %s1691 = smul.addr %s138, 4
    %s1692 = scalar_lea.vmem [#allocation4], %s1691
    %v1693 = vld [vmem:[%s1692] sm:$0xff]
    %v1694 = vld [vmem:[%s1692 + $0x8] sm:$0xf]
    %v1695 = vpack.c.bf16 %v1690, %v1690
    %v1728 = vunpack.c.l.b16 %v1639
    %v1729 = vunpack.c.h.b16 %v1639
    %v1730 = vunpack.c.l.b16 %v1640
    %v1731 = vunpack.c.l.b16 %v1641
    %v1732 = vunpack.c.h.b16 %v1641
    %v1733 = vunpack.c.l.b16 %v1642
    %v1734 = vunpack.c.l.b16 %v1643
    %v1735 = vunpack.c.h.b16 %v1643
    %v1736 = vunpack.c.l.b16 %v1644
    %v1737 = vunpack.c.l.b16 %v1645
    %v1738 = vunpack.c.h.b16 %v1645
    %v1739 = vunpack.c.l.b16 %v1646
    %v1740 = vunpack.c.l.b16 %v1647
    %v1741 = vunpack.c.h.b16 %v1647
    %v1742 = vunpack.c.l.b16 %v1648
    %v1743 = vunpack.c.l.b16 %v1649
    %v1744 = vunpack.c.h.b16 %v1649
    %v1745 = vunpack.c.l.b16 %v1650
    %v1746 = vunpack.c.l.b16 %v1651
    %v1747 = vunpack.c.h.b16 %v1651
    %v1748 = vunpack.c.l.b16 %v1652
    %v1749 = vunpack.c.l.b16 %v1653
    %v1750 = vunpack.c.h.b16 %v1653
    %v1751 = vunpack.c.l.b16 %v1654
    %v1752 = vunpack.c.l.b16 %v1655
    %v1753 = vunpack.c.h.b16 %v1655
    %v1754 = vunpack.c.l.b16 %v1656
    %v1755 = vunpack.c.l.b16 %v1657
    %v1756 = vunpack.c.h.b16 %v1657
    %v1757 = vunpack.c.l.b16 %v1658
    %v1758 = vunpack.c.l.b16 %v1659
    %v1759 = vunpack.c.h.b16 %v1659
    %v1760 = vunpack.c.l.b16 %v1660
    %v1761 = vunpack.c.l.b16 %v1661
    %v1762 = vunpack.c.h.b16 %v1661
    %v1763 = vunpack.c.l.b16 %v1662
    %v1764 = vunpack.c.l.b16 %v1663
    %v1765 = vunpack.c.h.b16 %v1663
    %v1766 = vunpack.c.l.b16 %v1664
    %v1767 = vunpack.c.l.b16 %v1665
    %v1768 = vunpack.c.h.b16 %v1665
    %v1769 = vunpack.c.l.b16 %v1666
    %v1770 = vunpack.c.l.b16 %v1667
    %v1771 = vunpack.c.h.b16 %v1667
    %v1772 = vunpack.c.l.b16 %v1668
    %v1773 = vunpack.c.l.b16 %v1669
    %v1774 = vunpack.c.h.b16 %v1669
    %v1775 = vunpack.c.l.b16 %v1670
    %v1776 = vpack.c.b16 %v1731, %v1728
    %v1777 = vpack.c.b16 %v1732, %v1729
    %v1778 = vpack.c.b16 %v1733, %v1730
    %v1779 = vpack.c.b16 %v1737, %v1734
    %v1780 = vpack.c.b16 %v1738, %v1735
    %v1781 = vpack.c.b16 %v1739, %v1736
    %v1782 = vpack.c.b16 %v1743, %v1740
    %v1783 = vpack.c.b16 %v1744, %v1741
    %v1784 = vpack.c.b16 %v1745, %v1742
    %v1785 = vpack.c.b16 %v1749, %v1746
    %v1786 = vpack.c.b16 %v1750, %v1747
    %v1787 = vpack.c.b16 %v1751, %v1748
    %v1788 = vpack.c.b16 %v1755, %v1752
    %v1789 = vpack.c.b16 %v1756, %v1753
    %v1790 = vpack.c.b16 %v1757, %v1754
    %v1791 = vpack.c.b16 %v1761, %v1758
    %v1792 = vpack.c.b16 %v1762, %v1759
    %v1793 = vpack.c.b16 %v1763, %v1760
    %v1794 = vpack.c.b16 %v1767, %v1764
    %v1795 = vpack.c.b16 %v1768, %v1765
    %v1796 = vpack.c.b16 %v1769, %v1766
    %v1797 = vpack.c.b16 %v1773, %v1770
    %v1798 = vpack.c.b16 %v1774, %v1771
    %v1799 = vpack.c.b16 %v1775, %v1772
    %1824 = vmatprep.subr.bf16.mxu0 %v1798
    %1825 = vmatpush1.bf16.msra.mxu0 %v1797
    %1826 = vmatprep.subr.bf16.mxu0 %v1795
    %1827 = vmatpush1.bf16.msra.mxu0 %v1794
    %1828 = vmatprep.subr.bf16.mxu0 %v1792
    %1829 = vmatpush1.bf16.msra.mxu0 %v1791
    %1830 = vmatprep.subr.bf16.mxu0 %v1789
    %1831 = vmatpush1.bf16.msra.mxu0 %v1788
    %1832 = vmatprep.subr.bf16.mxu0 %v1786
    %1833 = vmatpush1.bf16.msra.mxu0 %v1785
    %1834 = vmatprep.subr.bf16.mxu0 %v1783
    %1835 = vmatpush1.bf16.msra.mxu0 %v1782
    %1836 = vmatprep.subr.bf16.mxu0 %v1780
    %1837 = vmatpush1.bf16.msra.mxu0 %v1779
    %1838 = vmatprep.subr.bf16.mxu0 %v1777
    %1839 = vmatpush1.bf16.msra.mxu0 %v1776
    %1840 = vmatprep.subr.bf16.mxu0 0
    %1841 = vmatpush2.bf16.msra.mxu0 0
    %1842 = vmatprep.subr.bf16.mxu0 0
    %1843 = vmatpush2.bf16.msra.mxu0 0
    %1844 = vmatprep.subr.bf16.mxu0 0
    %1845 = vmatpush2.bf16.msra.mxu0 0
    %1846 = vmatprep.subr.bf16.mxu0 0
    %1847 = vmatpush2.bf16.msra.mxu0 0
    %1848 = vmatprep.subr.bf16.mxu0 0
    %1849 = vmatpush2.bf16.msra.mxu0 0
    %1850 = vmatprep.subr.bf16.mxu0 0
    %1851 = vmatpush2.bf16.msra.mxu0 0
    %1852 = vmatprep.subr.bf16.mxu0 0
    %1853 = vmatpush2.bf16.msra.mxu0 0
    %1854 = vmatprep.subr.bf16.mxu0 0
    %1855 = vmatpush2.bf16.msra.mxu0 0
    %1856 = vmatprep.mubr.bf16.mxu0 0
    %1857 = vmatmul.mubr.bf16.gmra.mxu0 %v1695
    %v1858 = vpop.f32.mrf.mxu0
    %v1859 = vadd.f32 %v1677, %v1858
    %v1860 = vpop.f32.mrf.mxu0
    %v1861 = vadd.f32 %v1681, %v1860
    %v1862 = vpop.f32.mrf.mxu0
    %v1863 = vpop.f32.mrf.mxu0
    %1864 = vdwg.mxu0
    %1865 = vmatprep.subr.bf16.mxu0 0
    %1866 = vmatpush1.bf16.msra.mxu0 %v1799
    %1867 = vmatprep.subr.bf16.mxu0 0
    %1868 = vmatpush1.bf16.msra.mxu0 %v1796
    %1869 = vmatprep.subr.bf16.mxu0 0
    %1870 = vmatpush1.bf16.msra.mxu0 %v1793
    %1871 = vmatprep.subr.bf16.mxu0 0
    %1872 = vmatpush1.bf16.msra.mxu0 %v1790
    %1873 = vmatprep.subr.bf16.mxu0 0
    %1874 = vmatpush1.bf16.msra.mxu0 %v1787
    %1875 = vmatprep.subr.bf16.mxu0 0
    %1876 = vmatpush1.bf16.msra.mxu0 %v1784
    %1877 = vmatprep.subr.bf16.mxu0 0
    %1878 = vmatpush1.bf16.msra.mxu0 %v1781
    %1879 = vmatprep.subr.bf16.mxu0 0
    %1880 = vmatpush1.bf16.msra.mxu0 %v1778
    %1881 = vmatprep.subr.bf16.mxu0 0
    %1882 = vmatpush2.bf16.msra.mxu0 0
    %1883 = vmatprep.subr.bf16.mxu0 0
    %1884 = vmatpush2.bf16.msra.mxu0 0
    %1885 = vmatprep.subr.bf16.mxu0 0
    %1886 = vmatpush2.bf16.msra.mxu0 0
    %1887 = vmatprep.subr.bf16.mxu0 0
    %1888 = vmatpush2.bf16.msra.mxu0 0
    %1889 = vmatprep.subr.bf16.mxu0 0
    %1890 = vmatpush2.bf16.msra.mxu0 0
    %1891 = vmatprep.subr.bf16.mxu0 0
    %1892 = vmatpush2.bf16.msra.mxu0 0
    %1893 = vmatprep.subr.bf16.mxu0 0
    %1894 = vmatpush2.bf16.msra.mxu0 0
    %1895 = vmatprep.subr.bf16.mxu0 0
    %1896 = vmatpush2.bf16.msra.mxu0 0
    %1897 = vmatprep.mubr.bf16.mxu0 0
    %1898 = vmatmul.mubr.bf16.gmra.mxu0 %v1695
    %v1899 = vpop.f32.mrf.mxu0
    %v1900 = vadd.f32 %v1685, %v1899
    %v1901 = vpop.f32.mrf.mxu0
    %v1902 = vpop.f32.mrf.mxu0
    %v1903 = vpop.f32.mrf.mxu0
    %1904 = vdwg.mxu0
    %v1905 = vunpack.c.l.bf16 %v1693
    %v1906 = vadd.f32 %v1905, %v1859
    %v1907 = vxor.u32 %v1906, 2147483648
    %v1908 = vmul.f32 %v1907, 1.442695
    %v1909 = vpow.pop %v1908
    %v1910 = vadd.f32 %v1909, 1.0
    %v1911 = vrcp.pop %v1910
    %v1912 = vmul.f32 1.0, %v1911
    %v1914 = vrot.slane %v1693, 4
    %v1916 = vunpack.c.l.bf16 %v1914
    %v1917 = vadd.f32 %v1916, %v1861
    %v1918 = vxor.u32 %v1917, 2147483648
    %v1919 = vmul.f32 %v1918, 1.442695
    %v1920 = vpow.pop %v1919
    %v1921 = vadd.f32 %v1920, 1.0
    %v1922 = vrcp.pop %v1921
    %v1923 = vmul.f32 1.0, %v1922
    %v1924 = vmul.f32 %v1912, %v1900
    %v1925 = vunpack.c.l.bf16 %v1694
    %v1926 = vadd.f32 %v1925, %v1924
    %v1927 = vtanh.pop %v1926
    %v1928 = vsub.f32 1.0, %v1923
    %v1929 = vmul.f32 %v1928, %v1927
    %v1930 = vmul.f32 %v1923, %v1690
    %v1931 = vadd.f32 %v1929, %v1930
    %s1932 = smul.addr %s382, 4
    %s1933 = scalar_lea.vmem [#allocation4], %s1932
    %v1934 = vld [vmem:[%s1933] sm:$0xff]
    %v1935 = vld [vmem:[%s1933 + $0x8] sm:$0xf]
    %v1936 = vpack.c.bf16 %v1931, %v1931
    %1937 = vmatprep.subr.bf16.mxu0 %v1798
    %1938 = vmatpush1.bf16.msra.mxu0 %v1797
    %1939 = vmatprep.subr.bf16.mxu0 %v1795
    %1940 = vmatpush1.bf16.msra.mxu0 %v1794
    %1941 = vmatprep.subr.bf16.mxu0 %v1792
    %1942 = vmatpush1.bf16.msra.mxu0 %v1791
    %1943 = vmatprep.subr.bf16.mxu0 %v1789
    %1944 = vmatpush1.bf16.msra.mxu0 %v1788
    %1945 = vmatprep.subr.bf16.mxu0 %v1786
    %1946 = vmatpush1.bf16.msra.mxu0 %v1785
    %1947 = vmatprep.subr.bf16.mxu0 %v1783
    %1948 = vmatpush1.bf16.msra.mxu0 %v1782
    %1949 = vmatprep.subr.bf16.mxu0 %v1780
    %1950 = vmatpush1.bf16.msra.mxu0 %v1779
    %1951 = vmatprep.subr.bf16.mxu0 %v1777
    %1952 = vmatpush1.bf16.msra.mxu0 %v1776
    %1953 = vmatprep.subr.bf16.mxu0 0
    %1954 = vmatpush2.bf16.msra.mxu0 0
    %1955 = vmatprep.subr.bf16.mxu0 0
    %1956 = vmatpush2.bf16.msra.mxu0 0
    %1957 = vmatprep.subr.bf16.mxu0 0
    %1958 = vmatpush2.bf16.msra.mxu0 0
    %1959 = vmatprep.subr.bf16.mxu0 0
    %1960 = vmatpush2.bf16.msra.mxu0 0
    %1961 = vmatprep.subr.bf16.mxu0 0
    %1962 = vmatpush2.bf16.msra.mxu0 0
    %1963 = vmatprep.subr.bf16.mxu0 0
    %1964 = vmatpush2.bf16.msra.mxu0 0
    %1965 = vmatprep.subr.bf16.mxu0 0
    %1966 = vmatpush2.bf16.msra.mxu0 0
    %1967 = vmatprep.subr.bf16.mxu0 0
    %1968 = vmatpush2.bf16.msra.mxu0 0
    %1969 = vmatprep.mubr.bf16.mxu0 0
    %1970 = vmatmul.mubr.bf16.gmra.mxu0 %v1936
    %v1971 = vpop.f32.mrf.mxu0
    %v1972 = vadd.f32 %v1677, %v1971
    %v1973 = vpop.f32.mrf.mxu0
    %v1974 = vadd.f32 %v1681, %v1973
    %v1975 = vpop.f32.mrf.mxu0
    %v1976 = vpop.f32.mrf.mxu0
    %1977 = vdwg.mxu0
    %1978 = vmatprep.subr.bf16.mxu0 0
    %1979 = vmatpush1.bf16.msra.mxu0 %v1799
    %1980 = vmatprep.subr.bf16.mxu0 0
    %1981 = vmatpush1.bf16.msra.mxu0 %v1796
    %1982 = vmatprep.subr.bf16.mxu0 0
    %1983 = vmatpush1.bf16.msra.mxu0 %v1793
    %1984 = vmatprep.subr.bf16.mxu0 0
    %1985 = vmatpush1.bf16.msra.mxu0 %v1790
    %1986 = vmatprep.subr.bf16.mxu0 0
    %1987 = vmatpush1.bf16.msra.mxu0 %v1787
    %1988 = vmatprep.subr.bf16.mxu0 0
    %1989 = vmatpush1.bf16.msra.mxu0 %v1784
    %1990 = vmatprep.subr.bf16.mxu0 0
    %1991 = vmatpush1.bf16.msra.mxu0 %v1781
    %1992 = vmatprep.subr.bf16.mxu0 0
    %1993 = vmatpush1.bf16.msra.mxu0 %v1778
    %1994 = vmatprep.subr.bf16.mxu0 0
    %1995 = vmatpush2.bf16.msra.mxu0 0
    %1996 = vmatprep.subr.bf16.mxu0 0
    %1997 = vmatpush2.bf16.msra.mxu0 0
    %1998 = vmatprep.subr.bf16.mxu0 0
    %1999 = vmatpush2.bf16.msra.mxu0 0
    %2000 = vmatprep.subr.bf16.mxu0 0
    %2001 = vmatpush2.bf16.msra.mxu0 0
    %2002 = vmatprep.subr.bf16.mxu0 0
    %2003 = vmatpush2.bf16.msra.mxu0 0
    %2004 = vmatprep.subr.bf16.mxu0 0
    %2005 = vmatpush2.bf16.msra.mxu0 0
    %2006 = vmatprep.subr.bf16.mxu0 0
    %2007 = vmatpush2.bf16.msra.mxu0 0
    %2008 = vmatprep.subr.bf16.mxu0 0
    %2009 = vmatpush2.bf16.msra.mxu0 0
    %2010 = vmatprep.mubr.bf16.mxu0 0
    %2011 = vmatmul.mubr.bf16.gmra.mxu0 %v1936
    %v2012 = vpop.f32.mrf.mxu0
    %v2013 = vadd.f32 %v1685, %v2012
    %v2014 = vpop.f32.mrf.mxu0
    %v2015 = vpop.f32.mrf.mxu0
    %v2016 = vpop.f32.mrf.mxu0
    %2017 = vdwg.mxu0
    %v2018 = vunpack.c.l.bf16 %v1934
    %v2019 = vadd.f32 %v2018, %v1972
    %v2020 = vxor.u32 %v2019, 2147483648
    %v2021 = vmul.f32 %v2020, 1.442695
    %v2022 = vpow.pop %v2021
    %v2023 = vadd.f32 %v2022, 1.0
    %v2024 = vrcp.pop %v2023
    %v2025 = vmul.f32 1.0, %v2024
    %v2027 = vrot.slane %v1934, 4
    %v2029 = vunpack.c.l.bf16 %v2027
    %v2030 = vadd.f32 %v2029, %v1974
    %v2031 = vxor.u32 %v2030, 2147483648
    %v2032 = vmul.f32 %v2031, 1.442695
    %v2033 = vpow.pop %v2032
    %v2034 = vadd.f32 %v2033, 1.0
    %v2035 = vrcp.pop %v2034
    %v2036 = vmul.f32 1.0, %v2035
    %v2037 = vmul.f32 %v2025, %v2013
    %v2038 = vunpack.c.l.bf16 %v1935
    %v2039 = vadd.f32 %v2038, %v2037
    %v2040 = vtanh.pop %v2039
    %v2041 = vsub.f32 1.0, %v2036
    %v2042 = vmul.f32 %v2041, %v2040
    %v2043 = vmul.f32 %v2036, %v1931
    %v2044 = vadd.f32 %v2042, %v2043
    %s2045 = smul.addr %s498, 4
    %s2046 = scalar_lea.vmem [#allocation4], %s2045
    %v2047 = vld [vmem:[%s2046] sm:$0xff]
    %v2048 = vld [vmem:[%s2046 + $0x8] sm:$0xf]
    %v2049 = vpack.c.bf16 %v2044, %v2044
    %2050 = vmatprep.subr.bf16.mxu0 %v1798
    %2051 = vmatpush1.bf16.msra.mxu0 %v1797
    %2052 = vmatprep.subr.bf16.mxu0 %v1795
    %2053 = vmatpush1.bf16.msra.mxu0 %v1794
    %2054 = vmatprep.subr.bf16.mxu0 %v1792
    %2055 = vmatpush1.bf16.msra.mxu0 %v1791
    %2056 = vmatprep.subr.bf16.mxu0 %v1789
    %2057 = vmatpush1.bf16.msra.mxu0 %v1788
    %2058 = vmatprep.subr.bf16.mxu0 %v1786
    %2059 = vmatpush1.bf16.msra.mxu0 %v1785
    %2060 = vmatprep.subr.bf16.mxu0 %v1783
    %2061 = vmatpush1.bf16.msra.mxu0 %v1782
    %2062 = vmatprep.subr.bf16.mxu0 %v1780
    %2063 = vmatpush1.bf16.msra.mxu0 %v1779
    %2064 = vmatprep.subr.bf16.mxu0 %v1777
    %2065 = vmatpush1.bf16.msra.mxu0 %v1776
    %2066 = vmatprep.subr.bf16.mxu0 0
    %2067 = vmatpush2.bf16.msra.mxu0 0
    %2068 = vmatprep.subr.bf16.mxu0 0
    %2069 = vmatpush2.bf16.msra.mxu0 0
    %2070 = vmatprep.subr.bf16.mxu0 0
    %2071 = vmatpush2.bf16.msra.mxu0 0
    %2072 = vmatprep.subr.bf16.mxu0 0
    %2073 = vmatpush2.bf16.msra.mxu0 0
    %2074 = vmatprep.subr.bf16.mxu0 0
    %2075 = vmatpush2.bf16.msra.mxu0 0
    %2076 = vmatprep.subr.bf16.mxu0 0
    %2077 = vmatpush2.bf16.msra.mxu0 0
    %2078 = vmatprep.subr.bf16.mxu0 0
    %2079 = vmatpush2.bf16.msra.mxu0 0
    %2080 = vmatprep.subr.bf16.mxu0 0
    %2081 = vmatpush2.bf16.msra.mxu0 0
    %2082 = vmatprep.mubr.bf16.mxu0 0
    %2083 = vmatmul.mubr.bf16.gmra.mxu0 %v2049
    %v2084 = vpop.f32.mrf.mxu0
    %v2085 = vadd.f32 %v1677, %v2084
    %v2086 = vpop.f32.mrf.mxu0
    %v2087 = vadd.f32 %v1681, %v2086
    %v2088 = vpop.f32.mrf.mxu0
    %v2089 = vpop.f32.mrf.mxu0
    %2090 = vdwg.mxu0
    %2091 = vmatprep.subr.bf16.mxu0 0
    %2092 = vmatpush1.bf16.msra.mxu0 %v1799
    %2093 = vmatprep.subr.bf16.mxu0 0
    %2094 = vmatpush1.bf16.msra.mxu0 %v1796
    %2095 = vmatprep.subr.bf16.mxu0 0
    %2096 = vmatpush1.bf16.msra.mxu0 %v1793
    %2097 = vmatprep.subr.bf16.mxu0 0
    %2098 = vmatpush1.bf16.msra.mxu0 %v1790
    %2099 = vmatprep.subr.bf16.mxu0 0
    %2100 = vmatpush1.bf16.msra.mxu0 %v1787
    %2101 = vmatprep.subr.bf16.mxu0 0
    %2102 = vmatpush1.bf16.msra.mxu0 %v1784
    %2103 = vmatprep.subr.bf16.mxu0 0
    %2104 = vmatpush1.bf16.msra.mxu0 %v1781
    %2105 = vmatprep.subr.bf16.mxu0 0
    %2106 = vmatpush1.bf16.msra.mxu0 %v1778
    %2107 = vmatprep.subr.bf16.mxu0 0
    %2108 = vmatpush2.bf16.msra.mxu0 0
    %2109 = vmatprep.subr.bf16.mxu0 0
    %2110 = vmatpush2.bf16.msra.mxu0 0
    %2111 = vmatprep.subr.bf16.mxu0 0
    %2112 = vmatpush2.bf16.msra.mxu0 0
    %2113 = vmatprep.subr.bf16.mxu0 0
    %2114 = vmatpush2.bf16.msra.mxu0 0
    %2115 = vmatprep.subr.bf16.mxu0 0
    %2116 = vmatpush2.bf16.msra.mxu0 0
    %2117 = vmatprep.subr.bf16.mxu0 0
    %2118 = vmatpush2.bf16.msra.mxu0 0
    %2119 = vmatprep.subr.bf16.mxu0 0
    %2120 = vmatpush2.bf16.msra.mxu0 0
    %2121 = vmatprep.subr.bf16.mxu0 0
    %2122 = vmatpush2.bf16.msra.mxu0 0
    %2123 = vmatprep.mubr.bf16.mxu0 0
    %2124 = vmatmul.mubr.bf16.gmra.mxu0 %v2049
    %v2125 = vpop.f32.mrf.mxu0
    %v2126 = vadd.f32 %v1685, %v2125
    %v2127 = vpop.f32.mrf.mxu0
    %v2128 = vpop.f32.mrf.mxu0
    %v2129 = vpop.f32.mrf.mxu0
    %2130 = vdwg.mxu0
    %v2131 = vunpack.c.l.bf16 %v2047
    %v2132 = vadd.f32 %v2131, %v2085
    %v2133 = vxor.u32 %v2132, 2147483648
    %v2134 = vmul.f32 %v2133, 1.442695
    %v2135 = vpow.pop %v2134
    %v2136 = vadd.f32 %v2135, 1.0
    %v2137 = vrcp.pop %v2136
    %v2138 = vmul.f32 1.0, %v2137
    %v2140 = vrot.slane %v2047, 4
    %v2142 = vunpack.c.l.bf16 %v2140
    %v2143 = vadd.f32 %v2142, %v2087
    %v2144 = vxor.u32 %v2143, 2147483648
    %v2145 = vmul.f32 %v2144, 1.442695
    %v2146 = vpow.pop %v2145
    %v2147 = vadd.f32 %v2146, 1.0
    %v2148 = vrcp.pop %v2147
    %v2149 = vmul.f32 1.0, %v2148
    %v2150 = vmul.f32 %v2138, %v2126
    %v2151 = vunpack.c.l.bf16 %v2048
    %v2152 = vadd.f32 %v2151, %v2150
    %v2153 = vtanh.pop %v2152
    %v2154 = vsub.f32 1.0, %v2149
    %v2155 = vmul.f32 %v2154, %v2153
    %v2156 = vmul.f32 %v2149, %v2044
    %v2157 = vadd.f32 %v2155, %v2156
    %s2158 = smul.addr %s614, 4
    %s2159 = scalar_lea.vmem [#allocation4], %s2158
    %v2160 = vld [vmem:[%s2159] sm:$0xff]
    %v2161 = vld [vmem:[%s2159 + $0x8] sm:$0xf]
    %v2162 = vpack.c.bf16 %v2157, %v2157
    %2163 = vmatprep.subr.bf16.mxu0 %v1798
    %2164 = vmatpush1.bf16.msra.mxu0 %v1797
    %2165 = vmatprep.subr.bf16.mxu0 %v1795
    %2166 = vmatpush1.bf16.msra.mxu0 %v1794
    %2167 = vmatprep.subr.bf16.mxu0 %v1792
    %2168 = vmatpush1.bf16.msra.mxu0 %v1791
    %2169 = vmatprep.subr.bf16.mxu0 %v1789
    %2170 = vmatpush1.bf16.msra.mxu0 %v1788
    %2171 = vmatprep.subr.bf16.mxu0 %v1786
    %2172 = vmatpush1.bf16.msra.mxu0 %v1785
    %2173 = vmatprep.subr.bf16.mxu0 %v1783
    %2174 = vmatpush1.bf16.msra.mxu0 %v1782
    %2175 = vmatprep.subr.bf16.mxu0 %v1780
    %2176 = vmatpush1.bf16.msra.mxu0 %v1779
    %2177 = vmatprep.subr.bf16.mxu0 %v1777
    %2178 = vmatpush1.bf16.msra.mxu0 %v1776
    %2179 = vmatprep.subr.bf16.mxu0 0
    %2180 = vmatpush2.bf16.msra.mxu0 0
    %2181 = vmatprep.subr.bf16.mxu0 0
    %2182 = vmatpush2.bf16.msra.mxu0 0
    %2183 = vmatprep.subr.bf16.mxu0 0
    %2184 = vmatpush2.bf16.msra.mxu0 0
    %2185 = vmatprep.subr.bf16.mxu0 0
    %2186 = vmatpush2.bf16.msra.mxu0 0
    %2187 = vmatprep.subr.bf16.mxu0 0
    %2188 = vmatpush2.bf16.msra.mxu0 0
    %2189 = vmatprep.subr.bf16.mxu0 0
    %2190 = vmatpush2.bf16.msra.mxu0 0
    %2191 = vmatprep.subr.bf16.mxu0 0
    %2192 = vmatpush2.bf16.msra.mxu0 0
    %2193 = vmatprep.subr.bf16.mxu0 0
    %2194 = vmatpush2.bf16.msra.mxu0 0
    %2195 = vmatprep.mubr.bf16.mxu0 0
    %2196 = vmatmul.mubr.bf16.gmra.mxu0 %v2162
    %v2197 = vpop.f32.mrf.mxu0
    %v2198 = vadd.f32 %v1677, %v2197
    %v2199 = vpop.f32.mrf.mxu0
    %v2200 = vadd.f32 %v1681, %v2199
    %v2201 = vpop.f32.mrf.mxu0
    %v2202 = vpop.f32.mrf.mxu0
    %2203 = vdwg.mxu0
    %2204 = vmatprep.subr.bf16.mxu0 0
    %2205 = vmatpush1.bf16.msra.mxu0 %v1799
    %2206 = vmatprep.subr.bf16.mxu0 0
    %2207 = vmatpush1.bf16.msra.mxu0 %v1796
    %2208 = vmatprep.subr.bf16.mxu0 0
    %2209 = vmatpush1.bf16.msra.mxu0 %v1793
    %2210 = vmatprep.subr.bf16.mxu0 0
    %2211 = vmatpush1.bf16.msra.mxu0 %v1790
    %2212 = vmatprep.subr.bf16.mxu0 0
    %2213 = vmatpush1.bf16.msra.mxu0 %v1787
    %2214 = vmatprep.subr.bf16.mxu0 0
    %2215 = vmatpush1.bf16.msra.mxu0 %v1784
    %2216 = vmatprep.subr.bf16.mxu0 0
    %2217 = vmatpush1.bf16.msra.mxu0 %v1781
    %2218 = vmatprep.subr.bf16.mxu0 0
    %2219 = vmatpush1.bf16.msra.mxu0 %v1778
    %2220 = vmatprep.subr.bf16.mxu0 0
    %2221 = vmatpush2.bf16.msra.mxu0 0
    %2222 = vmatprep.subr.bf16.mxu0 0
    %2223 = vmatpush2.bf16.msra.mxu0 0
    %2224 = vmatprep.subr.bf16.mxu0 0
    %2225 = vmatpush2.bf16.msra.mxu0 0
    %2226 = vmatprep.subr.bf16.mxu0 0
    %2227 = vmatpush2.bf16.msra.mxu0 0
    %2228 = vmatprep.subr.bf16.mxu0 0
    %2229 = vmatpush2.bf16.msra.mxu0 0
    %2230 = vmatprep.subr.bf16.mxu0 0
    %2231 = vmatpush2.bf16.msra.mxu0 0
    %2232 = vmatprep.subr.bf16.mxu0 0
    %2233 = vmatpush2.bf16.msra.mxu0 0
    %2234 = vmatprep.subr.bf16.mxu0 0
    %2235 = vmatpush2.bf16.msra.mxu0 0
    %2236 = vmatprep.mubr.bf16.mxu0 0
    %2237 = vmatmul.mubr.bf16.gmra.mxu0 %v2162
    %v2238 = vpop.f32.mrf.mxu0
    %v2239 = vadd.f32 %v1685, %v2238
    %v2240 = vpop.f32.mrf.mxu0
    %v2241 = vpop.f32.mrf.mxu0
    %v2242 = vpop.f32.mrf.mxu0
    %2243 = vdwg.mxu0
    %v2244 = vunpack.c.l.bf16 %v2160
    %v2245 = vadd.f32 %v2244, %v2198
    %v2246 = vxor.u32 %v2245, 2147483648
    %v2247 = vmul.f32 %v2246, 1.442695
    %v2248 = vpow.pop %v2247
    %v2249 = vadd.f32 %v2248, 1.0
    %v2250 = vrcp.pop %v2249
    %v2251 = vmul.f32 1.0, %v2250
    %v2253 = vrot.slane %v2160, 4
    %v2255 = vunpack.c.l.bf16 %v2253
    %v2256 = vadd.f32 %v2255, %v2200
    %v2257 = vxor.u32 %v2256, 2147483648
    %v2258 = vmul.f32 %v2257, 1.442695
    %v2259 = vpow.pop %v2258
    %v2260 = vadd.f32 %v2259, 1.0
    %v2261 = vrcp.pop %v2260
    %v2262 = vmul.f32 1.0, %v2261
    %v2263 = vmul.f32 %v2251, %v2239
    %v2264 = vunpack.c.l.bf16 %v2161
    %v2265 = vadd.f32 %v2264, %v2263
    %v2266 = vtanh.pop %v2265
    %v2267 = vsub.f32 1.0, %v2262
    %v2268 = vmul.f32 %v2267, %v2266
    %v2269 = vmul.f32 %v2262, %v2157
    %v2270 = vadd.f32 %v2268, %v2269
    %s2271 = smul.addr %s730, 4
    %s2272 = scalar_lea.vmem [#allocation4], %s2271
    %v2273 = vld [vmem:[%s2272] sm:$0xff]
    %v2274 = vld [vmem:[%s2272 + $0x8] sm:$0xf]
    %v2275 = vpack.c.bf16 %v2270, %v2270
    %2276 = vmatprep.subr.bf16.mxu0 %v1798
    %2277 = vmatpush1.bf16.msra.mxu0 %v1797
    %2278 = vmatprep.subr.bf16.mxu0 %v1795
    %2279 = vmatpush1.bf16.msra.mxu0 %v1794
    %2280 = vmatprep.subr.bf16.mxu0 %v1792
    %2281 = vmatpush1.bf16.msra.mxu0 %v1791
    %2282 = vmatprep.subr.bf16.mxu0 %v1789
    %2283 = vmatpush1.bf16.msra.mxu0 %v1788
    %2284 = vmatprep.subr.bf16.mxu0 %v1786
    %2285 = vmatpush1.bf16.msra.mxu0 %v1785
    %2286 = vmatprep.subr.bf16.mxu0 %v1783
    %2287 = vmatpush1.bf16.msra.mxu0 %v1782
    %2288 = vmatprep.subr.bf16.mxu0 %v1780
    %2289 = vmatpush1.bf16.msra.mxu0 %v1779
    %2290 = vmatprep.subr.bf16.mxu0 %v1777
    %2291 = vmatpush1.bf16.msra.mxu0 %v1776
    %2292 = vmatprep.subr.bf16.mxu0 0
    %2293 = vmatpush2.bf16.msra.mxu0 0
    %2294 = vmatprep.subr.bf16.mxu0 0
    %2295 = vmatpush2.bf16.msra.mxu0 0
    %2296 = vmatprep.subr.bf16.mxu0 0
    %2297 = vmatpush2.bf16.msra.mxu0 0
    %2298 = vmatprep.subr.bf16.mxu0 0
    %2299 = vmatpush2.bf16.msra.mxu0 0
    %2300 = vmatprep.subr.bf16.mxu0 0
    %2301 = vmatpush2.bf16.msra.mxu0 0
    %2302 = vmatprep.subr.bf16.mxu0 0
    %2303 = vmatpush2.bf16.msra.mxu0 0
    %2304 = vmatprep.subr.bf16.mxu0 0
    %2305 = vmatpush2.bf16.msra.mxu0 0
    %2306 = vmatprep.subr.bf16.mxu0 0
    %2307 = vmatpush2.bf16.msra.mxu0 0
    %2308 = vmatprep.mubr.bf16.mxu0 0
    %2309 = vmatmul.mubr.bf16.gmra.mxu0 %v2275
    %v2310 = vpop.f32.mrf.mxu0
    %v2311 = vadd.f32 %v1677, %v2310
    %v2312 = vpop.f32.mrf.mxu0
    %v2313 = vadd.f32 %v1681, %v2312
    %v2314 = vpop.f32.mrf.mxu0
    %v2315 = vpop.f32.mrf.mxu0
    %2316 = vdwg.mxu0
    %2317 = vmatprep.subr.bf16.mxu0 0
    %2318 = vmatpush1.bf16.msra.mxu0 %v1799
    %2319 = vmatprep.subr.bf16.mxu0 0
    %2320 = vmatpush1.bf16.msra.mxu0 %v1796
    %2321 = vmatprep.subr.bf16.mxu0 0
    %2322 = vmatpush1.bf16.msra.mxu0 %v1793
    %2323 = vmatprep.subr.bf16.mxu0 0
    %2324 = vmatpush1.bf16.msra.mxu0 %v1790
    %2325 = vmatprep.subr.bf16.mxu0 0
    %2326 = vmatpush1.bf16.msra.mxu0 %v1787
    %2327 = vmatprep.subr.bf16.mxu0 0
    %2328 = vmatpush1.bf16.msra.mxu0 %v1784
    %2329 = vmatprep.subr.bf16.mxu0 0
    %2330 = vmatpush1.bf16.msra.mxu0 %v1781
    %2331 = vmatprep.subr.bf16.mxu0 0
    %2332 = vmatpush1.bf16.msra.mxu0 %v1778
    %2333 = vmatprep.subr.bf16.mxu0 0
    %2334 = vmatpush2.bf16.msra.mxu0 0
    %2335 = vmatprep.subr.bf16.mxu0 0
    %2336 = vmatpush2.bf16.msra.mxu0 0
    %2337 = vmatprep.subr.bf16.mxu0 0
    %2338 = vmatpush2.bf16.msra.mxu0 0
    %2339 = vmatprep.subr.bf16.mxu0 0
    %2340 = vmatpush2.bf16.msra.mxu0 0
    %2341 = vmatprep.subr.bf16.mxu0 0
    %2342 = vmatpush2.bf16.msra.mxu0 0
    %2343 = vmatprep.subr.bf16.mxu0 0
    %2344 = vmatpush2.bf16.msra.mxu0 0
    %2345 = vmatprep.subr.bf16.mxu0 0
    %2346 = vmatpush2.bf16.msra.mxu0 0
    %2347 = vmatprep.subr.bf16.mxu0 0
    %2348 = vmatpush2.bf16.msra.mxu0 0
    %2349 = vmatprep.mubr.bf16.mxu0 0
    %2350 = vmatmul.mubr.bf16.gmra.mxu0 %v2275
    %v2351 = vpop.f32.mrf.mxu0
    %v2352 = vadd.f32 %v1685, %v2351
    %v2353 = vpop.f32.mrf.mxu0
    %v2354 = vpop.f32.mrf.mxu0
    %v2355 = vpop.f32.mrf.mxu0
    %2356 = vdwg.mxu0
    %v2357 = vunpack.c.l.bf16 %v2273
    %v2358 = vadd.f32 %v2357, %v2311
    %v2359 = vxor.u32 %v2358, 2147483648
    %v2360 = vmul.f32 %v2359, 1.442695
    %v2361 = vpow.pop %v2360
    %v2362 = vadd.f32 %v2361, 1.0
    %v2363 = vrcp.pop %v2362
    %v2364 = vmul.f32 1.0, %v2363
    %v2366 = vrot.slane %v2273, 4
    %v2368 = vunpack.c.l.bf16 %v2366
    %v2369 = vadd.f32 %v2368, %v2313
    %v2370 = vxor.u32 %v2369, 2147483648
    %v2371 = vmul.f32 %v2370, 1.442695
    %v2372 = vpow.pop %v2371
    %v2373 = vadd.f32 %v2372, 1.0
    %v2374 = vrcp.pop %v2373
    %v2375 = vmul.f32 1.0, %v2374
    %v2376 = vmul.f32 %v2364, %v2352
    %v2377 = vunpack.c.l.bf16 %v2274
    %v2378 = vadd.f32 %v2377, %v2376
    %v2379 = vtanh.pop %v2378
    %v2380 = vsub.f32 1.0, %v2375
    %v2381 = vmul.f32 %v2380, %v2379
    %v2382 = vmul.f32 %v2375, %v2270
    %v2383 = vadd.f32 %v2381, %v2382
    %s2384 = smul.addr %s846, 4
    %s2385 = scalar_lea.vmem [#allocation4], %s2384
    %v2386 = vld [vmem:[%s2385] sm:$0xff]
    %v2387 = vld [vmem:[%s2385 + $0x8] sm:$0xf]
    %v2388 = vpack.c.bf16 %v2383, %v2383
    %2389 = vmatprep.subr.bf16.mxu0 %v1798
    %2390 = vmatpush1.bf16.msra.mxu0 %v1797
    %2391 = vmatprep.subr.bf16.mxu0 %v1795
    %2392 = vmatpush1.bf16.msra.mxu0 %v1794
    %2393 = vmatprep.subr.bf16.mxu0 %v1792
    %2394 = vmatpush1.bf16.msra.mxu0 %v1791
    %2395 = vmatprep.subr.bf16.mxu0 %v1789
    %2396 = vmatpush1.bf16.msra.mxu0 %v1788
    %2397 = vmatprep.subr.bf16.mxu0 %v1786
    %2398 = vmatpush1.bf16.msra.mxu0 %v1785
    %2399 = vmatprep.subr.bf16.mxu0 %v1783
    %2400 = vmatpush1.bf16.msra.mxu0 %v1782
    %2401 = vmatprep.subr.bf16.mxu0 %v1780
    %2402 = vmatpush1.bf16.msra.mxu0 %v1779
    %2403 = vmatprep.subr.bf16.mxu0 %v1777
    %2404 = vmatpush1.bf16.msra.mxu0 %v1776
    %2405 = vmatprep.subr.bf16.mxu0 0
    %2406 = vmatpush2.bf16.msra.mxu0 0
    %2407 = vmatprep.subr.bf16.mxu0 0
    %2408 = vmatpush2.bf16.msra.mxu0 0
    %2409 = vmatprep.subr.bf16.mxu0 0
    %2410 = vmatpush2.bf16.msra.mxu0 0
    %2411 = vmatprep.subr.bf16.mxu0 0
    %2412 = vmatpush2.bf16.msra.mxu0 0
    %2413 = vmatprep.subr.bf16.mxu0 0
    %2414 = vmatpush2.bf16.msra.mxu0 0
    %2415 = vmatprep.subr.bf16.mxu0 0
    %2416 = vmatpush2.bf16.msra.mxu0 0
    %2417 = vmatprep.subr.bf16.mxu0 0
    %2418 = vmatpush2.bf16.msra.mxu0 0
    %2419 = vmatprep.subr.bf16.mxu0 0
    %2420 = vmatpush2.bf16.msra.mxu0 0
    %2421 = vmatprep.mubr.bf16.mxu0 0
    %2422 = vmatmul.mubr.bf16.gmra.mxu0 %v2388
    %v2423 = vpop.f32.mrf.mxu0
    %v2424 = vadd.f32 %v1677, %v2423
    %v2425 = vpop.f32.mrf.mxu0
    %v2426 = vadd.f32 %v1681, %v2425
    %v2427 = vpop.f32.mrf.mxu0
    %v2428 = vpop.f32.mrf.mxu0
    %2429 = vdwg.mxu0
    %2430 = vmatprep.subr.bf16.mxu0 0
    %2431 = vmatpush1.bf16.msra.mxu0 %v1799
    %2432 = vmatprep.subr.bf16.mxu0 0
    %2433 = vmatpush1.bf16.msra.mxu0 %v1796
    %2434 = vmatprep.subr.bf16.mxu0 0
    %2435 = vmatpush1.bf16.msra.mxu0 %v1793
    %2436 = vmatprep.subr.bf16.mxu0 0
    %2437 = vmatpush1.bf16.msra.mxu0 %v1790
    %2438 = vmatprep.subr.bf16.mxu0 0
    %2439 = vmatpush1.bf16.msra.mxu0 %v1787
    %2440 = vmatprep.subr.bf16.mxu0 0
    %2441 = vmatpush1.bf16.msra.mxu0 %v1784
    %2442 = vmatprep.subr.bf16.mxu0 0
    %2443 = vmatpush1.bf16.msra.mxu0 %v1781
    %2444 = vmatprep.subr.bf16.mxu0 0
    %2445 = vmatpush1.bf16.msra.mxu0 %v1778
    %2446 = vmatprep.subr.bf16.mxu0 0
    %2447 = vmatpush2.bf16.msra.mxu0 0
    %2448 = vmatprep.subr.bf16.mxu0 0
    %2449 = vmatpush2.bf16.msra.mxu0 0
    %2450 = vmatprep.subr.bf16.mxu0 0
    %2451 = vmatpush2.bf16.msra.mxu0 0
    %2452 = vmatprep.subr.bf16.mxu0 0
    %2453 = vmatpush2.bf16.msra.mxu0 0
    %2454 = vmatprep.subr.bf16.mxu0 0
    %2455 = vmatpush2.bf16.msra.mxu0 0
    %2456 = vmatprep.subr.bf16.mxu0 0
    %2457 = vmatpush2.bf16.msra.mxu0 0
    %2458 = vmatprep.subr.bf16.mxu0 0
    %2459 = vmatpush2.bf16.msra.mxu0 0
    %2460 = vmatprep.subr.bf16.mxu0 0
    %2461 = vmatpush2.bf16.msra.mxu0 0
    %2462 = vmatprep.mubr.bf16.mxu0 0
    %2463 = vmatmul.mubr.bf16.gmra.mxu0 %v2388
    %v2464 = vpop.f32.mrf.mxu0
    %v2465 = vadd.f32 %v1685, %v2464
    %v2466 = vpop.f32.mrf.mxu0
    %v2467 = vpop.f32.mrf.mxu0
    %v2468 = vpop.f32.mrf.mxu0
    %2469 = vdwg.mxu0
    %v2470 = vunpack.c.l.bf16 %v2386
    %v2471 = vadd.f32 %v2470, %v2424
    %v2472 = vxor.u32 %v2471, 2147483648
    %v2473 = vmul.f32 %v2472, 1.442695
    %v2474 = vpow.pop %v2473
    %v2475 = vadd.f32 %v2474, 1.0
    %v2476 = vrcp.pop %v2475
    %v2477 = vmul.f32 1.0, %v2476
    %v2479 = vrot.slane %v2386, 4
    %v2481 = vunpack.c.l.bf16 %v2479
    %v2482 = vadd.f32 %v2481, %v2426
    %v2483 = vxor.u32 %v2482, 2147483648
    %v2484 = vmul.f32 %v2483, 1.442695
    %v2485 = vpow.pop %v2484
    %v2486 = vadd.f32 %v2485, 1.0
    %v2487 = vrcp.pop %v2486
    %v2488 = vmul.f32 1.0, %v2487
    %v2489 = vmul.f32 %v2477, %v2465
    %v2490 = vunpack.c.l.bf16 %v2387
    %v2491 = vadd.f32 %v2490, %v2489
    %v2492 = vtanh.pop %v2491
    %v2493 = vsub.f32 1.0, %v2488
    %v2494 = vmul.f32 %v2493, %v2492
    %v2495 = vmul.f32 %v2488, %v2383
    %v2496 = vadd.f32 %v2494, %v2495
    %s2497 = smul.addr %s962, 4
    %s2498 = scalar_lea.vmem [#allocation4], %s2497
    %v2499 = vld [vmem:[%s2498] sm:$0xff]
    %v2500 = vld [vmem:[%s2498 + $0x8] sm:$0xf]
    %v2501 = vpack.c.bf16 %v2496, %v2496
    %2502 = vmatprep.subr.bf16.mxu0 %v1798
    %2503 = vmatpush1.bf16.msra.mxu0 %v1797
    %2504 = vmatprep.subr.bf16.mxu0 %v1795
    %2505 = vmatpush1.bf16.msra.mxu0 %v1794
    %2506 = vmatprep.subr.bf16.mxu0 %v1792
    %2507 = vmatpush1.bf16.msra.mxu0 %v1791
    %2508 = vmatprep.subr.bf16.mxu0 %v1789
    %2509 = vmatpush1.bf16.msra.mxu0 %v1788
    %2510 = vmatprep.subr.bf16.mxu0 %v1786
    %2511 = vmatpush1.bf16.msra.mxu0 %v1785
    %2512 = vmatprep.subr.bf16.mxu0 %v1783
    %2513 = vmatpush1.bf16.msra.mxu0 %v1782
    %2514 = vmatprep.subr.bf16.mxu0 %v1780
    %2515 = vmatpush1.bf16.msra.mxu0 %v1779
    %2516 = vmatprep.subr.bf16.mxu0 %v1777
    %2517 = vmatpush1.bf16.msra.mxu0 %v1776
    %2518 = vmatprep.subr.bf16.mxu0 0
    %2519 = vmatpush2.bf16.msra.mxu0 0
    %2520 = vmatprep.subr.bf16.mxu0 0
    %2521 = vmatpush2.bf16.msra.mxu0 0
    %2522 = vmatprep.subr.bf16.mxu0 0
    %2523 = vmatpush2.bf16.msra.mxu0 0
    %2524 = vmatprep.subr.bf16.mxu0 0
    %2525 = vmatpush2.bf16.msra.mxu0 0
    %2526 = vmatprep.subr.bf16.mxu0 0
    %2527 = vmatpush2.bf16.msra.mxu0 0
    %2528 = vmatprep.subr.bf16.mxu0 0
    %2529 = vmatpush2.bf16.msra.mxu0 0
    %2530 = vmatprep.subr.bf16.mxu0 0
    %2531 = vmatpush2.bf16.msra.mxu0 0
    %2532 = vmatprep.subr.bf16.mxu0 0
    %2533 = vmatpush2.bf16.msra.mxu0 0
    %2534 = vmatprep.mubr.bf16.mxu0 0
    %2535 = vmatmul.mubr.bf16.gmra.mxu0 %v2501
    %v2536 = vpop.f32.mrf.mxu0
    %v2537 = vadd.f32 %v1677, %v2536
    %v2538 = vpop.f32.mrf.mxu0
    %v2539 = vadd.f32 %v1681, %v2538
    %v2540 = vpop.f32.mrf.mxu0
    %v2541 = vpop.f32.mrf.mxu0
    %2542 = vdwg.mxu0
    %2543 = vmatprep.subr.bf16.mxu0 0
    %2544 = vmatpush1.bf16.msra.mxu0 %v1799
    %2545 = vmatprep.subr.bf16.mxu0 0
    %2546 = vmatpush1.bf16.msra.mxu0 %v1796
    %2547 = vmatprep.subr.bf16.mxu0 0
    %2548 = vmatpush1.bf16.msra.mxu0 %v1793
    %2549 = vmatprep.subr.bf16.mxu0 0
    %2550 = vmatpush1.bf16.msra.mxu0 %v1790
    %2551 = vmatprep.subr.bf16.mxu0 0
    %2552 = vmatpush1.bf16.msra.mxu0 %v1787
    %2553 = vmatprep.subr.bf16.mxu0 0
    %2554 = vmatpush1.bf16.msra.mxu0 %v1784
    %2555 = vmatprep.subr.bf16.mxu0 0
    %2556 = vmatpush1.bf16.msra.mxu0 %v1781
    %2557 = vmatprep.subr.bf16.mxu0 0
    %2558 = vmatpush1.bf16.msra.mxu0 %v1778
    %2559 = vmatprep.subr.bf16.mxu0 0
    %2560 = vmatpush2.bf16.msra.mxu0 0
    %2561 = vmatprep.subr.bf16.mxu0 0
    %2562 = vmatpush2.bf16.msra.mxu0 0
    %2563 = vmatprep.subr.bf16.mxu0 0
    %2564 = vmatpush2.bf16.msra.mxu0 0
    %2565 = vmatprep.subr.bf16.mxu0 0
    %2566 = vmatpush2.bf16.msra.mxu0 0
    %2567 = vmatprep.subr.bf16.mxu0 0
    %2568 = vmatpush2.bf16.msra.mxu0 0
    %2569 = vmatprep.subr.bf16.mxu0 0
    %2570 = vmatpush2.bf16.msra.mxu0 0
    %2571 = vmatprep.subr.bf16.mxu0 0
    %2572 = vmatpush2.bf16.msra.mxu0 0
    %2573 = vmatprep.subr.bf16.mxu0 0
    %2574 = vmatpush2.bf16.msra.mxu0 0
    %2575 = vmatprep.mubr.bf16.mxu0 0
    %2576 = vmatmul.mubr.bf16.gmra.mxu0 %v2501
    %v2577 = vpop.f32.mrf.mxu0
    %v2578 = vadd.f32 %v1685, %v2577
    %v2579 = vpop.f32.mrf.mxu0
    %v2580 = vpop.f32.mrf.mxu0
    %v2581 = vpop.f32.mrf.mxu0
    %2582 = vdwg.mxu0
    %v2583 = vunpack.c.l.bf16 %v2499
    %v2584 = vadd.f32 %v2583, %v2537
    %v2585 = vxor.u32 %v2584, 2147483648
    %v2586 = vmul.f32 %v2585, 1.442695
    %v2587 = vpow.pop %v2586
    %v2588 = vadd.f32 %v2587, 1.0
    %v2589 = vrcp.pop %v2588
    %v2590 = vmul.f32 1.0, %v2589
    %v2592 = vrot.slane %v2499, 4
    %v2594 = vunpack.c.l.bf16 %v2592
    %v2595 = vadd.f32 %v2594, %v2539
    %v2596 = vxor.u32 %v2595, 2147483648
    %v2597 = vmul.f32 %v2596, 1.442695
    %v2598 = vpow.pop %v2597
    %v2599 = vadd.f32 %v2598, 1.0
    %v2600 = vrcp.pop %v2599
    %v2601 = vmul.f32 1.0, %v2600
    %v2602 = vmul.f32 %v2590, %v2578
    %v2603 = vunpack.c.l.bf16 %v2500
    %v2604 = vadd.f32 %v2603, %v2602
    %v2605 = vtanh.pop %v2604
    %v2606 = vsub.f32 1.0, %v2601
    %v2607 = vmul.f32 %v2606, %v2605
    %v2608 = vmul.f32 %v2601, %v2496
    %v2609 = vadd.f32 %v2607, %v2608
    %s2610 = smul.addr %s1078, 4
    %s2611 = scalar_lea.vmem [#allocation4], %s2610
    %v2612 = vld [vmem:[%s2611] sm:$0xff]
    %v2613 = vld [vmem:[%s2611 + $0x8] sm:$0xf]
    %v2614 = vpack.c.bf16 %v2609, %v2609
    %2615 = vmatprep.subr.bf16.mxu0 %v1798
    %2616 = vmatpush1.bf16.msra.mxu0 %v1797
    %2617 = vmatprep.subr.bf16.mxu0 %v1795
    %2618 = vmatpush1.bf16.msra.mxu0 %v1794
    %2619 = vmatprep.subr.bf16.mxu0 %v1792
    %2620 = vmatpush1.bf16.msra.mxu0 %v1791
    %2621 = vmatprep.subr.bf16.mxu0 %v1789
    %2622 = vmatpush1.bf16.msra.mxu0 %v1788
    %2623 = vmatprep.subr.bf16.mxu0 %v1786
    %2624 = vmatpush1.bf16.msra.mxu0 %v1785
    %2625 = vmatprep.subr.bf16.mxu0 %v1783
    %2626 = vmatpush1.bf16.msra.mxu0 %v1782
    %2627 = vmatprep.subr.bf16.mxu0 %v1780
    %2628 = vmatpush1.bf16.msra.mxu0 %v1779
    %2629 = vmatprep.subr.bf16.mxu0 %v1777
    %2630 = vmatpush1.bf16.msra.mxu0 %v1776
    %2631 = vmatprep.subr.bf16.mxu0 0
    %2632 = vmatpush2.bf16.msra.mxu0 0
    %2633 = vmatprep.subr.bf16.mxu0 0
    %2634 = vmatpush2.bf16.msra.mxu0 0
    %2635 = vmatprep.subr.bf16.mxu0 0
    %2636 = vmatpush2.bf16.msra.mxu0 0
    %2637 = vmatprep.subr.bf16.mxu0 0
    %2638 = vmatpush2.bf16.msra.mxu0 0
    %2639 = vmatprep.subr.bf16.mxu0 0
    %2640 = vmatpush2.bf16.msra.mxu0 0
    %2641 = vmatprep.subr.bf16.mxu0 0
    %2642 = vmatpush2.bf16.msra.mxu0 0
    %2643 = vmatprep.subr.bf16.mxu0 0
    %2644 = vmatpush2.bf16.msra.mxu0 0
    %2645 = vmatprep.subr.bf16.mxu0 0
    %2646 = vmatpush2.bf16.msra.mxu0 0
    %2647 = vmatprep.mubr.bf16.mxu0 0
    %2648 = vmatmul.mubr.bf16.gmra.mxu0 %v2614
    %v2649 = vpop.f32.mrf.mxu0
    %v2650 = vadd.f32 %v1677, %v2649
    %v2651 = vpop.f32.mrf.mxu0
    %v2652 = vadd.f32 %v1681, %v2651
    %v2653 = vpop.f32.mrf.mxu0
    %v2654 = vpop.f32.mrf.mxu0
    %2655 = vdwg.mxu0
    %2656 = vmatprep.subr.bf16.mxu0 0
    %2657 = vmatpush1.bf16.msra.mxu0 %v1799
    %2658 = vmatprep.subr.bf16.mxu0 0
    %2659 = vmatpush1.bf16.msra.mxu0 %v1796
    %2660 = vmatprep.subr.bf16.mxu0 0
    %2661 = vmatpush1.bf16.msra.mxu0 %v1793
    %2662 = vmatprep.subr.bf16.mxu0 0
    %2663 = vmatpush1.bf16.msra.mxu0 %v1790
    %2664 = vmatprep.subr.bf16.mxu0 0
    %2665 = vmatpush1.bf16.msra.mxu0 %v1787
    %2666 = vmatprep.subr.bf16.mxu0 0
    %2667 = vmatpush1.bf16.msra.mxu0 %v1784
    %2668 = vmatprep.subr.bf16.mxu0 0
    %2669 = vmatpush1.bf16.msra.mxu0 %v1781
    %2670 = vmatprep.subr.bf16.mxu0 0
    %2671 = vmatpush1.bf16.msra.mxu0 %v1778
    %2672 = vmatprep.subr.bf16.mxu0 0
    %2673 = vmatpush2.bf16.msra.mxu0 0
    %2674 = vmatprep.subr.bf16.mxu0 0
    %2675 = vmatpush2.bf16.msra.mxu0 0
    %2676 = vmatprep.subr.bf16.mxu0 0
    %2677 = vmatpush2.bf16.msra.mxu0 0
    %2678 = vmatprep.subr.bf16.mxu0 0
    %2679 = vmatpush2.bf16.msra.mxu0 0
    %2680 = vmatprep.subr.bf16.mxu0 0
    %2681 = vmatpush2.bf16.msra.mxu0 0
    %2682 = vmatprep.subr.bf16.mxu0 0
    %2683 = vmatpush2.bf16.msra.mxu0 0
    %2684 = vmatprep.subr.bf16.mxu0 0
    %2685 = vmatpush2.bf16.msra.mxu0 0
    %2686 = vmatprep.subr.bf16.mxu0 0
    %2687 = vmatpush2.bf16.msra.mxu0 0
    %2688 = vmatprep.mubr.bf16.mxu0 0
    %2689 = vmatmul.mubr.bf16.gmra.mxu0 %v2614
    %v2690 = vpop.f32.mrf.mxu0
    %v2691 = vadd.f32 %v1685, %v2690
    %v2692 = vpop.f32.mrf.mxu0
    %v2693 = vpop.f32.mrf.mxu0
    %v2694 = vpop.f32.mrf.mxu0
    %2695 = vdwg.mxu0
    %v2696 = vunpack.c.l.bf16 %v2612
    %v2697 = vadd.f32 %v2696, %v2650
    %v2698 = vxor.u32 %v2697, 2147483648
    %v2699 = vmul.f32 %v2698, 1.442695
    %v2700 = vpow.pop %v2699
    %v2701 = vadd.f32 %v2700, 1.0
    %v2702 = vrcp.pop %v2701
    %v2703 = vmul.f32 1.0, %v2702
    %v2705 = vrot.slane %v2612, 4
    %v2707 = vunpack.c.l.bf16 %v2705
    %v2708 = vadd.f32 %v2707, %v2652
    %v2709 = vxor.u32 %v2708, 2147483648
    %v2710 = vmul.f32 %v2709, 1.442695
    %v2711 = vpow.pop %v2710
    %v2712 = vadd.f32 %v2711, 1.0
    %v2713 = vrcp.pop %v2712
    %v2714 = vmul.f32 1.0, %v2713
    %v2715 = vmul.f32 %v2703, %v2691
    %v2716 = vunpack.c.l.bf16 %v2613
    %v2717 = vadd.f32 %v2716, %v2715
    %v2718 = vtanh.pop %v2717
    %v2719 = vsub.f32 1.0, %v2714
    %v2720 = vmul.f32 %v2719, %v2718
    %v2721 = vmul.f32 %v2714, %v2609
    %v2722 = vadd.f32 %v2720, %v2721
    %2723 = vst [vmem:[%s1689] sm:$0xff] %v2722
    // Predicated region
    $region42: #{tpu_custom_call.1} parent=1 // pred_check
      %p2724 = pneg %p82
    $region43: #{tpu_custom_call.1} parent=1 // pred_check_branch
      %2726 = sbr.rel (%p2724) target = $region45
    $region44: #{tpu_custom_call.1} parent=1 // pred_region
      %v2727 = vld [vmem:[%s1689] sm:$0xff]
      %2728 = vst [vmem:[#allocation13] sm:$0xff] %v2727
    $region45: #{tpu_custom_call.1} parent=1 // pred_fallthru
      _
    // Predicated region
    $region46: #{tpu_custom_call.1} parent=1 // pred_check
      _
    $region47: #{tpu_custom_call.1} parent=1 // pred_check_branch
      %2730 = sbr.rel (0) target = $region49
    $region48: #{tpu_custom_call.1} parent=1 // pred_region
      %s2732 = ssub.s32 128, 128
      %2733 = vsyncadd [#allocation7], %s2732
      %s2735 = sshll.u32 [#allocation13], 4
      %s2736 = int_to_ptr.vmem [resolvable:$true] %s2735
      %2738 = dma.vmem_to_hbm [thread:$0]  %s2736, 128, %s5, [#allocation7]
    $region49: #{tpu_custom_call.1} parent=1 // pred_fallthru
      _
    // Predicated region
    $region50: #{tpu_custom_call.1} parent=1 // pred_check
      _
    $region51: #{tpu_custom_call.1} parent=1 // pred_check_branch
      %2740 = sbr.rel (0) target = $region53
    $region52: #{tpu_custom_call.1} parent=1 // pred_region
      %2741 = dma.done [#allocation7], 128
    $region53: #{tpu_custom_call.1} parent=1 // pred_fallthru
      _
    %2742 = vsyncpa [#allocation6], 1
    %2743 = vsyncpa [#allocation9], 1
    %2744 = vsyncpa [#allocation12], 1
    %2745 = vsyncpa [#allocation7], 1

</llo_original>
